<compile_context>
chip_gen: v7x
topology: tpu7x:2x2x1
jax: 0.10.0
libtpu: 0.0.40
codegen_flags: <defaults>
</compile_context>

<pallas_src>
import functools

import jax
import jax.numpy as jnp
from jax.experimental import pallas as pl
from jax.experimental.pallas import tpu as pltpu

BN_EPS = 1e-5
LANE = 128                          # TPU lane width: channel dims padded to this
VMEM_LIMIT_BYTES = 48 * 1024 * 1024


def _round_up(n, m):
    return (n + m - 1) // m * m


def _elu(y):
    # ELU(alpha=1); the clamp keeps the unselected branch finite. exp -> EUP slot.
    return jnp.where(y > 0, y, jnp.exp(jnp.minimum(y, 0.0)) - 1.0)


# ------------------------------ Pallas kernels ------------------------------ #

def _stats_kernel(x_ref, o_ref):
    """Per-channel [sum; sum-of-squares], accumulated over the M grid axis."""
    @pl.when(pl.program_id(0) == 0)
    def _():
        o_ref[...] = jnp.zeros_like(o_ref)

    x = x_ref[...].astype(jnp.float32)
    o_ref[0:1, :] += jnp.sum(x, axis=0, keepdims=True)
    o_ref[1:2, :] += jnp.sum(x * x, axis=0, keepdims=True)


def _pw_conv_kernel(x_ref, scale_ref, shift_ref, w_ref,
                    h_ref, ssum_ref, ssq_ref, *, m_real, tm):
    """Fused BN1-apply + ELU + 1x1 conv. Also emits per-tile partial sums of the
    result so BN2 statistics need no extra HBM pass over h1."""
    x = x_ref[...].astype(jnp.float32)
    a = _elu(x * scale_ref[...] + shift_ref[...])
    # Zero rows that only pad the flattened N*H*W axis so they neither pollute
    # the BN2 statistics nor the (discarded) tail of h1.
    row = jax.lax.broadcasted_iota(jnp.int32, (tm, 1), 0) + pl.program_id(0) * tm
    a = jnp.where(row < m_real, a, 0.0)
    h = jnp.dot(a.astype(jnp.bfloat16), w_ref[...],
                preferred_element_type=jnp.float32)
    h_ref[...] = h.astype(h_ref.dtype)
    ssum_ref[0] = jnp.sum(h, axis=0, keepdims=True)
    ssq_ref[0] = jnp.sum(h * h, axis=0, keepdims=True)


def _conv3x3_kernel(a_ref, scale_ref, shift_ref, mask_ref, w_ref, o_ref,
                    *, n_rows, wp, cout):
    """Fused BN2-apply + ELU + 3x3 conv (stride 1, pad 1) on one halo-padded image.

    The padded image is flattened to (Hp*Wp + 2, C); tap (kh, kw) of the 3x3
    stencil is the contiguous row window shifted by kh*Wp + kw, so the conv is
    9 accumulating (H*Wp, C) @ (C, Cout) MXU dots — no im2col in HBM. The two
    junk columns per output row are discarded by the wrapper."""
    x = a_ref[0].astype(jnp.float32)                       # (Lp2, Cmid)
    act = _elu(x * scale_ref[...] + shift_ref[...])
    act = act * mask_ref[...]                              # re-zero the conv halo
    acc = jnp.zeros((n_rows, cout), jnp.float32)
    for t in range(9):                                     # unrolled: 9 dots
        s = (t // 3) * wp + (t % 3)
        acc += jnp.dot(act[s:s + n_rows, :].astype(jnp.bfloat16), w_ref[t],
                       preferred_element_type=jnp.float32)
    o_ref[0] = acc


# --------------------------- pallas_call wrappers ---------------------------- #

def _channel_stats(x2d_p, tm, m_real):
    """Biased per-channel mean/var of the first m_real rows (padded rows are 0)."""
    mp, c = x2d_p.shape
    sums = pl.pallas_call(
        _stats_kernel,
        out_shape=jax.ShapeDtypeStruct((2, c), jnp.float32),
        grid=(mp // tm,),
        in_specs=[pl.BlockSpec((tm, c), lambda i: (i, 0))],
        out_specs=pl.BlockSpec((2, c), lambda i: (0, 0)),
        compiler_params=pltpu.CompilerParams(
            dimension_semantics=("arbitrary",),            # accumulator axis
            vmem_limit_bytes=VMEM_LIMIT_BYTES),
    )(x2d_p)
    mean = sums[0] / m_real
    var = jnp.maximum(sums[1] / m_real - mean * mean, 0.0)
    return mean, var


def _pointwise_block(x2d_p, scale, shift, w_bf16, tm, m_real):
    mp, cin = x2d_p.shape
    cmid = w_bf16.shape[1]
    nt = mp // tm
    kernel = functools.partial(_pw_conv_kernel, m_real=m_real, tm=tm)
    return pl.pallas_call(
        kernel,
        out_shape=(jax.ShapeDtypeStruct((mp, cmid), jnp.bfloat16),
                   jax.ShapeDtypeStruct((nt, 1, cmid), jnp.float32),
                   jax.ShapeDtypeStruct((nt, 1, cmid), jnp.float32)),
        grid=(nt,),
        in_specs=[
            pl.BlockSpec((tm, cin), lambda i: (i, 0)),
            pl.BlockSpec((1, cin), lambda i: (0, 0)),
            pl.BlockSpec((1, cin), lambda i: (0, 0)),
            pl.BlockSpec((cin, cmid), lambda i: (0, 0)),
        ],
        out_specs=(pl.BlockSpec((tm, cmid), lambda i: (i, 0)),
                   pl.BlockSpec((1, 1, cmid), lambda i: (i, 0, 0)),
                   pl.BlockSpec((1, 1, cmid), lambda i: (i, 0, 0))),
        compiler_params=pltpu.CompilerParams(
            dimension_semantics=("parallel",),
            vmem_limit_bytes=VMEM_LIMIT_BYTES),
    )(x2d_p, scale, shift, w_bf16)


def _conv3x3_block(a_flat, scale, shift, mask, w_taps_bf16, hh, ww):
    n, lp2, cmid = a_flat.shape
    cout = w_taps_bf16.shape[2]
    wp = ww + 2
    n_rows = hh * wp
    kernel = functools.partial(_conv3x3_kernel, n_rows=n_rows, wp=wp, cout=cout)
    return pl.pallas_call(
        kernel,
        out_shape=jax.ShapeDtypeStruct((n, n_rows, cout), jnp.float32),
        grid=(n,),
        in_specs=[
            pl.BlockSpec((1, lp2, cmid), lambda i: (i, 0, 0)),
            pl.BlockSpec((1, cmid), lambda i: (0, 0)),
            pl.BlockSpec((1, cmid), lambda i: (0, 0)),
            pl.BlockSpec((lp2, 1), lambda i: (0, 0)),
            pl.BlockSpec((9, cmid, cout), lambda i: (0, 0, 0)),
        ],
        out_specs=pl.BlockSpec((1, n_rows, cout), lambda i: (i, 0, 0)),
        compiler_params=pltpu.CompilerParams(
            dimension_semantics=("parallel",),
            vmem_limit_bytes=VMEM_LIMIT_BYTES),
    )(a_flat, scale, shift, mask, w_taps_bf16)


# ---------------------------------- forward ---------------------------------- #

def _bn_scale_shift(mean, var, gamma, beta):
    scale = gamma * jax.lax.rsqrt(var + BN_EPS)
    shift = beta - mean * scale
    return scale.reshape(1, -1), shift.reshape(1, -1)


def bottleneck_block(x_nchw, params, *, tm=1024):
    """BottleneckBlock forward. Input/output in PyTorch NCHW layout."""
    # TODO(synk): Dropout2d path (dropout is not None) is not implemented; the
    # default BottleneckBlock has dropout=None, so it is unused here.
    w1, w2 = params["w1"], params["w2"]
    cmid_r = w1.shape[0]                 # 4*k
    k = w2.shape[0]

    x = jnp.transpose(x_nchw, (0, 2, 3, 1)).astype(jnp.float32)   # NHWC
    n, hh, ww, cin = x.shape
    m = n * hh * ww

    cin_p = _round_up(cin, LANE)
    cmid_p = _round_up(cmid_r, LANE)
    cout_p = _round_up(k, LANE)

    tm = min(tm, _round_up(m, 8))
    mp = _round_up(m, tm)

    # ---- layout / parameter prep (pure data movement; zero padding) ----------
    x2d = jnp.pad(x.reshape(m, cin), ((0, mp - m), (0, cin_p - cin)))
    g1 = jnp.pad(params["gamma1"], (0, cin_p - cin))
    b1 = jnp.pad(params["beta1"], (0, cin_p - cin))
    g2 = jnp.pad(params["gamma2"], (0, cmid_p - cmid_r))
    b2 = jnp.pad(params["beta2"], (0, cmid_p - cmid_r))

    w1m = jnp.transpose(w1[:, :, 0, 0], (1, 0))                       # (cin, 4k)
    w1m = jnp.pad(w1m, ((0, cin_p - cin), (0, cmid_p - cmid_r))).astype(jnp.bfloat16)
    w2m = jnp.transpose(w2, (2, 3, 1, 0)).reshape(9, cmid_r, k)       # tap-major
    w2m = jnp.pad(w2m, ((0, 0), (0, cmid_p - cmid_r), (0, cout_p - k))).astype(jnp.bfloat16)

    # ---- BN1 statistics (tiled Pallas reduction) + fused stage 1 --------------
    mean1, var1 = _channel_stats(x2d, tm, m)
    scale1, shift1 = _bn_scale_shift(mean1, var1, g1, b1)
    h1, s2_sum, s2_sq = _pointwise_block(x2d, scale1, shift1, w1m, tm, m)

    # ---- BN2 statistics from stage-1 partial sums (no extra pass over h1) -----
    mean2 = jnp.sum(s2_sum, axis=(0, 1)) / m
    var2 = jnp.maximum(jnp.sum(s2_sq, axis=(0, 1)) / m - mean2 * mean2, 0.0)
    scale2, shift2 = _bn_scale_shift(mean2, var2, g2, b2)

    # ---- stage 2: fused BN2+ELU+3x3 conv on halo-padded per-image blocks ------
    hp, wp = hh + 2, ww + 2
    h1_img = h1[:m].reshape(n, hh, ww, cmid_p)
    a_pad = jnp.pad(h1_img, ((0, 0), (1, 1), (1, 1), (0, 0)))        # spatial halo
    lp2 = hp * wp + 2            # +2 rows so the last tap's shifted slice is in bounds
    a_flat = jnp.pad(a_pad.reshape(n, hp * wp, cmid_p), ((0, 0), (0, 2), (0, 0)))

    r = jnp.arange(lp2)
    hp_i, wp_i = r // wp, r % wp
    interior = ((hp_i >= 1) & (hp_i <= hh) & (wp_i >= 1) & (wp_i <= ww)
                & (r < hp * wp))
    mask = interior.astype(jnp.float32).reshape(lp2, 1)

    o_ext = _conv3x3_block(a_flat, scale2, shift2, mask, w2m, hh, ww)
    feat = o_ext[:, :, :k].reshape(n, hh, wp, k)[:, :, :ww, :]       # drop padding

    # ---- channel concat with the residual (torch.cat([x, f], dim=1)) ----------
    out = jnp.concatenate([x, feat], axis=-1)
    return jnp.transpose(out, (0, 3, 1, 2))                           # NCHW


# ------------------------------ pure-JAX reference --------------------------- #

def _reference(x_nchw, params):
    x = jnp.transpose(x_nchw, (0, 2, 3, 1)).astype(jnp.float32)

    def preact(inp, gamma, beta, w_oihw, pad):
        mean = jnp.mean(inp, axis=(0, 1, 2), keepdims=True)
        var = jnp.mean(jnp.square(inp - mean), axis=(0, 1, 2), keepdims=True)
        y = (inp - mean) * jax.lax.rsqrt(var + BN_EPS) * gamma + beta
        a = jnp.where(y > 0, y, jnp.exp(jnp.minimum(y, 0.0)) - 1.0)
        w_hwio = jnp.transpose(w_oihw, (2, 3, 1, 0))
        return jax.lax.conv_general_dilated(
            a, w_hwio, window_strides=(1, 1), padding=[(pad, pad), (pad, pad)],
            dimension_numbers=("NHWC", "HWIO", "NHWC"))

    h = preact(x, params["gamma1"], params["beta1"], params["w1"], 0)   # 1x1
    f = preact(h, params["gamma2"], params["beta2"], params["w2"], 1)   # 3x3
    return jnp.transpose(jnp.concatenate([x, f], axis=-1), (0, 3, 1, 2))


# ------------------------------------ main ----------------------------------- #

if __name__ == "__main__":
    key = jax.random.PRNGKey(0)
    N, C_IN, H, W, K = 2, 4, 16, 16, 4       # BottleneckBlock(in_channels=4, k=4)
    C_MID = 4 * K
    ks = jax.random.split(key, 7)
    x = jax.random.normal(ks[0], (N, C_IN, H, W), jnp.float32)
    params = {
        # BatchNorm2d affine params (perturbed so the math is exercised).
        "gamma1": 1.0 + 0.1 * jax.random.normal(ks[1], (C_IN,), jnp.float32),
        "beta1": 0.1 * jax.random.normal(ks[2], (C_IN,), jnp.float32),
        "gamma2": 1.0 + 0.1 * jax.random.normal(ks[3], (C_MID,), jnp.float32),
        "beta2": 0.1 * jax.random.normal(ks[4], (C_MID,), jnp.float32),
        # Conv2d weights in PyTorch OIHW layout (bias=False).
        "w1": 0.1 * jax.random.normal(ks[5], (C_MID, C_IN, 1, 1), jnp.float32),
        "w2": 0.1 * jax.random.normal(ks[6], (K, C_MID, 3, 3), jnp.float32),
    }

    out = jax.block_until_ready(jax.jit(bottleneck_block)(x, params))
    ref = jax.block_until_ready(jax.jit(_reference)(x, params))

    assert out.shape == (N, C_IN + K, H, W), out.shape
    max_err = float(jnp.max(jnp.abs(out - ref)))
    # bf16 MXU operands with f32 accumulation -> loosen vs. the f32 reference.
    assert jnp.allclose(out, ref, atol=5e-2, rtol=5e-2), f"max_err={max_err}"
    print("KERNEL_OK")
</pallas_src>

<mosaic_0001>
module attributes {stable_mosaic.version = 11 : i64} {
  func.func @_stats_kernel(%arg0: i32, %arg1: memref<512x128xf32, #tpu.memory_space<vmem>>, %arg2: memref<2x128xf32, #tpu.memory_space<vmem>>) attributes {dimension_semantics = [#tpu.dimension_semantics<arbitrary>], iteration_bounds = array<i64: 1>, scalar_prefetch = 0 : i64, scratch_operands = 0 : i64, tpu.core_type = #tpu.core_type<tc>, window_params = [{transform_indices = @transform_0, window_bounds = array<i64: 512, 128>}, {pipeline_mode = #tpu.pipeline_mode<synchronous>, transform_indices = @transform_1, window_bounds = array<i64: 2, 128>}]} {
    %c0_i32 = arith.constant 0 : i32
    %0 = arith.cmpi eq, %arg0, %c0_i32 : i32
    %1 = arith.extui %0 : i1 to i32
    %c0_i32_0 = arith.constant 0 : i32
    %2 = arith.cmpi ne, %1, %c0_i32_0 : i32
    scf.if %2 {
      %cst_10 = arith.constant 0.000000e+00 : f32
      %15 = vector.broadcast %cst_10 : f32 to vector<2x128xf32>
      %c0_11 = arith.constant 0 : index
      %c0_12 = arith.constant 0 : index
      %16 = vector.load %arg2[%c0_11, %c0_12] : memref<2x128xf32, #tpu.memory_space<vmem>>, vector<2x128xf32>
      tpu.vector_store %arg2[%c0_11, %c0_12], %15 {strides = array<i32>} : memref<2x128xf32, #tpu.memory_space<vmem>>, vector<2x128xf32>,
    } else {
    }
    %c0 = arith.constant 0 : index
    %c0_1 = arith.constant 0 : index
    %3 = vector.load %arg1[%c0, %c0_1] : memref<512x128xf32, #tpu.memory_space<vmem>>, vector<512x128xf32>
    %c0_2 = arith.constant 0 : index
    %c0_3 = arith.constant 0 : index
    %4 = vector.load %arg2[%c0_2, %c0_3] : memref<2x128xf32, #tpu.memory_space<vmem>>, vector<1x128xf32>
    %cst = arith.constant dense<0.000000e+00> : vector<128xf32>
    %5 = vector.multi_reduction <add>, %3, %cst [0] : vector<512x128xf32> to vector<128xf32>
    %6 = vector.shape_cast %5 : vector<128xf32> to vector<1x128xf32>
    %7 = arith.addf %4, %6 : vector<1x128xf32>
    %c0_4 = arith.constant 0 : index
    %c0_5 = arith.constant 0 : index
    %8 = vector.load %arg2[%c0_4, %c0_5] : memref<2x128xf32, #tpu.memory_space<vmem>>, vector<1x128xf32>
    tpu.vector_store %arg2[%c0_4, %c0_5], %7 {strides = array<i32>} : memref<2x128xf32, #tpu.memory_space<vmem>>, vector<1x128xf32>,
    %c1 = arith.constant 1 : index
    %c0_6 = arith.constant 0 : index
    %9 = vector.load %arg2[%c1, %c0_6] : memref<2x128xf32, #tpu.memory_space<vmem>>, vector<1x128xf32>
    %10 = arith.mulf %3, %3 : vector<512x128xf32>
    %cst_7 = arith.constant dense<0.000000e+00> : vector<128xf32>
    %11 = vector.multi_reduction <add>, %10, %cst_7 [0] : vector<512x128xf32> to vector<128xf32>
    %12 = vector.shape_cast %11 : vector<128xf32> to vector<1x128xf32>
    %13 = arith.addf %9, %12 : vector<1x128xf32>
    %c1_8 = arith.constant 1 : index
    %c0_9 = arith.constant 0 : index
    %14 = vector.load %arg2[%c1_8, %c0_9] : memref<2x128xf32, #tpu.memory_space<vmem>>, vector<1x128xf32>
    tpu.vector_store %arg2[%c1_8, %c0_9], %13 {strides = array<i32>} : memref<2x128xf32, #tpu.memory_space<vmem>>, vector<1x128xf32>,
    return
  }
  func.func @transform_0(%arg0: i32) -> (i32, i32) {
    %c0_i32 = arith.constant 0 : i32
    %c0_i32_0 = arith.constant 0 : i32
    return %arg0, %c0_i32 : i32, i32
  }
  func.func @transform_1(%arg0: i32) -> (i32, i32) {
    %c0_i32 = arith.constant 0 : i32
    %c0_i32_0 = arith.constant 0 : i32
    %c0_i32_1 = arith.constant 0 : i32
    return %c0_i32, %c0_i32_0 : i32, i32
  }
}

module attributes {stable_mosaic.version = 11 : i64} {
  func.func @_pw_conv_kernel(%arg0: i32, %arg1: memref<512x128xf32, #tpu.memory_space<vmem>>, %arg2: memref<1x128xf32, #tpu.memory_space<vmem>>, %arg3: memref<1x128xf32, #tpu.memory_space<vmem>>, %arg4: memref<128x128xbf16, #tpu.memory_space<vmem>>, %arg5: memref<512x128xbf16, #tpu.memory_space<vmem>>, %arg6: memref<1x1x128xf32, #tpu.memory_space<vmem>>, %arg7: memref<1x1x128xf32, #tpu.memory_space<vmem>>) attributes {dimension_semantics = [#tpu.dimension_semantics<parallel>], iteration_bounds = array<i64: 1>, scalar_prefetch = 0 : i64, scratch_operands = 0 : i64, tpu.core_type = #tpu.core_type<tc>, window_params = [{transform_indices = @transform_0, window_bounds = array<i64: 512, 128>}, {pipeline_mode = #tpu.pipeline_mode<synchronous>, transform_indices = @transform_1, window_bounds = array<i64: 1, 128>}, {pipeline_mode = #tpu.pipeline_mode<synchronous>, transform_indices = @transform_2, window_bounds = array<i64: 1, 128>}, {pipeline_mode = #tpu.pipeline_mode<synchronous>, transform_indices = @transform_3, window_bounds = array<i64: 128, 128>}, {transform_indices = @transform_4, window_bounds = array<i64: 512, 128>}, {transform_indices = @transform_5, window_bounds = array<i64: 1, 1, 128>}, {transform_indices = @transform_6, window_bounds = array<i64: 1, 1, 128>}]} {
    %c0 = arith.constant 0 : index
    %c0_0 = arith.constant 0 : index
    %0 = vector.load %arg1[%c0, %c0_0] : memref<512x128xf32, #tpu.memory_space<vmem>>, vector<512x128xf32>
    %c0_1 = arith.constant 0 : index
    %c0_2 = arith.constant 0 : index
    %1 = vector.load %arg2[%c0_1, %c0_2] : memref<1x128xf32, #tpu.memory_space<vmem>>, vector<1x128xf32>
    %2 = vector.broadcast %1 : vector<1x128xf32> to vector<512x128xf32>
    %3 = arith.mulf %0, %2 : vector<512x128xf32>
    %c0_3 = arith.constant 0 : index
    %c0_4 = arith.constant 0 : index
    %4 = vector.load %arg3[%c0_3, %c0_4] : memref<1x128xf32, #tpu.memory_space<vmem>>, vector<1x128xf32>
    %5 = vector.broadcast %4 : vector<1x128xf32> to vector<512x128xf32>
    %6 = arith.addf %3, %5 : vector<512x128xf32>
    %cst = arith.constant 0.000000e+00 : f32
    %7 = vector.broadcast %cst : f32 to vector<512x128xf32>
    %8 = arith.cmpf ogt, %6, %7 : vector<512x128xf32>
    %cst_5 = arith.constant 0.000000e+00 : f32
    %9 = vector.broadcast %cst_5 : f32 to vector<512x128xf32>
    %10 = arith.minimumf %6, %9 : vector<512x128xf32>
    %11 = math.exp %10 : vector<512x128xf32>
    %cst_6 = arith.constant 1.000000e+00 : f32
    %12 = vector.broadcast %cst_6 : f32 to vector<512x128xf32>
    %13 = arith.subf %11, %12 : vector<512x128xf32>
    %14 = arith.select %8, %6, %13 : vector<512x128xi1>, vector<512x128xf32>
    %15 = tpu.iota {dimensions = array<i32: 0>} : vector<512x1xi32>
    %c512_i32 = arith.constant 512 : i32
    %16 = arith.muli %arg0, %c512_i32 : i32
    %17 = vector.broadcast %16 : i32 to vector<512x1xi32>
    %18 = arith.addi %15, %17 : vector<512x1xi32>
    %c512_i32_7 = arith.constant 512 : i32
    %19 = vector.broadcast %c512_i32_7 : i32 to vector<512x1xi32>
    %20 = arith.cmpi slt, %18, %19 : vector<512x1xi32>
    %cst_8 = arith.constant 0.000000e+00 : f32
    %21 = vector.shape_cast %20 : vector<512x1xi1> to vector<512x1xi1>
    %22 = vector.broadcast %21 : vector<512x1xi1> to vector<512x128xi1>
    %23 = vector.broadcast %cst_8 : f32 to vector<512x128xf32>
    %24 = arith.select %22, %14, %23 : vector<512x128xi1>, vector<512x128xf32>
    %25 = arith.truncf %24 : vector<512x128xf32> to vector<512x128xbf16>
    %c0_9 = arith.constant 0 : index
    %c0_10 = arith.constant 0 : index
    %26 = vector.load %arg4[%c0_9, %c0_10] : memref<128x128xbf16, #tpu.memory_space<vmem>>, vector<128x128xbf16>
    %cst_11 = arith.constant dense<0.000000e+00> : vector<512x128xf32>
    %27 = tpu.matmul %25, %26, %cst_11 {dimension_numbers = #tpu.dot_dimension_numbers<[1], [0], [0], [1], [0, 0, 1, 1], [], []>} : vector<512x128xbf16>, vector<128x128xbf16>, vector<512x128xf32> -> vector<512x128xf32>
    %28 = arith.truncf %27 : vector<512x128xf32> to vector<512x128xbf16>
    %c0_12 = arith.constant 0 : index
    %c0_13 = arith.constant 0 : index
    %29 = vector.load %arg5[%c0_12, %c0_13] : memref<512x128xbf16, #tpu.memory_space<vmem>>, vector<512x128xbf16>
    tpu.vector_store %arg5[%c0_12, %c0_13], %28 {strides = array<i32>} : memref<512x128xbf16, #tpu.memory_space<vmem>>, vector<512x128xbf16>,
    %cst_14 = arith.constant dense<0.000000e+00> : vector<128xf32>
    %30 = vector.multi_reduction <add>, %27, %cst_14 [0] : vector<512x128xf32> to vector<128xf32>
    %31 = vector.shape_cast %30 : vector<128xf32> to vector<1x128xf32>
    %c0_15 = arith.constant 0 : index
    %c0_16 = arith.constant 0 : index
    %c0_17 = arith.constant 0 : index
    %32 = vector.load %arg6[%c0_15, %c0_16, %c0_17] : memref<1x1x128xf32, #tpu.memory_space<vmem>>, vector<1x1x128xf32>
    %33 = vector.shape_cast %32 : vector<1x1x128xf32> to vector<1x128xf32>
    %34 = vector.shape_cast %31 : vector<1x128xf32> to vector<1x1x128xf32>
    tpu.vector_store %arg6[%c0_15, %c0_16, %c0_17], %34 {strides = array<i32>} : memref<1x1x128xf32, #tpu.memory_space<vmem>>, vector<1x1x128xf32>,
    %35 = arith.mulf %27, %27 : vector<512x128xf32>
    %cst_18 = arith.constant dense<0.000000e+00> : vector<128xf32>
    %36 = vector.multi_reduction <add>, %35, %cst_18 [0] : vector<512x128xf32> to vector<128xf32>
    %37 = vector.shape_cast %36 : vector<128xf32> to vector<1x128xf32>
    %c0_19 = arith.constant 0 : index
    %c0_20 = arith.constant 0 : index
    %c0_21 = arith.constant 0 : index
    %38 = vector.load %arg7[%c0_19, %c0_20, %c0_21] : memref<1x1x128xf32, #tpu.memory_space<vmem>>, vector<1x1x128xf32>
    %39 = vector.shape_cast %38 : vector<1x1x128xf32> to vector<1x128xf32>
    %40 = vector.shape_cast %37 : vector<1x128xf32> to vector<1x1x128xf32>
    tpu.vector_store %arg7[%c0_19, %c0_20, %c0_21], %40 {strides = array<i32>} : memref<1x1x128xf32, #tpu.memory_space<vmem>>, vector<1x1x128xf32>,
    return
  }
  func.func @transform_0(%arg0: i32) -> (i32, i32) {
    %c0_i32 = arith.constant 0 : i32
    %c0_i32_0 = arith.constant 0 : i32
    return %arg0, %c0_i32 : i32, i32
  }
  func.func @transform_1(%arg0: i32) -> (i32, i32) {
    %c0_i32 = arith.constant 0 : i32
    %c0_i32_0 = arith.constant 0 : i32
    %c0_i32_1 = arith.constant 0 : i32
    return %c0_i32, %c0_i32_0 : i32, i32
  }
  func.func @transform_2(%arg0: i32) -> (i32, i32) {
    %c0_i32 = arith.constant 0 : i32
    %c0_i32_0 = arith.constant 0 : i32
    %c0_i32_1 = arith.constant 0 : i32
    return %c0_i32, %c0_i32_0 : i32, i32
  }
  func.func @transform_3(%arg0: i32) -> (i32, i32) {
    %c0_i32 = arith.constant 0 : i32
    %c0_i32_0 = arith.constant 0 : i32
    %c0_i32_1 = arith.constant 0 : i32
    return %c0_i32, %c0_i32_0 : i32, i32
  }
  func.func @transform_4(%arg0: i32) -> (i32, i32) {
    %c0_i32 = arith.constant 0 : i32
    %c0_i32_0 = arith.constant 0 : i32
    return %arg0, %c0_i32 : i32, i32
  }
  func.func @transform_5(%arg0: i32) -> (i32, i32, i32) {
    %c0_i32 = arith.constant 0 : i32
    %c0_i32_0 = arith.constant 0 : i32
    %c0_i32_1 = arith.constant 0 : i32
    return %arg0, %c0_i32, %c0_i32_0 : i32, i32, i32
  }
  func.func @transform_6(%arg0: i32) -> (i32, i32, i32) {
    %c0_i32 = arith.constant 0 : i32
    %c0_i32_0 = arith.constant 0 : i32
    %c0_i32_1 = arith.constant 0 : i32
    return %arg0, %c0_i32, %c0_i32_0 : i32, i32, i32
  }
}

module attributes {stable_mosaic.version = 11 : i64} {
  func.func @_conv3x3_kernel(%arg0: i32, %arg1: memref<1x326x128xbf16, #tpu.memory_space<vmem>>, %arg2: memref<1x128xf32, #tpu.memory_space<vmem>>, %arg3: memref<1x128xf32, #tpu.memory_space<vmem>>, %arg4: memref<326x1xf32, #tpu.memory_space<vmem>>, %arg5: memref<9x128x128xbf16, #tpu.memory_space<vmem>>, %arg6: memref<1x288x128xf32, #tpu.memory_space<vmem>>) attributes {dimension_semantics = [#tpu.dimension_semantics<parallel>], iteration_bounds = array<i64: 2>, scalar_prefetch = 0 : i64, scratch_operands = 0 : i64, tpu.core_type = #tpu.core_type<tc>, window_params = [{transform_indices = @transform_0, window_bounds = array<i64: 1, 326, 128>}, {pipeline_mode = #tpu.pipeline_mode<synchronous>, transform_indices = @transform_1, window_bounds = array<i64: 1, 128>}, {pipeline_mode = #tpu.pipeline_mode<synchronous>, transform_indices = @transform_2, window_bounds = array<i64: 1, 128>}, {pipeline_mode = #tpu.pipeline_mode<synchronous>, transform_indices = @transform_3, window_bounds = array<i64: 326, 1>}, {pipeline_mode = #tpu.pipeline_mode<synchronous>, transform_indices = @transform_4, window_bounds = array<i64: 9, 128, 128>}, {transform_indices = @transform_5, window_bounds = array<i64: 1, 288, 128>}]} {
    %c0 = arith.constant 0 : index
    %c0_0 = arith.constant 0 : index
    %c0_1 = arith.constant 0 : index
    %0 = vector.load %arg1[%c0, %c0_0, %c0_1] : memref<1x326x128xbf16, #tpu.memory_space<vmem>>, vector<1x326x128xbf16>
    %1 = vector.shape_cast %0 : vector<1x326x128xbf16> to vector<326x128xbf16>
    %2 = arith.extf %1 : vector<326x128xbf16> to vector<326x128xf32>
    %c0_2 = arith.constant 0 : index
    %c0_3 = arith.constant 0 : index
    %3 = vector.load %arg2[%c0_2, %c0_3] : memref<1x128xf32, #tpu.memory_space<vmem>>, vector<1x128xf32>
    %4 = vector.broadcast %3 : vector<1x128xf32> to vector<326x128xf32>
    %5 = arith.mulf %2, %4 : vector<326x128xf32>
    %c0_4 = arith.constant 0 : index
    %c0_5 = arith.constant 0 : index
    %6 = vector.load %arg3[%c0_4, %c0_5] : memref<1x128xf32, #tpu.memory_space<vmem>>, vector<1x128xf32>
    %7 = vector.broadcast %6 : vector<1x128xf32> to vector<326x128xf32>
    %8 = arith.addf %5, %7 : vector<326x128xf32>
    %cst = arith.constant 0.000000e+00 : f32
    %9 = vector.broadcast %cst : f32 to vector<326x128xf32>
    %10 = arith.cmpf ogt, %8, %9 : vector<326x128xf32>
    %cst_6 = arith.constant 0.000000e+00 : f32
    %11 = vector.broadcast %cst_6 : f32 to vector<326x128xf32>
    %12 = arith.minimumf %8, %11 : vector<326x128xf32>
    %13 = math.exp %12 : vector<326x128xf32>
    %cst_7 = arith.constant 1.000000e+00 : f32
    %14 = vector.broadcast %cst_7 : f32 to vector<326x128xf32>
    %15 = arith.subf %13, %14 : vector<326x128xf32>
    %16 = arith.select %10, %8, %15 : vector<326x128xi1>, vector<326x128xf32>
    %c0_8 = arith.constant 0 : index
    %c0_9 = arith.constant 0 : index
    %17 = vector.load %arg4[%c0_8, %c0_9] : memref<326x1xf32, #tpu.memory_space<vmem>>, vector<326x1xf32>
    %18 = vector.broadcast %17 : vector<326x1xf32> to vector<326x128xf32>
    %19 = arith.mulf %16, %18 : vector<326x128xf32>
    %cst_10 = arith.constant 0.000000e+00 : f32
    %20 = vector.broadcast %cst_10 : f32 to vector<288x128xf32>
    %21 = vector.extract_strided_slice %19 {offsets = [0, 0], sizes = [288, 128], strides = [1, 1]} : vector<326x128xf32> to vector<288x128xf32>
    %22 = arith.truncf %21 : vector<288x128xf32> to vector<288x128xbf16>
    %c0_11 = arith.constant 0 : index
    %c0_12 = arith.constant 0 : index
    %c0_13 = arith.constant 0 : index
    %23 = vector.load %arg5[%c0_11, %c0_12, %c0_13] : memref<9x128x128xbf16, #tpu.memory_space<vmem>>, vector<1x128x128xbf16>
    %24 = vector.shape_cast %23 : vector<1x128x128xbf16> to vector<128x128xbf16>
    %cst_14 = arith.constant dense<0.000000e+00> : vector<288x128xf32>
    %25 = tpu.matmul %22, %24, %cst_14 {dimension_numbers = #tpu.dot_dimension_numbers<[1], [0], [0], [1], [0, 0, 1, 1], [], []>} : vector<288x128xbf16>, vector<128x128xbf16>, vector<288x128xf32> -> vector<288x128xf32>
    %26 = arith.addf %20, %25 : vector<288x128xf32>
    %27 = vector.extract_strided_slice %19 {offsets = [1, 0], sizes = [288, 128], strides = [1, 1]} : vector<326x128xf32> to vector<288x128xf32>
    %28 = arith.truncf %27 : vector<288x128xf32> to vector<288x128xbf16>
    %c1 = arith.constant 1 : index
    %c0_15 = arith.constant 0 : index
    %c0_16 = arith.constant 0 : index
    %29 = vector.load %arg5[%c1, %c0_15, %c0_16] : memref<9x128x128xbf16, #tpu.memory_space<vmem>>, vector<1x128x128xbf16>
    %30 = vector.shape_cast %29 : vector<1x128x128xbf16> to vector<128x128xbf16>
    %cst_17 = arith.constant dense<0.000000e+00> : vector<288x128xf32>
    %31 = tpu.matmul %28, %30, %cst_17 {dimension_numbers = #tpu.dot_dimension_numbers<[1], [0], [0], [1], [0, 0, 1, 1], [], []>} : vector<288x128xbf16>, vector<128x128xbf16>, vector<288x128xf32> -> vector<288x128xf32>
    %32 = arith.addf %26, %31 : vector<288x128xf32>
    %33 = vector.extract_strided_slice %19 {offsets = [2, 0], sizes = [288, 128], strides = [1, 1]} : vector<326x128xf32> to vector<288x128xf32>
    %34 = arith.truncf %33 : vector<288x128xf32> to vector<288x128xbf16>
    %c2 = arith.constant 2 : index
    %c0_18 = arith.constant 0 : index
    %c0_19 = arith.constant 0 : index
    %35 = vector.load %arg5[%c2, %c0_18, %c0_19] : memref<9x128x128xbf16, #tpu.memory_space<vmem>>, vector<1x128x128xbf16>
    %36 = vector.shape_cast %35 : vector<1x128x128xbf16> to vector<128x128xbf16>
    %cst_20 = arith.constant dense<0.000000e+00> : vector<288x128xf32>
    %37 = tpu.matmul %34, %36, %cst_20 {dimension_numbers = #tpu.dot_dimension_numbers<[1], [0], [0], [1], [0, 0, 1, 1], [], []>} : vector<288x128xbf16>, vector<128x128xbf16>, vector<288x128xf32> -> vector<288x128xf32>
    %38 = arith.addf %32, %37 : vector<288x128xf32>
    %39 = vector.extract_strided_slice %19 {offsets = [18, 0], sizes = [288, 128], strides = [1, 1]} : vector<326x128xf32> to vector<288x128xf32>
    %40 = arith.truncf %39 : vector<288x128xf32> to vector<288x128xbf16>
    %c3 = arith.constant 3 : index
    %c0_21 = arith.constant 0 : index
    %c0_22 = arith.constant 0 : index
    %41 = vector.load %arg5[%c3, %c0_21, %c0_22] : memref<9x128x128xbf16, #tpu.memory_space<vmem>>, vector<1x128x128xbf16>
    %42 = vector.shape_cast %41 : vector<1x128x128xbf16> to vector<128x128xbf16>
    %cst_23 = arith.constant dense<0.000000e+00> : vector<288x128xf32>
    %43 = tpu.matmul %40, %42, %cst_23 {dimension_numbers = #tpu.dot_dimension_numbers<[1], [0], [0], [1], [0, 0, 1, 1], [], []>} : vector<288x128xbf16>, vector<128x128xbf16>, vector<288x128xf32> -> vector<288x128xf32>
    %44 = arith.addf %38, %43 : vector<288x128xf32>
    %45 = vector.extract_strided_slice %19 {offsets = [19, 0], sizes = [288, 128], strides = [1, 1]} : vector<326x128xf32> to vector<288x128xf32>
    %46 = arith.truncf %45 : vector<288x128xf32> to vector<288x128xbf16>
    %c4 = arith.constant 4 : index
    %c0_24 = arith.constant 0 : index
    %c0_25 = arith.constant 0 : index
    %47 = vector.load %arg5[%c4, %c0_24, %c0_25] : memref<9x128x128xbf16, #tpu.memory_space<vmem>>, vector<1x128x128xbf16>
    %48 = vector.shape_cast %47 : vector<1x128x128xbf16> to vector<128x128xbf16>
    %cst_26 = arith.constant dense<0.000000e+00> : vector<288x128xf32>
    %49 = tpu.matmul %46, %48, %cst_26 {dimension_numbers = #tpu.dot_dimension_numbers<[1], [0], [0], [1], [0, 0, 1, 1], [], []>} : vector<288x128xbf16>, vector<128x128xbf16>, vector<288x128xf32> -> vector<288x128xf32>
    %50 = arith.addf %44, %49 : vector<288x128xf32>
    %51 = vector.extract_strided_slice %19 {offsets = [20, 0], sizes = [288, 128], strides = [1, 1]} : vector<326x128xf32> to vector<288x128xf32>
    %52 = arith.truncf %51 : vector<288x128xf32> to vector<288x128xbf16>
    %c5 = arith.constant 5 : index
    %c0_27 = arith.constant 0 : index
    %c0_28 = arith.constant 0 : index
    %53 = vector.load %arg5[%c5, %c0_27, %c0_28] : memref<9x128x128xbf16, #tpu.memory_space<vmem>>, vector<1x128x128xbf16>
    %54 = vector.shape_cast %53 : vector<1x128x128xbf16> to vector<128x128xbf16>
    %cst_29 = arith.constant dense<0.000000e+00> : vector<288x128xf32>
    %55 = tpu.matmul %52, %54, %cst_29 {dimension_numbers = #tpu.dot_dimension_numbers<[1], [0], [0], [1], [0, 0, 1, 1], [], []>} : vector<288x128xbf16>, vector<128x128xbf16>, vector<288x128xf32> -> vector<288x128xf32>
    %56 = arith.addf %50, %55 : vector<288x128xf32>
    %57 = vector.extract_strided_slice %19 {offsets = [36, 0], sizes = [288, 128], strides = [1, 1]} : vector<326x128xf32> to vector<288x128xf32>
    %58 = arith.truncf %57 : vector<288x128xf32> to vector<288x128xbf16>
    %c6 = arith.constant 6 : index
    %c0_30 = arith.constant 0 : index
    %c0_31 = arith.constant 0 : index
    %59 = vector.load %arg5[%c6, %c0_30, %c0_31] : memref<9x128x128xbf16, #tpu.memory_space<vmem>>, vector<1x128x128xbf16>
    %60 = vector.shape_cast %59 : vector<1x128x128xbf16> to vector<128x128xbf16>
    %cst_32 = arith.constant dense<0.000000e+00> : vector<288x128xf32>
    %61 = tpu.matmul %58, %60, %cst_32 {dimension_numbers = #tpu.dot_dimension_numbers<[1], [0], [0], [1], [0, 0, 1, 1], [], []>} : vector<288x128xbf16>, vector<128x128xbf16>, vector<288x128xf32> -> vector<288x128xf32>
    %62 = arith.addf %56, %61 : vector<288x128xf32>
    %63 = vector.extract_strided_slice %19 {offsets = [37, 0], sizes = [288, 128], strides = [1, 1]} : vector<326x128xf32> to vector<288x128xf32>
    %64 = arith.truncf %63 : vector<288x128xf32> to vector<288x128xbf16>
    %c7 = arith.constant 7 : index
    %c0_33 = arith.constant 0 : index
    %c0_34 = arith.constant 0 : index
    %65 = vector.load %arg5[%c7, %c0_33, %c0_34] : memref<9x128x128xbf16, #tpu.memory_space<vmem>>, vector<1x128x128xbf16>
    %66 = vector.shape_cast %65 : vector<1x128x128xbf16> to vector<128x128xbf16>
    %cst_35 = arith.constant dense<0.000000e+00> : vector<288x128xf32>
    %67 = tpu.matmul %64, %66, %cst_35 {dimension_numbers = #tpu.dot_dimension_numbers<[1], [0], [0], [1], [0, 0, 1, 1], [], []>} : vector<288x128xbf16>, vector<128x128xbf16>, vector<288x128xf32> -> vector<288x128xf32>
    %68 = arith.addf %62, %67 : vector<288x128xf32>
    %69 = vector.extract_strided_slice %19 {offsets = [38, 0], sizes = [288, 128], strides = [1, 1]} : vector<326x128xf32> to vector<288x128xf32>
    %70 = arith.truncf %69 : vector<288x128xf32> to vector<288x128xbf16>
    %c8 = arith.constant 8 : index
    %c0_36 = arith.constant 0 : index
    %c0_37 = arith.constant 0 : index
    %71 = vector.load %arg5[%c8, %c0_36, %c0_37] : memref<9x128x128xbf16, #tpu.memory_space<vmem>>, vector<1x128x128xbf16>
    %72 = vector.shape_cast %71 : vector<1x128x128xbf16> to vector<128x128xbf16>
    %cst_38 = arith.constant dense<0.000000e+00> : vector<288x128xf32>
    %73 = tpu.matmul %70, %72, %cst_38 {dimension_numbers = #tpu.dot_dimension_numbers<[1], [0], [0], [1], [0, 0, 1, 1], [], []>} : vector<288x128xbf16>, vector<128x128xbf16>, vector<288x128xf32> -> vector<288x128xf32>
    %74 = arith.addf %68, %73 : vector<288x128xf32>
    %c0_39 = arith.constant 0 : index
    %c0_40 = arith.constant 0 : index
    %c0_41 = arith.constant 0 : index
    %75 = vector.load %arg6[%c0_39, %c0_40, %c0_41] : memref<1x288x128xf32, #tpu.memory_space<vmem>>, vector<1x288x128xf32>
    %76 = vector.shape_cast %75 : vector<1x288x128xf32> to vector<288x128xf32>
    %77 = vector.shape_cast %74 : vector<288x128xf32> to vector<1x288x128xf32>
    tpu.vector_store %arg6[%c0_39, %c0_40, %c0_41], %77 {strides = array<i32>} : memref<1x288x128xf32, #tpu.memory_space<vmem>>, vector<1x288x128xf32>,
    return
  }
  func.func @transform_0(%arg0: i32) -> (i32, i32, i32) {
    %c0_i32 = arith.constant 0 : i32
    %c0_i32_0 = arith.constant 0 : i32
    %c0_i32_1 = arith.constant 0 : i32
    return %arg0, %c0_i32, %c0_i32_0 : i32, i32, i32
  }
  func.func @transform_1(%arg0: i32) -> (i32, i32) {
    %c0_i32 = arith.constant 0 : i32
    %c0_i32_0 = arith.constant 0 : i32
    %c0_i32_1 = arith.constant 0 : i32
    return %c0_i32, %c0_i32_0 : i32, i32
  }
  func.func @transform_2(%arg0: i32) -> (i32, i32) {
    %c0_i32 = arith.constant 0 : i32
    %c0_i32_0 = arith.constant 0 : i32
    %c0_i32_1 = arith.constant 0 : i32
    return %c0_i32, %c0_i32_0 : i32, i32
  }
  func.func @transform_3(%arg0: i32) -> (i32, i32) {
    %c0_i32 = arith.constant 0 : i32
    %c0_i32_0 = arith.constant 0 : i32
    %c0_i32_1 = arith.constant 0 : i32
    return %c0_i32, %c0_i32_0 : i32, i32
  }
  func.func @transform_4(%arg0: i32) -> (i32, i32, i32) {
    %c0_i32 = arith.constant 0 : i32
    %c0_i32_0 = arith.constant 0 : i32
    %c0_i32_1 = arith.constant 0 : i32
    %c0_i32_2 = arith.constant 0 : i32
    return %c0_i32, %c0_i32_0, %c0_i32_1 : i32, i32, i32
  }
  func.func @transform_5(%arg0: i32) -> (i32, i32, i32) {
    %c0_i32 = arith.constant 0 : i32
    %c0_i32_0 = arith.constant 0 : i32
    %c0_i32_1 = arith.constant 0 : i32
    return %arg0, %c0_i32, %c0_i32_0 : i32, i32, i32
  }
}

</mosaic_0001>

<llo_original>
// kernel: bottleneck_block.3
$region0: #{bottleneck_block.3}
  #allocation0 [shape = 'u32[]', space=smem, size = 0x4, offset = 0x4, fixed_abs, tag = 'smem constant byte address 0x4 - core index']
  #allocation1 [shape = 'u32[144,128]{1,0:T(1,128)}', space=vmem, size = 0x12000, scoped, tag = 'internal scratch']
  %s0 = inlined_call_operand.vmem [shape: f32[512,128], index: 0, kind: input, shape index: {}]
  %s1 = inlined_call_operand.vmem [shape: f32[2,128], index: 1, kind: output, shape index: {}]
  %s2 = sld [smem:[#allocation0]]
  $region18: #{bottleneck_block.3} parent=0
    _
  %s4 = ssub.s32 1, %s2
  %s5 = scalar_select 0, %s4, %s2
  // Predicated region
  $region2: #{bottleneck_block.3} parent=0 // pred_check
    _
  $region3: #{bottleneck_block.3} parent=0 // pred_check_branch
    %7 = sbr.rel (0) target = $region5
  $region4: #{bottleneck_block.3} parent=0 // pred_region
    _
  $region5: #{bottleneck_block.3} parent=0 // pred_fallthru
    _
  %p8 = scmp.eq.s32.totalorder 0, 0
  // Predicated region
  $region6: #{bottleneck_block.3} parent=0 // pred_check
    %p9 = pneg %p8
  $region7: #{bottleneck_block.3} parent=0 // pred_check_branch
    %11 = sbr.rel (%p9) target = $region9
  $region8: #{bottleneck_block.3} parent=0 // pred_region
    %12 = vst [vmem:[%s1] sm:$0x3] 0.0
  $region9: #{bottleneck_block.3} parent=0 // pred_fallthru
    _
  %v13 = vld [vmem:[%s0] sm:$0xff]
  %v14 = vld [vmem:[%s0 + $0x8] sm:$0xff]
  %v15 = vld [vmem:[%s0 + $0x10] sm:$0xff]
  %v16 = vld [vmem:[%s0 + $0x18] sm:$0xff]
  %v17 = vld [vmem:[%s0 + $0x20] sm:$0xff]
  %v18 = vld [vmem:[%s0 + $0x28] sm:$0xff]
  %v19 = vld [vmem:[%s0 + $0x30] sm:$0xff]
  %v20 = vld [vmem:[%s0 + $0x38] sm:$0xff]
  %v21 = vld [vmem:[%s0 + $0x40] sm:$0xff]
  %v22 = vld [vmem:[%s0 + $0x48] sm:$0xff]
  %v23 = vld [vmem:[%s0 + $0x50] sm:$0xff]
  %v24 = vld [vmem:[%s0 + $0x58] sm:$0xff]
  %v25 = vld [vmem:[%s0 + $0x60] sm:$0xff]
  %v26 = vld [vmem:[%s0 + $0x68] sm:$0xff]
  %v27 = vld [vmem:[%s0 + $0x70] sm:$0xff]
  %v28 = vld [vmem:[%s0 + $0x78] sm:$0xff]
  %v29 = vld [vmem:[%s0 + $0x80] sm:$0xff]
  %v30 = vld [vmem:[%s0 + $0x88] sm:$0xff]
  %v31 = vld [vmem:[%s0 + $0x90] sm:$0xff]
  %v32 = vld [vmem:[%s0 + $0x98] sm:$0xff]
  %v33 = vld [vmem:[%s0 + $0xa0] sm:$0xff]
  %v34 = vld [vmem:[%s0 + $0xa8] sm:$0xff]
  %v35 = vld [vmem:[%s0 + $0xb0] sm:$0xff]
  %v36 = vld [vmem:[%s0 + $0xb8] sm:$0xff]
  %v37 = vld [vmem:[%s0 + $0xc0] sm:$0xff]
  %v38 = vld [vmem:[%s0 + $0xc8] sm:$0xff]
  %v39 = vld [vmem:[%s0 + $0xd0] sm:$0xff]
  %v40 = vld [vmem:[%s0 + $0xd8] sm:$0xff]
  %v41 = vld [vmem:[%s0 + $0xe0] sm:$0xff]
  %v42 = vld [vmem:[%s0 + $0xe8] sm:$0xff]
  %v43 = vld [vmem:[%s0 + $0xf0] sm:$0xff]
  %v44 = vld [vmem:[%s0 + $0xf8] sm:$0xff]
  %v45 = vld [vmem:[%s0 + $0x100] sm:$0xff]
  %v46 = vld [vmem:[%s0 + $0x108] sm:$0xff]
  %v47 = vld [vmem:[%s0 + $0x110] sm:$0xff]
  %v48 = vld [vmem:[%s0 + $0x118] sm:$0xff]
  %v49 = vld [vmem:[%s0 + $0x120] sm:$0xff]
  %v50 = vld [vmem:[%s0 + $0x128] sm:$0xff]
  %v51 = vld [vmem:[%s0 + $0x130] sm:$0xff]
  %v52 = vld [vmem:[%s0 + $0x138] sm:$0xff]
  %v53 = vld [vmem:[%s0 + $0x140] sm:$0xff]
  %v54 = vld [vmem:[%s0 + $0x148] sm:$0xff]
  %v55 = vld [vmem:[%s0 + $0x150] sm:$0xff]
  %v56 = vld [vmem:[%s0 + $0x158] sm:$0xff]
  %v57 = vld [vmem:[%s0 + $0x160] sm:$0xff]
  %v58 = vld [vmem:[%s0 + $0x168] sm:$0xff]
  %v59 = vld [vmem:[%s0 + $0x170] sm:$0xff]
  %v60 = vld [vmem:[%s0 + $0x178] sm:$0xff]
  %v61 = vld [vmem:[%s0 + $0x180] sm:$0xff]
  %v62 = vld [vmem:[%s0 + $0x188] sm:$0xff]
  %v63 = vld [vmem:[%s0 + $0x190] sm:$0xff]
  %v64 = vld [vmem:[%s0 + $0x198] sm:$0xff]
  %v65 = vld [vmem:[%s0 + $0x1a0] sm:$0xff]
  %v66 = vld [vmem:[%s0 + $0x1a8] sm:$0xff]
  %v67 = vld [vmem:[%s0 + $0x1b0] sm:$0xff]
  %v68 = vld [vmem:[%s0 + $0x1b8] sm:$0xff]
  %v69 = vld [vmem:[%s0 + $0x1c0] sm:$0xff]
  %v70 = vld [vmem:[%s0 + $0x1c8] sm:$0xff]
  %v71 = vld [vmem:[%s0 + $0x1d0] sm:$0xff]
  %v72 = vld [vmem:[%s0 + $0x1d8] sm:$0xff]
  %v73 = vld [vmem:[%s0 + $0x1e0] sm:$0xff]
  %v74 = vld [vmem:[%s0 + $0x1e8] sm:$0xff]
  %v75 = vld [vmem:[%s0 + $0x1f0] sm:$0xff]
  %v76 = vld [vmem:[%s0 + $0x1f8] sm:$0xff]
  %v77 = vld [vmem:[%s1] sm:$0x1]
  %v78 = vadd.f32 %v13, %v14
  %v79 = vadd.f32 %v78, %v15
  %v80 = vadd.f32 %v79, %v16
  %v81 = vadd.f32 %v80, %v17
  %v82 = vadd.f32 %v81, %v18
  %v83 = vadd.f32 %v82, %v19
  %v84 = vadd.f32 %v83, %v20
  %v85 = vadd.f32 %v84, %v21
  %v86 = vadd.f32 %v85, %v22
  %v87 = vadd.f32 %v86, %v23
  %v88 = vadd.f32 %v87, %v24
  %v89 = vadd.f32 %v88, %v25
  %v90 = vadd.f32 %v89, %v26
  %v91 = vadd.f32 %v90, %v27
  %v92 = vadd.f32 %v91, %v28
  %v93 = vadd.f32 %v92, %v29
  %v94 = vadd.f32 %v93, %v30
  %v95 = vadd.f32 %v94, %v31
  %v96 = vadd.f32 %v95, %v32
  %v97 = vadd.f32 %v96, %v33
  %v98 = vadd.f32 %v97, %v34
  %v99 = vadd.f32 %v98, %v35
  %v100 = vadd.f32 %v99, %v36
  %v101 = vadd.f32 %v100, %v37
  %v102 = vadd.f32 %v101, %v38
  %v103 = vadd.f32 %v102, %v39
  %v104 = vadd.f32 %v103, %v40
  %v105 = vadd.f32 %v104, %v41
  %v106 = vadd.f32 %v105, %v42
  %v107 = vadd.f32 %v106, %v43
  %v108 = vadd.f32 %v107, %v44
  %v109 = vadd.f32 %v108, %v45
  %v110 = vadd.f32 %v109, %v46
  %v111 = vadd.f32 %v110, %v47
  %v112 = vadd.f32 %v111, %v48
  %v113 = vadd.f32 %v112, %v49
  %v114 = vadd.f32 %v113, %v50
  %v115 = vadd.f32 %v114, %v51
  %v116 = vadd.f32 %v115, %v52
  %v117 = vadd.f32 %v116, %v53
  %v118 = vadd.f32 %v117, %v54
  %v119 = vadd.f32 %v118, %v55
  %v120 = vadd.f32 %v119, %v56
  %v121 = vadd.f32 %v120, %v57
  %v122 = vadd.f32 %v121, %v58
  %v123 = vadd.f32 %v122, %v59
  %v124 = vadd.f32 %v123, %v60
  %v125 = vadd.f32 %v124, %v61
  %v126 = vadd.f32 %v125, %v62
  %v127 = vadd.f32 %v126, %v63
  %v128 = vadd.f32 %v127, %v64
  %v129 = vadd.f32 %v128, %v65
  %v130 = vadd.f32 %v129, %v66
  %v131 = vadd.f32 %v130, %v67
  %v132 = vadd.f32 %v131, %v68
  %v133 = vadd.f32 %v132, %v69
  %v134 = vadd.f32 %v133, %v70
  %v135 = vadd.f32 %v134, %v71
  %v136 = vadd.f32 %v135, %v72
  %v137 = vadd.f32 %v136, %v73
  %v138 = vadd.f32 %v137, %v74
  %v139 = vadd.f32 %v138, %v75
  %v140 = vadd.f32 %v139, %v76
  %v141 = vrot.slane %v140, 4
  %v142 = vadd.f32 %v140, %v141
  %v143 = vrot.slane %v142, 2
  %v144 = vadd.f32 %v142, %v143
  %v145 = vrot.slane %v144, 1
  %v146 = vadd.f32 %v144, %v145
  %v147 = vadd.f32 %v77, %v146
  %148 = vst [vmem:[%s1] sm:$0x1] %v147
  %v149 = vld [vmem:[%s1 + $0x1] sm:$0x1]
  %v150 = vmul.f32 %v13, %v13
  %v151 = vmul.f32 %v14, %v14
  %v152 = vmul.f32 %v15, %v15
  %v153 = vmul.f32 %v16, %v16
  %v154 = vmul.f32 %v17, %v17
  %v155 = vmul.f32 %v18, %v18
  %v156 = vmul.f32 %v19, %v19
  %v157 = vmul.f32 %v20, %v20
  %v158 = vmul.f32 %v21, %v21
  %v159 = vmul.f32 %v22, %v22
  %v160 = vmul.f32 %v23, %v23
  %v161 = vmul.f32 %v24, %v24
  %v162 = vmul.f32 %v25, %v25
  %v163 = vmul.f32 %v26, %v26
  %v164 = vmul.f32 %v27, %v27
  %v165 = vmul.f32 %v28, %v28
  %v166 = vmul.f32 %v29, %v29
  %v167 = vmul.f32 %v30, %v30
  %v168 = vmul.f32 %v31, %v31
  %v169 = vmul.f32 %v32, %v32
  %v170 = vmul.f32 %v33, %v33
  %v171 = vmul.f32 %v34, %v34
  %v172 = vmul.f32 %v35, %v35
  %v173 = vmul.f32 %v36, %v36
  %v174 = vmul.f32 %v37, %v37
  %v175 = vmul.f32 %v38, %v38
  %v176 = vmul.f32 %v39, %v39
  %v177 = vmul.f32 %v40, %v40
  %v178 = vmul.f32 %v41, %v41
  %v179 = vmul.f32 %v42, %v42
  %v180 = vmul.f32 %v43, %v43
  %v181 = vmul.f32 %v44, %v44
  %v182 = vmul.f32 %v45, %v45
  %v183 = vmul.f32 %v46, %v46
  %v184 = vmul.f32 %v47, %v47
  %v185 = vmul.f32 %v48, %v48
  %v186 = vmul.f32 %v49, %v49
  %v187 = vmul.f32 %v50, %v50
  %v188 = vmul.f32 %v51, %v51
  %v189 = vmul.f32 %v52, %v52
  %v190 = vmul.f32 %v53, %v53
  %v191 = vmul.f32 %v54, %v54
  %v192 = vmul.f32 %v55, %v55
  %v193 = vmul.f32 %v56, %v56
  %v194 = vmul.f32 %v57, %v57
  %v195 = vmul.f32 %v58, %v58
  %v196 = vmul.f32 %v59, %v59
  %v197 = vmul.f32 %v60, %v60
  %v198 = vmul.f32 %v61, %v61
  %v199 = vmul.f32 %v62, %v62
  %v200 = vmul.f32 %v63, %v63
  %v201 = vmul.f32 %v64, %v64
  %v202 = vmul.f32 %v65, %v65
  %v203 = vmul.f32 %v66, %v66
  %v204 = vmul.f32 %v67, %v67
  %v205 = vmul.f32 %v68, %v68
  %v206 = vmul.f32 %v69, %v69
  %v207 = vmul.f32 %v70, %v70
  %v208 = vmul.f32 %v71, %v71
  %v209 = vmul.f32 %v72, %v72
  %v210 = vmul.f32 %v73, %v73
  %v211 = vmul.f32 %v74, %v74
  %v212 = vmul.f32 %v75, %v75
  %v213 = vmul.f32 %v76, %v76
  %v214 = vadd.f32 %v150, %v151
  %v215 = vadd.f32 %v214, %v152
  %v216 = vadd.f32 %v215, %v153
  %v217 = vadd.f32 %v216, %v154
  %v218 = vadd.f32 %v217, %v155
  %v219 = vadd.f32 %v218, %v156
  %v220 = vadd.f32 %v219, %v157
  %v221 = vadd.f32 %v220, %v158
  %v222 = vadd.f32 %v221, %v159
  %v223 = vadd.f32 %v222, %v160
  %v224 = vadd.f32 %v223, %v161
  %v225 = vadd.f32 %v224, %v162
  %v226 = vadd.f32 %v225, %v163
  %v227 = vadd.f32 %v226, %v164
  %v228 = vadd.f32 %v227, %v165
  %v229 = vadd.f32 %v228, %v166
  %v230 = vadd.f32 %v229, %v167
  %v231 = vadd.f32 %v230, %v168
  %v232 = vadd.f32 %v231, %v169
  %v233 = vadd.f32 %v232, %v170
  %v234 = vadd.f32 %v233, %v171
  %v235 = vadd.f32 %v234, %v172
  %v236 = vadd.f32 %v235, %v173
  %v237 = vadd.f32 %v236, %v174
  %v238 = vadd.f32 %v237, %v175
  %v239 = vadd.f32 %v238, %v176
  %v240 = vadd.f32 %v239, %v177
  %v241 = vadd.f32 %v240, %v178
  %v242 = vadd.f32 %v241, %v179
  %v243 = vadd.f32 %v242, %v180
  %v244 = vadd.f32 %v243, %v181
  %v245 = vadd.f32 %v244, %v182
  %v246 = vadd.f32 %v245, %v183
  %v247 = vadd.f32 %v246, %v184
  %v248 = vadd.f32 %v247, %v185
  %v249 = vadd.f32 %v248, %v186
  %v250 = vadd.f32 %v249, %v187
  %v251 = vadd.f32 %v250, %v188
  %v252 = vadd.f32 %v251, %v189
  %v253 = vadd.f32 %v252, %v190
  %v254 = vadd.f32 %v253, %v191
  %v255 = vadd.f32 %v254, %v192
  %v256 = vadd.f32 %v255, %v193
  %v257 = vadd.f32 %v256, %v194
  %v258 = vadd.f32 %v257, %v195
  %v259 = vadd.f32 %v258, %v196
  %v260 = vadd.f32 %v259, %v197
  %v261 = vadd.f32 %v260, %v198
  %v262 = vadd.f32 %v261, %v199
  %v263 = vadd.f32 %v262, %v200
  %v264 = vadd.f32 %v263, %v201
  %v265 = vadd.f32 %v264, %v202
  %v266 = vadd.f32 %v265, %v203
  %v267 = vadd.f32 %v266, %v204
  %v268 = vadd.f32 %v267, %v205
  %v269 = vadd.f32 %v268, %v206
  %v270 = vadd.f32 %v269, %v207
  %v271 = vadd.f32 %v270, %v208
  %v272 = vadd.f32 %v271, %v209
  %v273 = vadd.f32 %v272, %v210
  %v274 = vadd.f32 %v273, %v211
  %v275 = vadd.f32 %v274, %v212
  %v276 = vadd.f32 %v275, %v213
  %v277 = vrot.slane %v276, 4
  %v278 = vadd.f32 %v276, %v277
  %v279 = vrot.slane %v278, 2
  %v280 = vadd.f32 %v278, %v279
  %v281 = vrot.slane %v280, 1
  %v282 = vadd.f32 %v280, %v281
  %v283 = vadd.f32 %v149, %v282
  %284 = vst [vmem:[%s1 + $0x1] sm:$0x1] %v283
  // Predicated region
  $region10: #{bottleneck_block.3} parent=0 // pred_check
    _
  $region11: #{bottleneck_block.3} parent=0 // pred_check_branch
    %286 = sbr.rel (0) target = $region13
  $region12: #{bottleneck_block.3} parent=0 // pred_region
    _
  $region13: #{bottleneck_block.3} parent=0 // pred_fallthru
    _
  // Predicated region
  $region14: #{bottleneck_block.3} parent=0 // pred_check
    _
  $region15: #{bottleneck_block.3} parent=0 // pred_check_branch
    %288 = sbr.rel (0) target = $region17
  $region16: #{bottleneck_block.3} parent=0 // pred_region
    _
  $region17: #{bottleneck_block.3} parent=0 // pred_fallthru
    _

// kernel: bottleneck_block.4
$region0: #{bottleneck_block.4}
  #allocation0 [shape = 'u32[]', space=smem, size = 0x4, offset = 0x4, fixed_abs, tag = 'smem constant byte address 0x4 - core index']
  #allocation1 [shape = 'u32[144,128]{1,0:T(1,128)}', space=vmem, size = 0x12000, scoped, tag = 'internal scratch']
  %s0 = inlined_call_operand.vmem [shape: f32[512,128], index: 0, kind: input, shape index: {}]
  %s1 = inlined_call_operand.vmem [shape: f32[1,128], index: 1, kind: input, shape index: {}]
  %s2 = inlined_call_operand.vmem [shape: f32[1,128], index: 2, kind: input, shape index: {}]
  %s3 = inlined_call_operand.vmem [shape: bf16[128,128], index: 3, kind: input, shape index: {}]
  %s4 = inlined_call_operand.vmem [shape: bf16[512,128], index: 4, kind: output, shape index: {0}]
  %s5 = inlined_call_operand.vmem [shape: f32[1,1,128], index: 5, kind: output, shape index: {1}]
  %s6 = inlined_call_operand.vmem [shape: f32[1,1,128], index: 6, kind: output, shape index: {2}]
  %7 = xla_tuple %s4, %s5, %s6
  %s8 = sld [smem:[#allocation0]]
  $region42: #{bottleneck_block.4} parent=0
    _
  %s10 = ssub.s32 1, %s8
  %s11 = scalar_select 0, %s10, %s8
  // Predicated region
  $region2: #{bottleneck_block.4} parent=0 // pred_check
    _
  $region3: #{bottleneck_block.4} parent=0 // pred_check_branch
    %13 = sbr.rel (0) target = $region5
  $region4: #{bottleneck_block.4} parent=0 // pred_region
    _
  $region5: #{bottleneck_block.4} parent=0 // pred_fallthru
    _
  // Predicated region
  $region6: #{bottleneck_block.4} parent=0 // pred_check
    _
  $region7: #{bottleneck_block.4} parent=0 // pred_check_branch
    %15 = sbr.rel (0) target = $region9
  $region8: #{bottleneck_block.4} parent=0 // pred_region
    _
  $region9: #{bottleneck_block.4} parent=0 // pred_fallthru
    _
  // Predicated region
  $region10: #{bottleneck_block.4} parent=0 // pred_check
    _
  $region11: #{bottleneck_block.4} parent=0 // pred_check_branch
    %17 = sbr.rel (0) target = $region13
  $region12: #{bottleneck_block.4} parent=0 // pred_region
    _
  $region13: #{bottleneck_block.4} parent=0 // pred_fallthru
    _
  // Predicated region
  $region14: #{bottleneck_block.4} parent=0 // pred_check
    _
  $region15: #{bottleneck_block.4} parent=0 // pred_check_branch
    %19 = sbr.rel (0) target = $region17
  $region16: #{bottleneck_block.4} parent=0 // pred_region
    _
  $region17: #{bottleneck_block.4} parent=0 // pred_fallthru
    _
  %v21 = vld [vmem:[%s0] sm:$0xff]
  %v22 = vld [vmem:[%s0 + $0x8] sm:$0xff]
  %v23 = vld [vmem:[%s0 + $0x10] sm:$0xff]
  %v24 = vld [vmem:[%s0 + $0x18] sm:$0xff]
  %v25 = vld [vmem:[%s0 + $0x20] sm:$0xff]
  %v26 = vld [vmem:[%s0 + $0x28] sm:$0xff]
  %v27 = vld [vmem:[%s0 + $0x30] sm:$0xff]
  %v28 = vld [vmem:[%s0 + $0x38] sm:$0xff]
  %v29 = vld [vmem:[%s0 + $0x40] sm:$0xff]
  %v30 = vld [vmem:[%s0 + $0x48] sm:$0xff]
  %v31 = vld [vmem:[%s0 + $0x50] sm:$0xff]
  %v32 = vld [vmem:[%s0 + $0x58] sm:$0xff]
  %v33 = vld [vmem:[%s0 + $0x60] sm:$0xff]
  %v34 = vld [vmem:[%s0 + $0x68] sm:$0xff]
  %v35 = vld [vmem:[%s0 + $0x70] sm:$0xff]
  %v36 = vld [vmem:[%s0 + $0x78] sm:$0xff]
  %v37 = vld [vmem:[%s0 + $0x80] sm:$0xff]
  %v38 = vld [vmem:[%s0 + $0x88] sm:$0xff]
  %v39 = vld [vmem:[%s0 + $0x90] sm:$0xff]
  %v40 = vld [vmem:[%s0 + $0x98] sm:$0xff]
  %v41 = vld [vmem:[%s0 + $0xa0] sm:$0xff]
  %v42 = vld [vmem:[%s0 + $0xa8] sm:$0xff]
  %v43 = vld [vmem:[%s0 + $0xb0] sm:$0xff]
  %v44 = vld [vmem:[%s0 + $0xb8] sm:$0xff]
  %v45 = vld [vmem:[%s0 + $0xc0] sm:$0xff]
  %v46 = vld [vmem:[%s0 + $0xc8] sm:$0xff]
  %v47 = vld [vmem:[%s0 + $0xd0] sm:$0xff]
  %v48 = vld [vmem:[%s0 + $0xd8] sm:$0xff]
  %v49 = vld [vmem:[%s0 + $0xe0] sm:$0xff]
  %v50 = vld [vmem:[%s0 + $0xe8] sm:$0xff]
  %v51 = vld [vmem:[%s0 + $0xf0] sm:$0xff]
  %v52 = vld [vmem:[%s0 + $0xf8] sm:$0xff]
  %v53 = vld [vmem:[%s0 + $0x100] sm:$0xff]
  %v54 = vld [vmem:[%s0 + $0x108] sm:$0xff]
  %v55 = vld [vmem:[%s0 + $0x110] sm:$0xff]
  %v56 = vld [vmem:[%s0 + $0x118] sm:$0xff]
  %v57 = vld [vmem:[%s0 + $0x120] sm:$0xff]
  %v58 = vld [vmem:[%s0 + $0x128] sm:$0xff]
  %v59 = vld [vmem:[%s0 + $0x130] sm:$0xff]
  %v60 = vld [vmem:[%s0 + $0x138] sm:$0xff]
  %v61 = vld [vmem:[%s0 + $0x140] sm:$0xff]
  %v62 = vld [vmem:[%s0 + $0x148] sm:$0xff]
  %v63 = vld [vmem:[%s0 + $0x150] sm:$0xff]
  %v64 = vld [vmem:[%s0 + $0x158] sm:$0xff]
  %v65 = vld [vmem:[%s0 + $0x160] sm:$0xff]
  %v66 = vld [vmem:[%s0 + $0x168] sm:$0xff]
  %v67 = vld [vmem:[%s0 + $0x170] sm:$0xff]
  %v68 = vld [vmem:[%s0 + $0x178] sm:$0xff]
  %v69 = vld [vmem:[%s0 + $0x180] sm:$0xff]
  %v70 = vld [vmem:[%s0 + $0x188] sm:$0xff]
  %v71 = vld [vmem:[%s0 + $0x190] sm:$0xff]
  %v72 = vld [vmem:[%s0 + $0x198] sm:$0xff]
  %v73 = vld [vmem:[%s0 + $0x1a0] sm:$0xff]
  %v74 = vld [vmem:[%s0 + $0x1a8] sm:$0xff]
  %v75 = vld [vmem:[%s0 + $0x1b0] sm:$0xff]
  %v76 = vld [vmem:[%s0 + $0x1b8] sm:$0xff]
  %v77 = vld [vmem:[%s0 + $0x1c0] sm:$0xff]
  %v78 = vld [vmem:[%s0 + $0x1c8] sm:$0xff]
  %v79 = vld [vmem:[%s0 + $0x1d0] sm:$0xff]
  %v80 = vld [vmem:[%s0 + $0x1d8] sm:$0xff]
  %v81 = vld [vmem:[%s0 + $0x1e0] sm:$0xff]
  %v82 = vld [vmem:[%s0 + $0x1e8] sm:$0xff]
  %v83 = vld [vmem:[%s0 + $0x1f0] sm:$0xff]
  %v84 = vld [vmem:[%s0 + $0x1f8] sm:$0xff]
  %v85 = vld [vmem:[%s1] sm:$0x1]
  %v87 = vlaneseq
  %v88 = vshrl.u32 %v87, 7
  %v89 = vsub.s32 0, %v88
  %v90 = vrot.slane %v85, %v89
  %v92 = vmul.f32 %v21, %v90
  %v93 = vmul.f32 %v22, %v90
  %v94 = vmul.f32 %v23, %v90
  %v95 = vmul.f32 %v24, %v90
  %v96 = vmul.f32 %v25, %v90
  %v97 = vmul.f32 %v26, %v90
  %v98 = vmul.f32 %v27, %v90
  %v99 = vmul.f32 %v28, %v90
  %v100 = vmul.f32 %v29, %v90
  %v101 = vmul.f32 %v30, %v90
  %v102 = vmul.f32 %v31, %v90
  %v103 = vmul.f32 %v32, %v90
  %v104 = vmul.f32 %v33, %v90
  %v105 = vmul.f32 %v34, %v90
  %v106 = vmul.f32 %v35, %v90
  %v107 = vmul.f32 %v36, %v90
  %v108 = vmul.f32 %v37, %v90
  %v109 = vmul.f32 %v38, %v90
  %v110 = vmul.f32 %v39, %v90
  %v111 = vmul.f32 %v40, %v90
  %v112 = vmul.f32 %v41, %v90
  %v113 = vmul.f32 %v42, %v90
  %v114 = vmul.f32 %v43, %v90
  %v115 = vmul.f32 %v44, %v90
  %v116 = vmul.f32 %v45, %v90
  %v117 = vmul.f32 %v46, %v90
  %v118 = vmul.f32 %v47, %v90
  %v119 = vmul.f32 %v48, %v90
  %v120 = vmul.f32 %v49, %v90
  %v121 = vmul.f32 %v50, %v90
  %v122 = vmul.f32 %v51, %v90
  %v123 = vmul.f32 %v52, %v90
  %v124 = vmul.f32 %v53, %v90
  %v125 = vmul.f32 %v54, %v90
  %v126 = vmul.f32 %v55, %v90
  %v127 = vmul.f32 %v56, %v90
  %v128 = vmul.f32 %v57, %v90
  %v129 = vmul.f32 %v58, %v90
  %v130 = vmul.f32 %v59, %v90
  %v131 = vmul.f32 %v60, %v90
  %v132 = vmul.f32 %v61, %v90
  %v133 = vmul.f32 %v62, %v90
  %v134 = vmul.f32 %v63, %v90
  %v135 = vmul.f32 %v64, %v90
  %v136 = vmul.f32 %v65, %v90
  %v137 = vmul.f32 %v66, %v90
  %v138 = vmul.f32 %v67, %v90
  %v139 = vmul.f32 %v68, %v90
  %v140 = vmul.f32 %v69, %v90
  %v141 = vmul.f32 %v70, %v90
  %v142 = vmul.f32 %v71, %v90
  %v143 = vmul.f32 %v72, %v90
  %v144 = vmul.f32 %v73, %v90
  %v145 = vmul.f32 %v74, %v90
  %v146 = vmul.f32 %v75, %v90
  %v147 = vmul.f32 %v76, %v90
  %v148 = vmul.f32 %v77, %v90
  %v149 = vmul.f32 %v78, %v90
  %v150 = vmul.f32 %v79, %v90
  %v151 = vmul.f32 %v80, %v90
  %v152 = vmul.f32 %v81, %v90
  %v153 = vmul.f32 %v82, %v90
  %v154 = vmul.f32 %v83, %v90
  %v155 = vmul.f32 %v84, %v90
  %v156 = vld [vmem:[%s2] sm:$0x1]
  %v158 = vlaneseq
  %v159 = vshrl.u32 %v158, 7
  %v160 = vsub.s32 0, %v159
  %v161 = vrot.slane %v156, %v160
  %v163 = vadd.f32 %v92, %v161
  %v164 = vadd.f32 %v93, %v161
  %v165 = vadd.f32 %v94, %v161
  %v166 = vadd.f32 %v95, %v161
  %v167 = vadd.f32 %v96, %v161
  %v168 = vadd.f32 %v97, %v161
  %v169 = vadd.f32 %v98, %v161
  %v170 = vadd.f32 %v99, %v161
  %v171 = vadd.f32 %v100, %v161
  %v172 = vadd.f32 %v101, %v161
  %v173 = vadd.f32 %v102, %v161
  %v174 = vadd.f32 %v103, %v161
  %v175 = vadd.f32 %v104, %v161
  %v176 = vadd.f32 %v105, %v161
  %v177 = vadd.f32 %v106, %v161
  %v178 = vadd.f32 %v107, %v161
  %v179 = vadd.f32 %v108, %v161
  %v180 = vadd.f32 %v109, %v161
  %v181 = vadd.f32 %v110, %v161
  %v182 = vadd.f32 %v111, %v161
  %v183 = vadd.f32 %v112, %v161
  %v184 = vadd.f32 %v113, %v161
  %v185 = vadd.f32 %v114, %v161
  %v186 = vadd.f32 %v115, %v161
  %v187 = vadd.f32 %v116, %v161
  %v188 = vadd.f32 %v117, %v161
  %v189 = vadd.f32 %v118, %v161
  %v190 = vadd.f32 %v119, %v161
  %v191 = vadd.f32 %v120, %v161
  %v192 = vadd.f32 %v121, %v161
  %v193 = vadd.f32 %v122, %v161
  %v194 = vadd.f32 %v123, %v161
  %v195 = vadd.f32 %v124, %v161
  %v196 = vadd.f32 %v125, %v161
  %v197 = vadd.f32 %v126, %v161
  %v198 = vadd.f32 %v127, %v161
  %v199 = vadd.f32 %v128, %v161
  %v200 = vadd.f32 %v129, %v161
  %v201 = vadd.f32 %v130, %v161
  %v202 = vadd.f32 %v131, %v161
  %v203 = vadd.f32 %v132, %v161
  %v204 = vadd.f32 %v133, %v161
  %v205 = vadd.f32 %v134, %v161
  %v206 = vadd.f32 %v135, %v161
  %v207 = vadd.f32 %v136, %v161
  %v208 = vadd.f32 %v137, %v161
  %v209 = vadd.f32 %v138, %v161
  %v210 = vadd.f32 %v139, %v161
  %v211 = vadd.f32 %v140, %v161
  %v212 = vadd.f32 %v141, %v161
  %v213 = vadd.f32 %v142, %v161
  %v214 = vadd.f32 %v143, %v161
  %v215 = vadd.f32 %v144, %v161
  %v216 = vadd.f32 %v145, %v161
  %v217 = vadd.f32 %v146, %v161
  %v218 = vadd.f32 %v147, %v161
  %v219 = vadd.f32 %v148, %v161
  %v220 = vadd.f32 %v149, %v161
  %v221 = vadd.f32 %v150, %v161
  %v222 = vadd.f32 %v151, %v161
  %v223 = vadd.f32 %v152, %v161
  %v224 = vadd.f32 %v153, %v161
  %v225 = vadd.f32 %v154, %v161
  %v226 = vadd.f32 %v155, %v161
  %vm227 = vcmp.gt.f32.partialorder %v163, 0.0
  %vm228 = vcmp.gt.f32.partialorder %v164, 0.0
  %vm229 = vcmp.gt.f32.partialorder %v165, 0.0
  %vm230 = vcmp.gt.f32.partialorder %v166, 0.0
  %vm231 = vcmp.gt.f32.partialorder %v167, 0.0
  %vm232 = vcmp.gt.f32.partialorder %v168, 0.0
  %vm233 = vcmp.gt.f32.partialorder %v169, 0.0
  %vm234 = vcmp.gt.f32.partialorder %v170, 0.0
  %vm235 = vcmp.gt.f32.partialorder %v171, 0.0
  %vm236 = vcmp.gt.f32.partialorder %v172, 0.0
  %vm237 = vcmp.gt.f32.partialorder %v173, 0.0
  %vm238 = vcmp.gt.f32.partialorder %v174, 0.0
  %vm239 = vcmp.gt.f32.partialorder %v175, 0.0
  %vm240 = vcmp.gt.f32.partialorder %v176, 0.0
  %vm241 = vcmp.gt.f32.partialorder %v177, 0.0
  %vm242 = vcmp.gt.f32.partialorder %v178, 0.0
  %vm243 = vcmp.gt.f32.partialorder %v179, 0.0
  %vm244 = vcmp.gt.f32.partialorder %v180, 0.0
  %vm245 = vcmp.gt.f32.partialorder %v181, 0.0
  %vm246 = vcmp.gt.f32.partialorder %v182, 0.0
  %vm247 = vcmp.gt.f32.partialorder %v183, 0.0
  %vm248 = vcmp.gt.f32.partialorder %v184, 0.0
  %vm249 = vcmp.gt.f32.partialorder %v185, 0.0
  %vm250 = vcmp.gt.f32.partialorder %v186, 0.0
  %vm251 = vcmp.gt.f32.partialorder %v187, 0.0
  %vm252 = vcmp.gt.f32.partialorder %v188, 0.0
  %vm253 = vcmp.gt.f32.partialorder %v189, 0.0
  %vm254 = vcmp.gt.f32.partialorder %v190, 0.0
  %vm255 = vcmp.gt.f32.partialorder %v191, 0.0
  %vm256 = vcmp.gt.f32.partialorder %v192, 0.0
  %vm257 = vcmp.gt.f32.partialorder %v193, 0.0
  %vm258 = vcmp.gt.f32.partialorder %v194, 0.0
  %vm259 = vcmp.gt.f32.partialorder %v195, 0.0
  %vm260 = vcmp.gt.f32.partialorder %v196, 0.0
  %vm261 = vcmp.gt.f32.partialorder %v197, 0.0
  %vm262 = vcmp.gt.f32.partialorder %v198, 0.0
  %vm263 = vcmp.gt.f32.partialorder %v199, 0.0
  %vm264 = vcmp.gt.f32.partialorder %v200, 0.0
  %vm265 = vcmp.gt.f32.partialorder %v201, 0.0
  %vm266 = vcmp.gt.f32.partialorder %v202, 0.0
  %vm267 = vcmp.gt.f32.partialorder %v203, 0.0
  %vm268 = vcmp.gt.f32.partialorder %v204, 0.0
  %vm269 = vcmp.gt.f32.partialorder %v205, 0.0
  %vm270 = vcmp.gt.f32.partialorder %v206, 0.0
  %vm271 = vcmp.gt.f32.partialorder %v207, 0.0
  %vm272 = vcmp.gt.f32.partialorder %v208, 0.0
  %vm273 = vcmp.gt.f32.partialorder %v209, 0.0
  %vm274 = vcmp.gt.f32.partialorder %v210, 0.0
  %vm275 = vcmp.gt.f32.partialorder %v211, 0.0
  %vm276 = vcmp.gt.f32.partialorder %v212, 0.0
  %vm277 = vcmp.gt.f32.partialorder %v213, 0.0
  %vm278 = vcmp.gt.f32.partialorder %v214, 0.0
  %vm279 = vcmp.gt.f32.partialorder %v215, 0.0
  %vm280 = vcmp.gt.f32.partialorder %v216, 0.0
  %vm281 = vcmp.gt.f32.partialorder %v217, 0.0
  %vm282 = vcmp.gt.f32.partialorder %v218, 0.0
  %vm283 = vcmp.gt.f32.partialorder %v219, 0.0
  %vm284 = vcmp.gt.f32.partialorder %v220, 0.0
  %vm285 = vcmp.gt.f32.partialorder %v221, 0.0
  %vm286 = vcmp.gt.f32.partialorder %v222, 0.0
  %vm287 = vcmp.gt.f32.partialorder %v223, 0.0
  %vm288 = vcmp.gt.f32.partialorder %v224, 0.0
  %vm289 = vcmp.gt.f32.partialorder %v225, 0.0
  %vm290 = vcmp.gt.f32.partialorder %v226, 0.0
  %v291 = vmin.f32 %v163, 0.0
  %v292 = vmin.f32 %v164, 0.0
  %v293 = vmin.f32 %v165, 0.0
  %v294 = vmin.f32 %v166, 0.0
  %v295 = vmin.f32 %v167, 0.0
  %v296 = vmin.f32 %v168, 0.0
  %v297 = vmin.f32 %v169, 0.0
  %v298 = vmin.f32 %v170, 0.0
  %v299 = vmin.f32 %v171, 0.0
  %v300 = vmin.f32 %v172, 0.0
  %v301 = vmin.f32 %v173, 0.0
  %v302 = vmin.f32 %v174, 0.0
  %v303 = vmin.f32 %v175, 0.0
  %v304 = vmin.f32 %v176, 0.0
  %v305 = vmin.f32 %v177, 0.0
  %v306 = vmin.f32 %v178, 0.0
  %v307 = vmin.f32 %v179, 0.0
  %v308 = vmin.f32 %v180, 0.0
  %v309 = vmin.f32 %v181, 0.0
  %v310 = vmin.f32 %v182, 0.0
  %v311 = vmin.f32 %v183, 0.0
  %v312 = vmin.f32 %v184, 0.0
  %v313 = vmin.f32 %v185, 0.0
  %v314 = vmin.f32 %v186, 0.0
  %v315 = vmin.f32 %v187, 0.0
  %v316 = vmin.f32 %v188, 0.0
  %v317 = vmin.f32 %v189, 0.0
  %v318 = vmin.f32 %v190, 0.0
  %v319 = vmin.f32 %v191, 0.0
  %v320 = vmin.f32 %v192, 0.0
  %v321 = vmin.f32 %v193, 0.0
  %v322 = vmin.f32 %v194, 0.0
  %v323 = vmin.f32 %v195, 0.0
  %v324 = vmin.f32 %v196, 0.0
  %v325 = vmin.f32 %v197, 0.0
  %v326 = vmin.f32 %v198, 0.0
  %v327 = vmin.f32 %v199, 0.0
  %v328 = vmin.f32 %v200, 0.0
  %v329 = vmin.f32 %v201, 0.0
  %v330 = vmin.f32 %v202, 0.0
  %v331 = vmin.f32 %v203, 0.0
  %v332 = vmin.f32 %v204, 0.0
  %v333 = vmin.f32 %v205, 0.0
  %v334 = vmin.f32 %v206, 0.0
  %v335 = vmin.f32 %v207, 0.0
  %v336 = vmin.f32 %v208, 0.0
  %v337 = vmin.f32 %v209, 0.0
  %v338 = vmin.f32 %v210, 0.0
  %v339 = vmin.f32 %v211, 0.0
  %v340 = vmin.f32 %v212, 0.0
  %v341 = vmin.f32 %v213, 0.0
  %v342 = vmin.f32 %v214, 0.0
  %v343 = vmin.f32 %v215, 0.0
  %v344 = vmin.f32 %v216, 0.0
  %v345 = vmin.f32 %v217, 0.0
  %v346 = vmin.f32 %v218, 0.0
  %v347 = vmin.f32 %v219, 0.0
  %v348 = vmin.f32 %v220, 0.0
  %v349 = vmin.f32 %v221, 0.0
  %v350 = vmin.f32 %v222, 0.0
  %v351 = vmin.f32 %v223, 0.0
  %v352 = vmin.f32 %v224, 0.0
  %v353 = vmin.f32 %v225, 0.0
  %v354 = vmin.f32 %v226, 0.0
  %v355 = vmul.f32 %v291, 1.442695
  %v356 = vpow.pop %v355
  %v357 = vmul.f32 %v292, 1.442695
  %v358 = vpow.pop %v357
  %v359 = vmul.f32 %v293, 1.442695
  %v360 = vpow.pop %v359
  %v361 = vmul.f32 %v294, 1.442695
  %v362 = vpow.pop %v361
  %v363 = vmul.f32 %v295, 1.442695
  %v364 = vpow.pop %v363
  %v365 = vmul.f32 %v296, 1.442695
  %v366 = vpow.pop %v365
  %v367 = vmul.f32 %v297, 1.442695
  %v368 = vpow.pop %v367
  %v369 = vmul.f32 %v298, 1.442695
  %v370 = vpow.pop %v369
  %v371 = vmul.f32 %v299, 1.442695
  %v372 = vpow.pop %v371
  %v373 = vmul.f32 %v300, 1.442695
  %v374 = vpow.pop %v373
  %v375 = vmul.f32 %v301, 1.442695
  %v376 = vpow.pop %v375
  %v377 = vmul.f32 %v302, 1.442695
  %v378 = vpow.pop %v377
  %v379 = vmul.f32 %v303, 1.442695
  %v380 = vpow.pop %v379
  %v381 = vmul.f32 %v304, 1.442695
  %v382 = vpow.pop %v381
  %v383 = vmul.f32 %v305, 1.442695
  %v384 = vpow.pop %v383
  %v385 = vmul.f32 %v306, 1.442695
  %v386 = vpow.pop %v385
  %v387 = vmul.f32 %v307, 1.442695
  %v388 = vpow.pop %v387
  %v389 = vmul.f32 %v308, 1.442695
  %v390 = vpow.pop %v389
  %v391 = vmul.f32 %v309, 1.442695
  %v392 = vpow.pop %v391
  %v393 = vmul.f32 %v310, 1.442695
  %v394 = vpow.pop %v393
  %v395 = vmul.f32 %v311, 1.442695
  %v396 = vpow.pop %v395
  %v397 = vmul.f32 %v312, 1.442695
  %v398 = vpow.pop %v397
  %v399 = vmul.f32 %v313, 1.442695
  %v400 = vpow.pop %v399
  %v401 = vmul.f32 %v314, 1.442695
  %v402 = vpow.pop %v401
  %v403 = vmul.f32 %v315, 1.442695
  %v404 = vpow.pop %v403
  %v405 = vmul.f32 %v316, 1.442695
  %v406 = vpow.pop %v405
  %v407 = vmul.f32 %v317, 1.442695
  %v408 = vpow.pop %v407
  %v409 = vmul.f32 %v318, 1.442695
  %v410 = vpow.pop %v409
  %v411 = vmul.f32 %v319, 1.442695
  %v412 = vpow.pop %v411
  %v413 = vmul.f32 %v320, 1.442695
  %v414 = vpow.pop %v413
  %v415 = vmul.f32 %v321, 1.442695
  %v416 = vpow.pop %v415
  %v417 = vmul.f32 %v322, 1.442695
  %v418 = vpow.pop %v417
  %v419 = vmul.f32 %v323, 1.442695
  %v420 = vpow.pop %v419
  %v421 = vmul.f32 %v324, 1.442695
  %v422 = vpow.pop %v421
  %v423 = vmul.f32 %v325, 1.442695
  %v424 = vpow.pop %v423
  %v425 = vmul.f32 %v326, 1.442695
  %v426 = vpow.pop %v425
  %v427 = vmul.f32 %v327, 1.442695
  %v428 = vpow.pop %v427
  %v429 = vmul.f32 %v328, 1.442695
  %v430 = vpow.pop %v429
  %v431 = vmul.f32 %v329, 1.442695
  %v432 = vpow.pop %v431
  %v433 = vmul.f32 %v330, 1.442695
  %v434 = vpow.pop %v433
  %v435 = vmul.f32 %v331, 1.442695
  %v436 = vpow.pop %v435
  %v437 = vmul.f32 %v332, 1.442695
  %v438 = vpow.pop %v437
  %v439 = vmul.f32 %v333, 1.442695
  %v440 = vpow.pop %v439
  %v441 = vmul.f32 %v334, 1.442695
  %v442 = vpow.pop %v441
  %v443 = vmul.f32 %v335, 1.442695
  %v444 = vpow.pop %v443
  %v445 = vmul.f32 %v336, 1.442695
  %v446 = vpow.pop %v445
  %v447 = vmul.f32 %v337, 1.442695
  %v448 = vpow.pop %v447
  %v449 = vmul.f32 %v338, 1.442695
  %v450 = vpow.pop %v449
  %v451 = vmul.f32 %v339, 1.442695
  %v452 = vpow.pop %v451
  %v453 = vmul.f32 %v340, 1.442695
  %v454 = vpow.pop %v453
  %v455 = vmul.f32 %v341, 1.442695
  %v456 = vpow.pop %v455
  %v457 = vmul.f32 %v342, 1.442695
  %v458 = vpow.pop %v457
  %v459 = vmul.f32 %v343, 1.442695
  %v460 = vpow.pop %v459
  %v461 = vmul.f32 %v344, 1.442695
  %v462 = vpow.pop %v461
  %v463 = vmul.f32 %v345, 1.442695
  %v464 = vpow.pop %v463
  %v465 = vmul.f32 %v346, 1.442695
  %v466 = vpow.pop %v465
  %v467 = vmul.f32 %v347, 1.442695
  %v468 = vpow.pop %v467
  %v469 = vmul.f32 %v348, 1.442695
  %v470 = vpow.pop %v469
  %v471 = vmul.f32 %v349, 1.442695
  %v472 = vpow.pop %v471
  %v473 = vmul.f32 %v350, 1.442695
  %v474 = vpow.pop %v473
  %v475 = vmul.f32 %v351, 1.442695
  %v476 = vpow.pop %v475
  %v477 = vmul.f32 %v352, 1.442695
  %v478 = vpow.pop %v477
  %v479 = vmul.f32 %v353, 1.442695
  %v480 = vpow.pop %v479
  %v481 = vmul.f32 %v354, 1.442695
  %v482 = vpow.pop %v481
  %v483 = vsub.f32 %v356, 1.0
  %v484 = vsub.f32 %v358, 1.0
  %v485 = vsub.f32 %v360, 1.0
  %v486 = vsub.f32 %v362, 1.0
  %v487 = vsub.f32 %v364, 1.0
  %v488 = vsub.f32 %v366, 1.0
  %v489 = vsub.f32 %v368, 1.0
  %v490 = vsub.f32 %v370, 1.0
  %v491 = vsub.f32 %v372, 1.0
  %v492 = vsub.f32 %v374, 1.0
  %v493 = vsub.f32 %v376, 1.0
  %v494 = vsub.f32 %v378, 1.0
  %v495 = vsub.f32 %v380, 1.0
  %v496 = vsub.f32 %v382, 1.0
  %v497 = vsub.f32 %v384, 1.0
  %v498 = vsub.f32 %v386, 1.0
  %v499 = vsub.f32 %v388, 1.0
  %v500 = vsub.f32 %v390, 1.0
  %v501 = vsub.f32 %v392, 1.0
  %v502 = vsub.f32 %v394, 1.0
  %v503 = vsub.f32 %v396, 1.0
  %v504 = vsub.f32 %v398, 1.0
  %v505 = vsub.f32 %v400, 1.0
  %v506 = vsub.f32 %v402, 1.0
  %v507 = vsub.f32 %v404, 1.0
  %v508 = vsub.f32 %v406, 1.0
  %v509 = vsub.f32 %v408, 1.0
  %v510 = vsub.f32 %v410, 1.0
  %v511 = vsub.f32 %v412, 1.0
  %v512 = vsub.f32 %v414, 1.0
  %v513 = vsub.f32 %v416, 1.0
  %v514 = vsub.f32 %v418, 1.0
  %v515 = vsub.f32 %v420, 1.0
  %v516 = vsub.f32 %v422, 1.0
  %v517 = vsub.f32 %v424, 1.0
  %v518 = vsub.f32 %v426, 1.0
  %v519 = vsub.f32 %v428, 1.0
  %v520 = vsub.f32 %v430, 1.0
  %v521 = vsub.f32 %v432, 1.0
  %v522 = vsub.f32 %v434, 1.0
  %v523 = vsub.f32 %v436, 1.0
  %v524 = vsub.f32 %v438, 1.0
  %v525 = vsub.f32 %v440, 1.0
  %v526 = vsub.f32 %v442, 1.0
  %v527 = vsub.f32 %v444, 1.0
  %v528 = vsub.f32 %v446, 1.0
  %v529 = vsub.f32 %v448, 1.0
  %v530 = vsub.f32 %v450, 1.0
  %v531 = vsub.f32 %v452, 1.0
  %v532 = vsub.f32 %v454, 1.0
  %v533 = vsub.f32 %v456, 1.0
  %v534 = vsub.f32 %v458, 1.0
  %v535 = vsub.f32 %v460, 1.0
  %v536 = vsub.f32 %v462, 1.0
  %v537 = vsub.f32 %v464, 1.0
  %v538 = vsub.f32 %v466, 1.0
  %v539 = vsub.f32 %v468, 1.0
  %v540 = vsub.f32 %v470, 1.0
  %v541 = vsub.f32 %v472, 1.0
  %v542 = vsub.f32 %v474, 1.0
  %v543 = vsub.f32 %v476, 1.0
  %v544 = vsub.f32 %v478, 1.0
  %v545 = vsub.f32 %v480, 1.0
  %v546 = vsub.f32 %v482, 1.0
  %v547 = vsel %vm227, %v163, %v483
  %v548 = vsel %vm228, %v164, %v484
  %v549 = vsel %vm229, %v165, %v485
  %v550 = vsel %vm230, %v166, %v486
  %v551 = vsel %vm231, %v167, %v487
  %v552 = vsel %vm232, %v168, %v488
  %v553 = vsel %vm233, %v169, %v489
  %v554 = vsel %vm234, %v170, %v490
  %v555 = vsel %vm235, %v171, %v491
  %v556 = vsel %vm236, %v172, %v492
  %v557 = vsel %vm237, %v173, %v493
  %v558 = vsel %vm238, %v174, %v494
  %v559 = vsel %vm239, %v175, %v495
  %v560 = vsel %vm240, %v176, %v496
  %v561 = vsel %vm241, %v177, %v497
  %v562 = vsel %vm242, %v178, %v498
  %v563 = vsel %vm243, %v179, %v499
  %v564 = vsel %vm244, %v180, %v500
  %v565 = vsel %vm245, %v181, %v501
  %v566 = vsel %vm246, %v182, %v502
  %v567 = vsel %vm247, %v183, %v503
  %v568 = vsel %vm248, %v184, %v504
  %v569 = vsel %vm249, %v185, %v505
  %v570 = vsel %vm250, %v186, %v506
  %v571 = vsel %vm251, %v187, %v507
  %v572 = vsel %vm252, %v188, %v508
  %v573 = vsel %vm253, %v189, %v509
  %v574 = vsel %vm254, %v190, %v510
  %v575 = vsel %vm255, %v191, %v511
  %v576 = vsel %vm256, %v192, %v512
  %v577 = vsel %vm257, %v193, %v513
  %v578 = vsel %vm258, %v194, %v514
  %v579 = vsel %vm259, %v195, %v515
  %v580 = vsel %vm260, %v196, %v516
  %v581 = vsel %vm261, %v197, %v517
  %v582 = vsel %vm262, %v198, %v518
  %v583 = vsel %vm263, %v199, %v519
  %v584 = vsel %vm264, %v200, %v520
  %v585 = vsel %vm265, %v201, %v521
  %v586 = vsel %vm266, %v202, %v522
  %v587 = vsel %vm267, %v203, %v523
  %v588 = vsel %vm268, %v204, %v524
  %v589 = vsel %vm269, %v205, %v525
  %v590 = vsel %vm270, %v206, %v526
  %v591 = vsel %vm271, %v207, %v527
  %v592 = vsel %vm272, %v208, %v528
  %v593 = vsel %vm273, %v209, %v529
  %v594 = vsel %vm274, %v210, %v530
  %v595 = vsel %vm275, %v211, %v531
  %v596 = vsel %vm276, %v212, %v532
  %v597 = vsel %vm277, %v213, %v533
  %v598 = vsel %vm278, %v214, %v534
  %v599 = vsel %vm279, %v215, %v535
  %v600 = vsel %vm280, %v216, %v536
  %v601 = vsel %vm281, %v217, %v537
  %v602 = vsel %vm282, %v218, %v538
  %v603 = vsel %vm283, %v219, %v539
  %v604 = vsel %vm284, %v220, %v540
  %v605 = vsel %vm285, %v221, %v541
  %v606 = vsel %vm286, %v222, %v542
  %v607 = vsel %vm287, %v223, %v543
  %v608 = vsel %vm288, %v224, %v544
  %v609 = vsel %vm289, %v225, %v545
  %v610 = vsel %vm290, %v226, %v546
  %v611 = vlaneseq
  %v612 = vshrl.u32 %v611, 7
  %v613 = vadd.s32 %v612, 8
  %v614 = vadd.s32 %v612, 16
  %v615 = vadd.s32 %v612, 24
  %v616 = vadd.s32 %v612, 32
  %v617 = vadd.s32 %v612, 40
  %v618 = vadd.s32 %v612, 48
  %v619 = vadd.s32 %v612, 56
  %v620 = vadd.s32 %v612, 64
  %v621 = vadd.s32 %v612, 72
  %v622 = vadd.s32 %v612, 80
  %v623 = vadd.s32 %v612, 88
  %v624 = vadd.s32 %v612, 96
  %v625 = vadd.s32 %v612, 104
  %v626 = vadd.s32 %v612, 112
  %v627 = vadd.s32 %v612, 120
  %v628 = vadd.s32 %v612, 128
  %v629 = vadd.s32 %v612, 136
  %v630 = vadd.s32 %v612, 144
  %v631 = vadd.s32 %v612, 152
  %v632 = vadd.s32 %v612, 160
  %v633 = vadd.s32 %v612, 168
  %v634 = vadd.s32 %v612, 176
  %v635 = vadd.s32 %v612, 184
  %v636 = vadd.s32 %v612, 192
  %v637 = vadd.s32 %v612, 200
  %v638 = vadd.s32 %v612, 208
  %v639 = vadd.s32 %v612, 216
  %v640 = vadd.s32 %v612, 224
  %v641 = vadd.s32 %v612, 232
  %v642 = vadd.s32 %v612, 240
  %v643 = vadd.s32 %v612, 248
  %v644 = vadd.s32 %v612, 256
  %v645 = vadd.s32 %v612, 264
  %v646 = vadd.s32 %v612, 272
  %v647 = vadd.s32 %v612, 280
  %v648 = vadd.s32 %v612, 288
  %v649 = vadd.s32 %v612, 296
  %v650 = vadd.s32 %v612, 304
  %v651 = vadd.s32 %v612, 312
  %v652 = vadd.s32 %v612, 320
  %v653 = vadd.s32 %v612, 328
  %v654 = vadd.s32 %v612, 336
  %v655 = vadd.s32 %v612, 344
  %v656 = vadd.s32 %v612, 352
  %v657 = vadd.s32 %v612, 360
  %v658 = vadd.s32 %v612, 368
  %v659 = vadd.s32 %v612, 376
  %v660 = vadd.s32 %v612, 384
  %v661 = vadd.s32 %v612, 392
  %v662 = vadd.s32 %v612, 400
  %v663 = vadd.s32 %v612, 408
  %v664 = vadd.s32 %v612, 416
  %v665 = vadd.s32 %v612, 424
  %v666 = vadd.s32 %v612, 432
  %v667 = vadd.s32 %v612, 440
  %v668 = vadd.s32 %v612, 448
  %v669 = vadd.s32 %v612, 456
  %v670 = vadd.s32 %v612, 464
  %v671 = vadd.s32 %v612, 472
  %v672 = vadd.s32 %v612, 480
  %v673 = vadd.s32 %v612, 488
  %v674 = vadd.s32 %v612, 496
  %v675 = vadd.s32 %v612, 504
  %s676 = smul.u32 0, 512
  %v677 = vstv %s676
  %v678 = vadd.s32 %v612, %v677
  %v679 = vadd.s32 %v613, %v677
  %v680 = vadd.s32 %v614, %v677
  %v681 = vadd.s32 %v615, %v677
  %v682 = vadd.s32 %v616, %v677
  %v683 = vadd.s32 %v617, %v677
  %v684 = vadd.s32 %v618, %v677
  %v685 = vadd.s32 %v619, %v677
  %v686 = vadd.s32 %v620, %v677
  %v687 = vadd.s32 %v621, %v677
  %v688 = vadd.s32 %v622, %v677
  %v689 = vadd.s32 %v623, %v677
  %v690 = vadd.s32 %v624, %v677
  %v691 = vadd.s32 %v625, %v677
  %v692 = vadd.s32 %v626, %v677
  %v693 = vadd.s32 %v627, %v677
  %v694 = vadd.s32 %v628, %v677
  %v695 = vadd.s32 %v629, %v677
  %v696 = vadd.s32 %v630, %v677
  %v697 = vadd.s32 %v631, %v677
  %v698 = vadd.s32 %v632, %v677
  %v699 = vadd.s32 %v633, %v677
  %v700 = vadd.s32 %v634, %v677
  %v701 = vadd.s32 %v635, %v677
  %v702 = vadd.s32 %v636, %v677
  %v703 = vadd.s32 %v637, %v677
  %v704 = vadd.s32 %v638, %v677
  %v705 = vadd.s32 %v639, %v677
  %v706 = vadd.s32 %v640, %v677
  %v707 = vadd.s32 %v641, %v677
  %v708 = vadd.s32 %v642, %v677
  %v709 = vadd.s32 %v643, %v677
  %v710 = vadd.s32 %v644, %v677
  %v711 = vadd.s32 %v645, %v677
  %v712 = vadd.s32 %v646, %v677
  %v713 = vadd.s32 %v647, %v677
  %v714 = vadd.s32 %v648, %v677
  %v715 = vadd.s32 %v649, %v677
  %v716 = vadd.s32 %v650, %v677
  %v717 = vadd.s32 %v651, %v677
  %v718 = vadd.s32 %v652, %v677
  %v719 = vadd.s32 %v653, %v677
  %v720 = vadd.s32 %v654, %v677
  %v721 = vadd.s32 %v655, %v677
  %v722 = vadd.s32 %v656, %v677
  %v723 = vadd.s32 %v657, %v677
  %v724 = vadd.s32 %v658, %v677
  %v725 = vadd.s32 %v659, %v677
  %v726 = vadd.s32 %v660, %v677
  %v727 = vadd.s32 %v661, %v677
  %v728 = vadd.s32 %v662, %v677
  %v729 = vadd.s32 %v663, %v677
  %v730 = vadd.s32 %v664, %v677
  %v731 = vadd.s32 %v665, %v677
  %v732 = vadd.s32 %v666, %v677
  %v733 = vadd.s32 %v667, %v677
  %v734 = vadd.s32 %v668, %v677
  %v735 = vadd.s32 %v669, %v677
  %v736 = vadd.s32 %v670, %v677
  %v737 = vadd.s32 %v671, %v677
  %v738 = vadd.s32 %v672, %v677
  %v739 = vadd.s32 %v673, %v677
  %v740 = vadd.s32 %v674, %v677
  %v741 = vadd.s32 %v675, %v677
  %vm742 = vcmp.lt.s32.totalorder %v678, 512
  %vm743 = vcmp.lt.s32.totalorder %v679, 512
  %vm744 = vcmp.lt.s32.totalorder %v680, 512
  %vm745 = vcmp.lt.s32.totalorder %v681, 512
  %vm746 = vcmp.lt.s32.totalorder %v682, 512
  %vm747 = vcmp.lt.s32.totalorder %v683, 512
  %vm748 = vcmp.lt.s32.totalorder %v684, 512
  %vm749 = vcmp.lt.s32.totalorder %v685, 512
  %vm750 = vcmp.lt.s32.totalorder %v686, 512
  %vm751 = vcmp.lt.s32.totalorder %v687, 512
  %vm752 = vcmp.lt.s32.totalorder %v688, 512
  %vm753 = vcmp.lt.s32.totalorder %v689, 512
  %vm754 = vcmp.lt.s32.totalorder %v690, 512
  %vm755 = vcmp.lt.s32.totalorder %v691, 512
  %vm756 = vcmp.lt.s32.totalorder %v692, 512
  %vm757 = vcmp.lt.s32.totalorder %v693, 512
  %vm758 = vcmp.lt.s32.totalorder %v694, 512
  %vm759 = vcmp.lt.s32.totalorder %v695, 512
  %vm760 = vcmp.lt.s32.totalorder %v696, 512
  %vm761 = vcmp.lt.s32.totalorder %v697, 512
  %vm762 = vcmp.lt.s32.totalorder %v698, 512
  %vm763 = vcmp.lt.s32.totalorder %v699, 512
  %vm764 = vcmp.lt.s32.totalorder %v700, 512
  %vm765 = vcmp.lt.s32.totalorder %v701, 512
  %vm766 = vcmp.lt.s32.totalorder %v702, 512
  %vm767 = vcmp.lt.s32.totalorder %v703, 512
  %vm768 = vcmp.lt.s32.totalorder %v704, 512
  %vm769 = vcmp.lt.s32.totalorder %v705, 512
  %vm770 = vcmp.lt.s32.totalorder %v706, 512
  %vm771 = vcmp.lt.s32.totalorder %v707, 512
  %vm772 = vcmp.lt.s32.totalorder %v708, 512
  %vm773 = vcmp.lt.s32.totalorder %v709, 512
  %vm774 = vcmp.lt.s32.totalorder %v710, 512
  %vm775 = vcmp.lt.s32.totalorder %v711, 512
  %vm776 = vcmp.lt.s32.totalorder %v712, 512
  %vm777 = vcmp.lt.s32.totalorder %v713, 512
  %vm778 = vcmp.lt.s32.totalorder %v714, 512
  %vm779 = vcmp.lt.s32.totalorder %v715, 512
  %vm780 = vcmp.lt.s32.totalorder %v716, 512
  %vm781 = vcmp.lt.s32.totalorder %v717, 512
  %vm782 = vcmp.lt.s32.totalorder %v718, 512
  %vm783 = vcmp.lt.s32.totalorder %v719, 512
  %vm784 = vcmp.lt.s32.totalorder %v720, 512
  %vm785 = vcmp.lt.s32.totalorder %v721, 512
  %vm786 = vcmp.lt.s32.totalorder %v722, 512
  %vm787 = vcmp.lt.s32.totalorder %v723, 512
  %vm788 = vcmp.lt.s32.totalorder %v724, 512
  %vm789 = vcmp.lt.s32.totalorder %v725, 512
  %vm790 = vcmp.lt.s32.totalorder %v726, 512
  %vm791 = vcmp.lt.s32.totalorder %v727, 512
  %vm792 = vcmp.lt.s32.totalorder %v728, 512
  %vm793 = vcmp.lt.s32.totalorder %v729, 512
  %vm794 = vcmp.lt.s32.totalorder %v730, 512
  %vm795 = vcmp.lt.s32.totalorder %v731, 512
  %vm796 = vcmp.lt.s32.totalorder %v732, 512
  %vm797 = vcmp.lt.s32.totalorder %v733, 512
  %vm798 = vcmp.lt.s32.totalorder %v734, 512
  %vm799 = vcmp.lt.s32.totalorder %v735, 512
  %vm800 = vcmp.lt.s32.totalorder %v736, 512
  %vm801 = vcmp.lt.s32.totalorder %v737, 512
  %vm802 = vcmp.lt.s32.totalorder %v738, 512
  %vm803 = vcmp.lt.s32.totalorder %v739, 512
  %vm804 = vcmp.lt.s32.totalorder %v740, 512
  %vm805 = vcmp.lt.s32.totalorder %v741, 512
  %v806 = vsel %vm742, 1, 0
  %v807 = vsel %vm743, 1, 0
  %v808 = vsel %vm744, 1, 0
  %v809 = vsel %vm745, 1, 0
  %v810 = vsel %vm746, 1, 0
  %v811 = vsel %vm747, 1, 0
  %v812 = vsel %vm748, 1, 0
  %v813 = vsel %vm749, 1, 0
  %v814 = vsel %vm750, 1, 0
  %v815 = vsel %vm751, 1, 0
  %v816 = vsel %vm752, 1, 0
  %v817 = vsel %vm753, 1, 0
  %v818 = vsel %vm754, 1, 0
  %v819 = vsel %vm755, 1, 0
  %v820 = vsel %vm756, 1, 0
  %v821 = vsel %vm757, 1, 0
  %v822 = vsel %vm758, 1, 0
  %v823 = vsel %vm759, 1, 0
  %v824 = vsel %vm760, 1, 0
  %v825 = vsel %vm761, 1, 0
  %v826 = vsel %vm762, 1, 0
  %v827 = vsel %vm763, 1, 0
  %v828 = vsel %vm764, 1, 0
  %v829 = vsel %vm765, 1, 0
  %v830 = vsel %vm766, 1, 0
  %v831 = vsel %vm767, 1, 0
  %v832 = vsel %vm768, 1, 0
  %v833 = vsel %vm769, 1, 0
  %v834 = vsel %vm770, 1, 0
  %v835 = vsel %vm771, 1, 0
  %v836 = vsel %vm772, 1, 0
  %v837 = vsel %vm773, 1, 0
  %v838 = vsel %vm774, 1, 0
  %v839 = vsel %vm775, 1, 0
  %v840 = vsel %vm776, 1, 0
  %v841 = vsel %vm777, 1, 0
  %v842 = vsel %vm778, 1, 0
  %v843 = vsel %vm779, 1, 0
  %v844 = vsel %vm780, 1, 0
  %v845 = vsel %vm781, 1, 0
  %v846 = vsel %vm782, 1, 0
  %v847 = vsel %vm783, 1, 0
  %v848 = vsel %vm784, 1, 0
  %v849 = vsel %vm785, 1, 0
  %v850 = vsel %vm786, 1, 0
  %v851 = vsel %vm787, 1, 0
  %v852 = vsel %vm788, 1, 0
  %v853 = vsel %vm789, 1, 0
  %v854 = vsel %vm790, 1, 0
  %v855 = vsel %vm791, 1, 0
  %v856 = vsel %vm792, 1, 0
  %v857 = vsel %vm793, 1, 0
  %v858 = vsel %vm794, 1, 0
  %v859 = vsel %vm795, 1, 0
  %v860 = vsel %vm796, 1, 0
  %v861 = vsel %vm797, 1, 0
  %v862 = vsel %vm798, 1, 0
  %v863 = vsel %vm799, 1, 0
  %v864 = vsel %vm800, 1, 0
  %v865 = vsel %vm801, 1, 0
  %v866 = vsel %vm802, 1, 0
  %v867 = vsel %vm803, 1, 0
  %v868 = vsel %vm804, 1, 0
  %v869 = vsel %vm805, 1, 0
  %vm870 = vcmp.eq.s32.totalorder %v806, 1
  %vm871 = vcmp.eq.s32.totalorder %v807, 1
  %vm872 = vcmp.eq.s32.totalorder %v808, 1
  %vm873 = vcmp.eq.s32.totalorder %v809, 1
  %vm874 = vcmp.eq.s32.totalorder %v810, 1
  %vm875 = vcmp.eq.s32.totalorder %v811, 1
  %vm876 = vcmp.eq.s32.totalorder %v812, 1
  %vm877 = vcmp.eq.s32.totalorder %v813, 1
  %vm878 = vcmp.eq.s32.totalorder %v814, 1
  %vm879 = vcmp.eq.s32.totalorder %v815, 1
  %vm880 = vcmp.eq.s32.totalorder %v816, 1
  %vm881 = vcmp.eq.s32.totalorder %v817, 1
  %vm882 = vcmp.eq.s32.totalorder %v818, 1
  %vm883 = vcmp.eq.s32.totalorder %v819, 1
  %vm884 = vcmp.eq.s32.totalorder %v820, 1
  %vm885 = vcmp.eq.s32.totalorder %v821, 1
  %vm886 = vcmp.eq.s32.totalorder %v822, 1
  %vm887 = vcmp.eq.s32.totalorder %v823, 1
  %vm888 = vcmp.eq.s32.totalorder %v824, 1
  %vm889 = vcmp.eq.s32.totalorder %v825, 1
  %vm890 = vcmp.eq.s32.totalorder %v826, 1
  %vm891 = vcmp.eq.s32.totalorder %v827, 1
  %vm892 = vcmp.eq.s32.totalorder %v828, 1
  %vm893 = vcmp.eq.s32.totalorder %v829, 1
  %vm894 = vcmp.eq.s32.totalorder %v830, 1
  %vm895 = vcmp.eq.s32.totalorder %v831, 1
  %vm896 = vcmp.eq.s32.totalorder %v832, 1
  %vm897 = vcmp.eq.s32.totalorder %v833, 1
  %vm898 = vcmp.eq.s32.totalorder %v834, 1
  %vm899 = vcmp.eq.s32.totalorder %v835, 1
  %vm900 = vcmp.eq.s32.totalorder %v836, 1
  %vm901 = vcmp.eq.s32.totalorder %v837, 1
  %vm902 = vcmp.eq.s32.totalorder %v838, 1
  %vm903 = vcmp.eq.s32.totalorder %v839, 1
  %vm904 = vcmp.eq.s32.totalorder %v840, 1
  %vm905 = vcmp.eq.s32.totalorder %v841, 1
  %vm906 = vcmp.eq.s32.totalorder %v842, 1
  %vm907 = vcmp.eq.s32.totalorder %v843, 1
  %vm908 = vcmp.eq.s32.totalorder %v844, 1
  %vm909 = vcmp.eq.s32.totalorder %v845, 1
  %vm910 = vcmp.eq.s32.totalorder %v846, 1
  %vm911 = vcmp.eq.s32.totalorder %v847, 1
  %vm912 = vcmp.eq.s32.totalorder %v848, 1
  %vm913 = vcmp.eq.s32.totalorder %v849, 1
  %vm914 = vcmp.eq.s32.totalorder %v850, 1
  %vm915 = vcmp.eq.s32.totalorder %v851, 1
  %vm916 = vcmp.eq.s32.totalorder %v852, 1
  %vm917 = vcmp.eq.s32.totalorder %v853, 1
  %vm918 = vcmp.eq.s32.totalorder %v854, 1
  %vm919 = vcmp.eq.s32.totalorder %v855, 1
  %vm920 = vcmp.eq.s32.totalorder %v856, 1
  %vm921 = vcmp.eq.s32.totalorder %v857, 1
  %vm922 = vcmp.eq.s32.totalorder %v858, 1
  %vm923 = vcmp.eq.s32.totalorder %v859, 1
  %vm924 = vcmp.eq.s32.totalorder %v860, 1
  %vm925 = vcmp.eq.s32.totalorder %v861, 1
  %vm926 = vcmp.eq.s32.totalorder %v862, 1
  %vm927 = vcmp.eq.s32.totalorder %v863, 1
  %vm928 = vcmp.eq.s32.totalorder %v864, 1
  %vm929 = vcmp.eq.s32.totalorder %v865, 1
  %vm930 = vcmp.eq.s32.totalorder %v866, 1
  %vm931 = vcmp.eq.s32.totalorder %v867, 1
  %vm932 = vcmp.eq.s32.totalorder %v868, 1
  %vm933 = vcmp.eq.s32.totalorder %v869, 1
  %v934 = vsel %vm870, %v547, 0.0
  %v935 = vsel %vm871, %v548, 0.0
  %v936 = vsel %vm872, %v549, 0.0
  %v937 = vsel %vm873, %v550, 0.0
  %v938 = vsel %vm874, %v551, 0.0
  %v939 = vsel %vm875, %v552, 0.0
  %v940 = vsel %vm876, %v553, 0.0
  %v941 = vsel %vm877, %v554, 0.0
  %v942 = vsel %vm878, %v555, 0.0
  %v943 = vsel %vm879, %v556, 0.0
  %v944 = vsel %vm880, %v557, 0.0
  %v945 = vsel %vm881, %v558, 0.0
  %v946 = vsel %vm882, %v559, 0.0
  %v947 = vsel %vm883, %v560, 0.0
  %v948 = vsel %vm884, %v561, 0.0
  %v949 = vsel %vm885, %v562, 0.0
  %v950 = vsel %vm886, %v563, 0.0
  %v951 = vsel %vm887, %v564, 0.0
  %v952 = vsel %vm888, %v565, 0.0
  %v953 = vsel %vm889, %v566, 0.0
  %v954 = vsel %vm890, %v567, 0.0
  %v955 = vsel %vm891, %v568, 0.0
  %v956 = vsel %vm892, %v569, 0.0
  %v957 = vsel %vm893, %v570, 0.0
  %v958 = vsel %vm894, %v571, 0.0
  %v959 = vsel %vm895, %v572, 0.0
  %v960 = vsel %vm896, %v573, 0.0
  %v961 = vsel %vm897, %v574, 0.0
  %v962 = vsel %vm898, %v575, 0.0
  %v963 = vsel %vm899, %v576, 0.0
  %v964 = vsel %vm900, %v577, 0.0
  %v965 = vsel %vm901, %v578, 0.0
  %v966 = vsel %vm902, %v579, 0.0
  %v967 = vsel %vm903, %v580, 0.0
  %v968 = vsel %vm904, %v581, 0.0
  %v969 = vsel %vm905, %v582, 0.0
  %v970 = vsel %vm906, %v583, 0.0
  %v971 = vsel %vm907, %v584, 0.0
  %v972 = vsel %vm908, %v585, 0.0
  %v973 = vsel %vm909, %v586, 0.0
  %v974 = vsel %vm910, %v587, 0.0
  %v975 = vsel %vm911, %v588, 0.0
  %v976 = vsel %vm912, %v589, 0.0
  %v977 = vsel %vm913, %v590, 0.0
  %v978 = vsel %vm914, %v591, 0.0
  %v979 = vsel %vm915, %v592, 0.0
  %v980 = vsel %vm916, %v593, 0.0
  %v981 = vsel %vm917, %v594, 0.0
  %v982 = vsel %vm918, %v595, 0.0
  %v983 = vsel %vm919, %v596, 0.0
  %v984 = vsel %vm920, %v597, 0.0
  %v985 = vsel %vm921, %v598, 0.0
  %v986 = vsel %vm922, %v599, 0.0
  %v987 = vsel %vm923, %v600, 0.0
  %v988 = vsel %vm924, %v601, 0.0
  %v989 = vsel %vm925, %v602, 0.0
  %v990 = vsel %vm926, %v603, 0.0
  %v991 = vsel %vm927, %v604, 0.0
  %v992 = vsel %vm928, %v605, 0.0
  %v993 = vsel %vm929, %v606, 0.0
  %v994 = vsel %vm930, %v607, 0.0
  %v995 = vsel %vm931, %v608, 0.0
  %v996 = vsel %vm932, %v609, 0.0
  %v997 = vsel %vm933, %v610, 0.0
  %v998 = vpack.c.bf16 %v935, %v934
  %v999 = vpack.c.bf16 %v937, %v936
  %v1000 = vpack.c.bf16 %v939, %v938
  %v1001 = vpack.c.bf16 %v941, %v940
  %v1002 = vpack.c.bf16 %v943, %v942
  %v1003 = vpack.c.bf16 %v945, %v944
  %v1004 = vpack.c.bf16 %v947, %v946
  %v1005 = vpack.c.bf16 %v949, %v948
  %v1006 = vpack.c.bf16 %v951, %v950
  %v1007 = vpack.c.bf16 %v953, %v952
  %v1008 = vpack.c.bf16 %v955, %v954
  %v1009 = vpack.c.bf16 %v957, %v956
  %v1010 = vpack.c.bf16 %v959, %v958
  %v1011 = vpack.c.bf16 %v961, %v960
  %v1012 = vpack.c.bf16 %v963, %v962
  %v1013 = vpack.c.bf16 %v965, %v964
  %v1014 = vpack.c.bf16 %v967, %v966
  %v1015 = vpack.c.bf16 %v969, %v968
  %v1016 = vpack.c.bf16 %v971, %v970
  %v1017 = vpack.c.bf16 %v973, %v972
  %v1018 = vpack.c.bf16 %v975, %v974
  %v1019 = vpack.c.bf16 %v977, %v976
  %v1020 = vpack.c.bf16 %v979, %v978
  %v1021 = vpack.c.bf16 %v981, %v980
  %v1022 = vpack.c.bf16 %v983, %v982
  %v1023 = vpack.c.bf16 %v985, %v984
  %v1024 = vpack.c.bf16 %v987, %v986
  %v1025 = vpack.c.bf16 %v989, %v988
  %v1026 = vpack.c.bf16 %v991, %v990
  %v1027 = vpack.c.bf16 %v993, %v992
  %v1028 = vpack.c.bf16 %v995, %v994
  %v1029 = vpack.c.bf16 %v997, %v996
  %v1030 = vld [vmem:[%s3] sm:$0xf]
  %v1031 = vld [vmem:[%s3 + $0x4] sm:$0xf]
  %v1032 = vld [vmem:[%s3 + $0x8] sm:$0xf]
  %v1033 = vld [vmem:[%s3 + $0xc] sm:$0xf]
  %v1034 = vld [vmem:[%s3 + $0x10] sm:$0xf]
  %v1035 = vld [vmem:[%s3 + $0x14] sm:$0xf]
  %v1036 = vld [vmem:[%s3 + $0x18] sm:$0xf]
  %v1037 = vld [vmem:[%s3 + $0x1c] sm:$0xf]
  %v1038 = vld [vmem:[%s3 + $0x20] sm:$0xf]
  %v1039 = vld [vmem:[%s3 + $0x24] sm:$0xf]
  %v1040 = vld [vmem:[%s3 + $0x28] sm:$0xf]
  %v1041 = vld [vmem:[%s3 + $0x2c] sm:$0xf]
  %v1042 = vld [vmem:[%s3 + $0x30] sm:$0xf]
  %v1043 = vld [vmem:[%s3 + $0x34] sm:$0xf]
  %v1044 = vld [vmem:[%s3 + $0x38] sm:$0xf]
  %v1045 = vld [vmem:[%s3 + $0x3c] sm:$0xf]
  %v1062 = vunpack.c.l.b16 %v1030
  %v1063 = vunpack.c.l.b16 %v1031
  %v1064 = vunpack.c.l.b16 %v1032
  %v1065 = vunpack.c.l.b16 %v1033
  %v1066 = vunpack.c.l.b16 %v1034
  %v1067 = vunpack.c.l.b16 %v1035
  %v1068 = vunpack.c.l.b16 %v1036
  %v1069 = vunpack.c.l.b16 %v1037
  %v1070 = vunpack.c.l.b16 %v1038
  %v1071 = vunpack.c.l.b16 %v1039
  %v1072 = vunpack.c.l.b16 %v1040
  %v1073 = vunpack.c.l.b16 %v1041
  %v1074 = vunpack.c.l.b16 %v1042
  %v1075 = vunpack.c.l.b16 %v1043
  %v1076 = vunpack.c.l.b16 %v1044
  %v1077 = vunpack.c.l.b16 %v1045
  %v1078 = vpack.c.b16 %v1063, %v1062
  %v1079 = vpack.c.b16 %v1065, %v1064
  %v1080 = vpack.c.b16 %v1067, %v1066
  %v1081 = vpack.c.b16 %v1069, %v1068
  %v1082 = vpack.c.b16 %v1071, %v1070
  %v1083 = vpack.c.b16 %v1073, %v1072
  %v1084 = vpack.c.b16 %v1075, %v1074
  %v1085 = vpack.c.b16 %v1077, %v1076
  %1094 = vmatprep.subr.bf16.mxu0 0
  %1095 = vmatpush1.bf16.msra.mxu0 %v1078
  %1096 = vmatprep.subr.bf16.mxu0 0
  %1097 = vmatpush1.bf16.msra.mxu0 %v1079
  %1098 = vmatprep.subr.bf16.mxu0 0
  %1099 = vmatpush1.bf16.msra.mxu0 %v1080
  %1100 = vmatprep.subr.bf16.mxu0 0
  %1101 = vmatpush1.bf16.msra.mxu0 %v1081
  %1102 = vmatprep.subr.bf16.mxu0 0
  %1103 = vmatpush1.bf16.msra.mxu0 %v1082
  %1104 = vmatprep.subr.bf16.mxu0 0
  %1105 = vmatpush1.bf16.msra.mxu0 %v1083
  %1106 = vmatprep.subr.bf16.mxu0 0
  %1107 = vmatpush1.bf16.msra.mxu0 %v1084
  %1108 = vmatprep.subr.bf16.mxu0 0
  %1109 = vmatpush1.bf16.msra.mxu0 %v1085
  %1110 = vmatprep.subr.bf16.mxu0 0
  %1111 = vmatpush1.bf16.msra.mxu0 0
  %1112 = vmatprep.subr.bf16.mxu0 0
  %1113 = vmatpush1.bf16.msra.mxu0 0
  %1114 = vmatprep.subr.bf16.mxu0 0
  %1115 = vmatpush1.bf16.msra.mxu0 0
  %1116 = vmatprep.subr.bf16.mxu0 0
  %1117 = vmatpush1.bf16.msra.mxu0 0
  %1118 = vmatprep.subr.bf16.mxu0 0
  %1119 = vmatpush1.bf16.msra.mxu0 0
  %1120 = vmatprep.subr.bf16.mxu0 0
  %1121 = vmatpush1.bf16.msra.mxu0 0
  %1122 = vmatprep.subr.bf16.mxu0 0
  %1123 = vmatpush1.bf16.msra.mxu0 0
  %1124 = vmatprep.subr.bf16.mxu0 0
  %1125 = vmatpush1.bf16.msra.mxu0 0
  %1126 = vmatprep.mubr.bf16.mxu0 0
  %1127 = vmatmul.mubr.bf16.gmra.mrb[0].mxu0 %v998
  %v1128 = vpop.f32.mrb[0].mxu0
  %v1129 = vadd.f32 0.0, %v1128
  %v1130 = vpop.f32.mrb[0].mxu0
  %v1131 = vpop.f32.mrb[0].mxu0
  %v1132 = vadd.f32 0.0, %v1131
  %v1133 = vpop.f32.mrb[0].mxu0
  %1134 = vmatprep.mubr.bf16.mxu0 0
  %1135 = vmatmul.mubr.bf16.gmra.mrb[0].mxu0 %v999
  %v1136 = vpop.f32.mrb[0].mxu0
  %v1137 = vadd.f32 0.0, %v1136
  %v1138 = vpop.f32.mrb[0].mxu0
  %v1139 = vpop.f32.mrb[0].mxu0
  %v1140 = vadd.f32 0.0, %v1139
  %v1141 = vpop.f32.mrb[0].mxu0
  %1142 = vmatprep.mubr.bf16.mxu0 0
  %1143 = vmatmul.mubr.bf16.gmra.mrb[0].mxu0 %v1000
  %v1144 = vpop.f32.mrb[0].mxu0
  %v1145 = vadd.f32 0.0, %v1144
  %v1146 = vpop.f32.mrb[0].mxu0
  %v1147 = vpop.f32.mrb[0].mxu0
  %v1148 = vadd.f32 0.0, %v1147
  %v1149 = vpop.f32.mrb[0].mxu0
  %1150 = vmatprep.mubr.bf16.mxu0 0
  %1151 = vmatmul.mubr.bf16.gmra.mrb[0].mxu0 %v1001
  %v1152 = vpop.f32.mrb[0].mxu0
  %v1153 = vadd.f32 0.0, %v1152
  %v1154 = vpop.f32.mrb[0].mxu0
  %v1155 = vpop.f32.mrb[0].mxu0
  %v1156 = vadd.f32 0.0, %v1155
  %v1157 = vpop.f32.mrb[0].mxu0
  %1158 = vmatprep.mubr.bf16.mxu0 0
  %1159 = vmatmul.mubr.bf16.gmra.mrb[0].mxu0 %v1002
  %v1160 = vpop.f32.mrb[0].mxu0
  %v1161 = vadd.f32 0.0, %v1160
  %v1162 = vpop.f32.mrb[0].mxu0
  %v1163 = vpop.f32.mrb[0].mxu0
  %v1164 = vadd.f32 0.0, %v1163
  %v1165 = vpop.f32.mrb[0].mxu0
  %1166 = vmatprep.mubr.bf16.mxu0 0
  %1167 = vmatmul.mubr.bf16.gmra.mrb[0].mxu0 %v1003
  %v1168 = vpop.f32.mrb[0].mxu0
  %v1169 = vadd.f32 0.0, %v1168
  %v1170 = vpop.f32.mrb[0].mxu0
  %v1171 = vpop.f32.mrb[0].mxu0
  %v1172 = vadd.f32 0.0, %v1171
  %v1173 = vpop.f32.mrb[0].mxu0
  %1174 = vmatprep.mubr.bf16.mxu0 0
  %1175 = vmatmul.mubr.bf16.gmra.mrb[0].mxu0 %v1004
  %v1176 = vpop.f32.mrb[0].mxu0
  %v1177 = vadd.f32 0.0, %v1176
  %v1178 = vpop.f32.mrb[0].mxu0
  %v1179 = vpop.f32.mrb[0].mxu0
  %v1180 = vadd.f32 0.0, %v1179
  %v1181 = vpop.f32.mrb[0].mxu0
  %1182 = vmatprep.mubr.bf16.mxu0 0
  %1183 = vmatmul.mubr.bf16.gmra.mrb[0].mxu0 %v1005
  %v1184 = vpop.f32.mrb[0].mxu0
  %v1185 = vadd.f32 0.0, %v1184
  %v1186 = vpop.f32.mrb[0].mxu0
  %v1187 = vpop.f32.mrb[0].mxu0
  %v1188 = vadd.f32 0.0, %v1187
  %v1189 = vpop.f32.mrb[0].mxu0
  %1190 = vmatprep.mubr.bf16.mxu0 0
  %1191 = vmatmul.mubr.bf16.gmra.mrb[0].mxu0 %v1006
  %v1192 = vpop.f32.mrb[0].mxu0
  %v1193 = vadd.f32 0.0, %v1192
  %v1194 = vpop.f32.mrb[0].mxu0
  %v1195 = vpop.f32.mrb[0].mxu0
  %v1196 = vadd.f32 0.0, %v1195
  %v1197 = vpop.f32.mrb[0].mxu0
  %1198 = vmatprep.mubr.bf16.mxu0 0
  %1199 = vmatmul.mubr.bf16.gmra.mrb[0].mxu0 %v1007
  %v1200 = vpop.f32.mrb[0].mxu0
  %v1201 = vadd.f32 0.0, %v1200
  %v1202 = vpop.f32.mrb[0].mxu0
  %v1203 = vpop.f32.mrb[0].mxu0
  %v1204 = vadd.f32 0.0, %v1203
  %v1205 = vpop.f32.mrb[0].mxu0
  %1206 = vmatprep.mubr.bf16.mxu0 0
  %1207 = vmatmul.mubr.bf16.gmra.mrb[0].mxu0 %v1008
  %v1208 = vpop.f32.mrb[0].mxu0
  %v1209 = vadd.f32 0.0, %v1208
  %v1210 = vpop.f32.mrb[0].mxu0
  %v1211 = vpop.f32.mrb[0].mxu0
  %v1212 = vadd.f32 0.0, %v1211
  %v1213 = vpop.f32.mrb[0].mxu0
  %1214 = vmatprep.mubr.bf16.mxu0 0
  %1215 = vmatmul.mubr.bf16.gmra.mrb[0].mxu0 %v1009
  %v1216 = vpop.f32.mrb[0].mxu0
  %v1217 = vadd.f32 0.0, %v1216
  %v1218 = vpop.f32.mrb[0].mxu0
  %v1219 = vpop.f32.mrb[0].mxu0
  %v1220 = vadd.f32 0.0, %v1219
  %v1221 = vpop.f32.mrb[0].mxu0
  %1222 = vmatprep.mubr.bf16.mxu0 0
  %1223 = vmatmul.mubr.bf16.gmra.mrb[0].mxu0 %v1010
  %v1224 = vpop.f32.mrb[0].mxu0
  %v1225 = vadd.f32 0.0, %v1224
  %v1226 = vpop.f32.mrb[0].mxu0
  %v1227 = vpop.f32.mrb[0].mxu0
  %v1228 = vadd.f32 0.0, %v1227
  %v1229 = vpop.f32.mrb[0].mxu0
  %1230 = vmatprep.mubr.bf16.mxu0 0
  %1231 = vmatmul.mubr.bf16.gmra.mrb[0].mxu0 %v1011
  %v1232 = vpop.f32.mrb[0].mxu0
  %v1233 = vadd.f32 0.0, %v1232
  %v1234 = vpop.f32.mrb[0].mxu0
  %v1235 = vpop.f32.mrb[0].mxu0
  %v1236 = vadd.f32 0.0, %v1235
  %v1237 = vpop.f32.mrb[0].mxu0
  %1238 = vmatprep.mubr.bf16.mxu0 0
  %1239 = vmatmul.mubr.bf16.gmra.mrb[0].mxu0 %v1012
  %v1240 = vpop.f32.mrb[0].mxu0
  %v1241 = vadd.f32 0.0, %v1240
  %v1242 = vpop.f32.mrb[0].mxu0
  %v1243 = vpop.f32.mrb[0].mxu0
  %v1244 = vadd.f32 0.0, %v1243
  %v1245 = vpop.f32.mrb[0].mxu0
  %1246 = vmatprep.mubr.bf16.mxu0 0
  %1247 = vmatmul.mubr.bf16.gmra.mrb[0].mxu0 %v1013
  %v1248 = vpop.f32.mrb[0].mxu0
  %v1249 = vadd.f32 0.0, %v1248
  %v1250 = vpop.f32.mrb[0].mxu0
  %v1251 = vpop.f32.mrb[0].mxu0
  %v1252 = vadd.f32 0.0, %v1251
  %v1253 = vpop.f32.mrb[0].mxu0
  %1254 = vmatprep.mubr.bf16.mxu0 0
  %1255 = vmatmul.mubr.bf16.gmra.mrb[0].mxu0 %v1014
  %v1256 = vpop.f32.mrb[0].mxu0
  %v1257 = vadd.f32 0.0, %v1256
  %v1258 = vpop.f32.mrb[0].mxu0
  %v1259 = vpop.f32.mrb[0].mxu0
  %v1260 = vadd.f32 0.0, %v1259
  %v1261 = vpop.f32.mrb[0].mxu0
  %1262 = vmatprep.mubr.bf16.mxu0 0
  %1263 = vmatmul.mubr.bf16.gmra.mrb[0].mxu0 %v1015
  %v1264 = vpop.f32.mrb[0].mxu0
  %v1265 = vadd.f32 0.0, %v1264
  %v1266 = vpop.f32.mrb[0].mxu0
  %v1267 = vpop.f32.mrb[0].mxu0
  %v1268 = vadd.f32 0.0, %v1267
  %v1269 = vpop.f32.mrb[0].mxu0
  %1270 = vmatprep.mubr.bf16.mxu0 0
  %1271 = vmatmul.mubr.bf16.gmra.mrb[0].mxu0 %v1016
  %v1272 = vpop.f32.mrb[0].mxu0
  %v1273 = vadd.f32 0.0, %v1272
  %v1274 = vpop.f32.mrb[0].mxu0
  %v1275 = vpop.f32.mrb[0].mxu0
  %v1276 = vadd.f32 0.0, %v1275
  %v1277 = vpop.f32.mrb[0].mxu0
  %1278 = vmatprep.mubr.bf16.mxu0 0
  %1279 = vmatmul.mubr.bf16.gmra.mrb[0].mxu0 %v1017
  %v1280 = vpop.f32.mrb[0].mxu0
  %v1281 = vadd.f32 0.0, %v1280
  %v1282 = vpop.f32.mrb[0].mxu0
  %v1283 = vpop.f32.mrb[0].mxu0
  %v1284 = vadd.f32 0.0, %v1283
  %v1285 = vpop.f32.mrb[0].mxu0
  %1286 = vmatprep.mubr.bf16.mxu0 0
  %1287 = vmatmul.mubr.bf16.gmra.mrb[0].mxu0 %v1018
  %v1288 = vpop.f32.mrb[0].mxu0
  %v1289 = vadd.f32 0.0, %v1288
  %v1290 = vpop.f32.mrb[0].mxu0
  %v1291 = vpop.f32.mrb[0].mxu0
  %v1292 = vadd.f32 0.0, %v1291
  %v1293 = vpop.f32.mrb[0].mxu0
  %1294 = vmatprep.mubr.bf16.mxu0 0
  %1295 = vmatmul.mubr.bf16.gmra.mrb[0].mxu0 %v1019
  %v1296 = vpop.f32.mrb[0].mxu0
  %v1297 = vadd.f32 0.0, %v1296
  %v1298 = vpop.f32.mrb[0].mxu0
  %v1299 = vpop.f32.mrb[0].mxu0
  %v1300 = vadd.f32 0.0, %v1299
  %v1301 = vpop.f32.mrb[0].mxu0
  %1302 = vmatprep.mubr.bf16.mxu0 0
  %1303 = vmatmul.mubr.bf16.gmra.mrb[0].mxu0 %v1020
  %v1304 = vpop.f32.mrb[0].mxu0
  %v1305 = vadd.f32 0.0, %v1304
  %v1306 = vpop.f32.mrb[0].mxu0
  %v1307 = vpop.f32.mrb[0].mxu0
  %v1308 = vadd.f32 0.0, %v1307
  %v1309 = vpop.f32.mrb[0].mxu0
  %1310 = vmatprep.mubr.bf16.mxu0 0
  %1311 = vmatmul.mubr.bf16.gmra.mrb[0].mxu0 %v1021
  %v1312 = vpop.f32.mrb[0].mxu0
  %v1313 = vadd.f32 0.0, %v1312
  %v1314 = vpop.f32.mrb[0].mxu0
  %v1315 = vpop.f32.mrb[0].mxu0
  %v1316 = vadd.f32 0.0, %v1315
  %v1317 = vpop.f32.mrb[0].mxu0
  %1318 = vmatprep.mubr.bf16.mxu0 0
  %1319 = vmatmul.mubr.bf16.gmra.mrb[0].mxu0 %v1022
  %v1320 = vpop.f32.mrb[0].mxu0
  %v1321 = vadd.f32 0.0, %v1320
  %v1322 = vpop.f32.mrb[0].mxu0
  %v1323 = vpop.f32.mrb[0].mxu0
  %v1324 = vadd.f32 0.0, %v1323
  %v1325 = vpop.f32.mrb[0].mxu0
  %1326 = vmatprep.mubr.bf16.mxu0 0
  %1327 = vmatmul.mubr.bf16.gmra.mrb[0].mxu0 %v1023
  %v1328 = vpop.f32.mrb[0].mxu0
  %v1329 = vadd.f32 0.0, %v1328
  %v1330 = vpop.f32.mrb[0].mxu0
  %v1331 = vpop.f32.mrb[0].mxu0
  %v1332 = vadd.f32 0.0, %v1331
  %v1333 = vpop.f32.mrb[0].mxu0
  %1334 = vmatprep.mubr.bf16.mxu0 0
  %1335 = vmatmul.mubr.bf16.gmra.mrb[0].mxu0 %v1024
  %v1336 = vpop.f32.mrb[0].mxu0
  %v1337 = vadd.f32 0.0, %v1336
  %v1338 = vpop.f32.mrb[0].mxu0
  %v1339 = vpop.f32.mrb[0].mxu0
  %v1340 = vadd.f32 0.0, %v1339
  %v1341 = vpop.f32.mrb[0].mxu0
  %1342 = vmatprep.mubr.bf16.mxu0 0
  %1343 = vmatmul.mubr.bf16.gmra.mrb[0].mxu0 %v1025
  %v1344 = vpop.f32.mrb[0].mxu0
  %v1345 = vadd.f32 0.0, %v1344
  %v1346 = vpop.f32.mrb[0].mxu0
  %v1347 = vpop.f32.mrb[0].mxu0
  %v1348 = vadd.f32 0.0, %v1347
  %v1349 = vpop.f32.mrb[0].mxu0
  %1350 = vmatprep.mubr.bf16.mxu0 0
  %1351 = vmatmul.mubr.bf16.gmra.mrb[0].mxu0 %v1026
  %v1352 = vpop.f32.mrb[0].mxu0
  %v1353 = vadd.f32 0.0, %v1352
  %v1354 = vpop.f32.mrb[0].mxu0
  %v1355 = vpop.f32.mrb[0].mxu0
  %v1356 = vadd.f32 0.0, %v1355
  %v1357 = vpop.f32.mrb[0].mxu0
  %1358 = vmatprep.mubr.bf16.mxu0 0
  %1359 = vmatmul.mubr.bf16.gmra.mrb[0].mxu0 %v1027
  %v1360 = vpop.f32.mrb[0].mxu0
  %v1361 = vadd.f32 0.0, %v1360
  %v1362 = vpop.f32.mrb[0].mxu0
  %v1363 = vpop.f32.mrb[0].mxu0
  %v1364 = vadd.f32 0.0, %v1363
  %v1365 = vpop.f32.mrb[0].mxu0
  %1366 = vmatprep.mubr.bf16.mxu0 0
  %1367 = vmatmul.mubr.bf16.gmra.mrb[0].mxu0 %v1028
  %v1368 = vpop.f32.mrb[0].mxu0
  %v1369 = vadd.f32 0.0, %v1368
  %v1370 = vpop.f32.mrb[0].mxu0
  %v1371 = vpop.f32.mrb[0].mxu0
  %v1372 = vadd.f32 0.0, %v1371
  %v1373 = vpop.f32.mrb[0].mxu0
  %1374 = vmatprep.mubr.bf16.mxu0 0
  %1375 = vmatmul.mubr.bf16.gmra.mrb[0].mxu0 %v1029
  %v1376 = vpop.f32.mrb[0].mxu0
  %v1377 = vadd.f32 0.0, %v1376
  %v1378 = vpop.f32.mrb[0].mxu0
  %v1379 = vpop.f32.mrb[0].mxu0
  %v1380 = vadd.f32 0.0, %v1379
  %v1381 = vpop.f32.mrb[0].mxu0
  %1382 = vdwg.mxu0
  %v1383 = vpack.c.bf16 %v1132, %v1129
  %v1384 = vpack.c.bf16 %v1140, %v1137
  %v1385 = vpack.c.bf16 %v1148, %v1145
  %v1386 = vpack.c.bf16 %v1156, %v1153
  %v1387 = vpack.c.bf16 %v1164, %v1161
  %v1388 = vpack.c.bf16 %v1172, %v1169
  %v1389 = vpack.c.bf16 %v1180, %v1177
  %v1390 = vpack.c.bf16 %v1188, %v1185
  %v1391 = vpack.c.bf16 %v1196, %v1193
  %v1392 = vpack.c.bf16 %v1204, %v1201
  %v1393 = vpack.c.bf16 %v1212, %v1209
  %v1394 = vpack.c.bf16 %v1220, %v1217
  %v1395 = vpack.c.bf16 %v1228, %v1225
  %v1396 = vpack.c.bf16 %v1236, %v1233
  %v1397 = vpack.c.bf16 %v1244, %v1241
  %v1398 = vpack.c.bf16 %v1252, %v1249
  %v1399 = vpack.c.bf16 %v1260, %v1257
  %v1400 = vpack.c.bf16 %v1268, %v1265
  %v1401 = vpack.c.bf16 %v1276, %v1273
  %v1402 = vpack.c.bf16 %v1284, %v1281
  %v1403 = vpack.c.bf16 %v1292, %v1289
  %v1404 = vpack.c.bf16 %v1300, %v1297
  %v1405 = vpack.c.bf16 %v1308, %v1305
  %v1406 = vpack.c.bf16 %v1316, %v1313
  %v1407 = vpack.c.bf16 %v1324, %v1321
  %v1408 = vpack.c.bf16 %v1332, %v1329
  %v1409 = vpack.c.bf16 %v1340, %v1337
  %v1410 = vpack.c.bf16 %v1348, %v1345
  %v1411 = vpack.c.bf16 %v1356, %v1353
  %v1412 = vpack.c.bf16 %v1364, %v1361
  %v1413 = vpack.c.bf16 %v1372, %v1369
  %v1414 = vpack.c.bf16 %v1380, %v1377
  %v1447 = vunpack.c.l.b16 %v1383
  %v1448 = vunpack.c.h.b16 %v1383
  %v1449 = vunpack.c.l.b16 %v1384
  %v1450 = vunpack.c.h.b16 %v1384
  %v1451 = vunpack.c.l.b16 %v1385
  %v1452 = vunpack.c.h.b16 %v1385
  %v1453 = vunpack.c.l.b16 %v1386
  %v1454 = vunpack.c.h.b16 %v1386
  %v1455 = vunpack.c.l.b16 %v1387
  %v1456 = vunpack.c.h.b16 %v1387
  %v1457 = vunpack.c.l.b16 %v1388
  %v1458 = vunpack.c.h.b16 %v1388
  %v1459 = vunpack.c.l.b16 %v1389
  %v1460 = vunpack.c.h.b16 %v1389
  %v1461 = vunpack.c.l.b16 %v1390
  %v1462 = vunpack.c.h.b16 %v1390
  %v1463 = vunpack.c.l.b16 %v1391
  %v1464 = vunpack.c.h.b16 %v1391
  %v1465 = vunpack.c.l.b16 %v1392
  %v1466 = vunpack.c.h.b16 %v1392
  %v1467 = vunpack.c.l.b16 %v1393
  %v1468 = vunpack.c.h.b16 %v1393
  %v1469 = vunpack.c.l.b16 %v1394
  %v1470 = vunpack.c.h.b16 %v1394
  %v1471 = vunpack.c.l.b16 %v1395
  %v1472 = vunpack.c.h.b16 %v1395
  %v1473 = vunpack.c.l.b16 %v1396
  %v1474 = vunpack.c.h.b16 %v1396
  %v1475 = vunpack.c.l.b16 %v1397
  %v1476 = vunpack.c.h.b16 %v1397
  %v1477 = vunpack.c.l.b16 %v1398
  %v1478 = vunpack.c.h.b16 %v1398
  %v1479 = vunpack.c.l.b16 %v1399
  %v1480 = vunpack.c.h.b16 %v1399
  %v1481 = vunpack.c.l.b16 %v1400
  %v1482 = vunpack.c.h.b16 %v1400
  %v1483 = vunpack.c.l.b16 %v1401
  %v1484 = vunpack.c.h.b16 %v1401
  %v1485 = vunpack.c.l.b16 %v1402
  %v1486 = vunpack.c.h.b16 %v1402
  %v1487 = vunpack.c.l.b16 %v1403
  %v1488 = vunpack.c.h.b16 %v1403
  %v1489 = vunpack.c.l.b16 %v1404
  %v1490 = vunpack.c.h.b16 %v1404
  %v1491 = vunpack.c.l.b16 %v1405
  %v1492 = vunpack.c.h.b16 %v1405
  %v1493 = vunpack.c.l.b16 %v1406
  %v1494 = vunpack.c.h.b16 %v1406
  %v1495 = vunpack.c.l.b16 %v1407
  %v1496 = vunpack.c.h.b16 %v1407
  %v1497 = vunpack.c.l.b16 %v1408
  %v1498 = vunpack.c.h.b16 %v1408
  %v1499 = vunpack.c.l.b16 %v1409
  %v1500 = vunpack.c.h.b16 %v1409
  %v1501 = vunpack.c.l.b16 %v1410
  %v1502 = vunpack.c.h.b16 %v1410
  %v1503 = vunpack.c.l.b16 %v1411
  %v1504 = vunpack.c.h.b16 %v1411
  %v1505 = vunpack.c.l.b16 %v1412
  %v1506 = vunpack.c.h.b16 %v1412
  %v1507 = vunpack.c.l.b16 %v1413
  %v1508 = vunpack.c.h.b16 %v1413
  %v1509 = vunpack.c.l.b16 %v1414
  %v1510 = vunpack.c.h.b16 %v1414
  %v1511 = vpack.c.b16 %v1447, %v1447
  %v1512 = vpack.c.b16 %v1448, %v1448
  %v1513 = vpack.c.b16 %v1449, %v1449
  %v1514 = vpack.c.b16 %v1450, %v1450
  %v1515 = vpack.c.b16 %v1451, %v1451
  %v1516 = vpack.c.b16 %v1452, %v1452
  %v1517 = vpack.c.b16 %v1453, %v1453
  %v1518 = vpack.c.b16 %v1454, %v1454
  %v1519 = vpack.c.b16 %v1455, %v1455
  %v1520 = vpack.c.b16 %v1456, %v1456
  %v1521 = vpack.c.b16 %v1457, %v1457
  %v1522 = vpack.c.b16 %v1458, %v1458
  %v1523 = vpack.c.b16 %v1459, %v1459
  %v1524 = vpack.c.b16 %v1460, %v1460
  %v1525 = vpack.c.b16 %v1461, %v1461
  %v1526 = vpack.c.b16 %v1462, %v1462
  %v1527 = vpack.c.b16 %v1463, %v1463
  %v1528 = vpack.c.b16 %v1464, %v1464
  %v1529 = vpack.c.b16 %v1465, %v1465
  %v1530 = vpack.c.b16 %v1466, %v1466
  %v1531 = vpack.c.b16 %v1467, %v1467
  %v1532 = vpack.c.b16 %v1468, %v1468
  %v1533 = vpack.c.b16 %v1469, %v1469
  %v1534 = vpack.c.b16 %v1470, %v1470
  %v1535 = vpack.c.b16 %v1471, %v1471
  %v1536 = vpack.c.b16 %v1472, %v1472
  %v1537 = vpack.c.b16 %v1473, %v1473
  %v1538 = vpack.c.b16 %v1474, %v1474
  %v1539 = vpack.c.b16 %v1475, %v1475
  %v1540 = vpack.c.b16 %v1476, %v1476
  %v1541 = vpack.c.b16 %v1477, %v1477
  %v1542 = vpack.c.b16 %v1478, %v1478
  %v1543 = vpack.c.b16 %v1479, %v1479
  %v1544 = vpack.c.b16 %v1480, %v1480
  %v1545 = vpack.c.b16 %v1481, %v1481
  %v1546 = vpack.c.b16 %v1482, %v1482
  %v1547 = vpack.c.b16 %v1483, %v1483
  %v1548 = vpack.c.b16 %v1484, %v1484
  %v1549 = vpack.c.b16 %v1485, %v1485
  %v1550 = vpack.c.b16 %v1486, %v1486
  %v1551 = vpack.c.b16 %v1487, %v1487
  %v1552 = vpack.c.b16 %v1488, %v1488
  %v1553 = vpack.c.b16 %v1489, %v1489
  %v1554 = vpack.c.b16 %v1490, %v1490
  %v1555 = vpack.c.b16 %v1491, %v1491
  %v1556 = vpack.c.b16 %v1492, %v1492
  %v1557 = vpack.c.b16 %v1493, %v1493
  %v1558 = vpack.c.b16 %v1494, %v1494
  %v1559 = vpack.c.b16 %v1495, %v1495
  %v1560 = vpack.c.b16 %v1496, %v1496
  %v1561 = vpack.c.b16 %v1497, %v1497
  %v1562 = vpack.c.b16 %v1498, %v1498
  %v1563 = vpack.c.b16 %v1499, %v1499
  %v1564 = vpack.c.b16 %v1500, %v1500
  %v1565 = vpack.c.b16 %v1501, %v1501
  %v1566 = vpack.c.b16 %v1502, %v1502
  %v1567 = vpack.c.b16 %v1503, %v1503
  %v1568 = vpack.c.b16 %v1504, %v1504
  %v1569 = vpack.c.b16 %v1505, %v1505
  %v1570 = vpack.c.b16 %v1506, %v1506
  %v1571 = vpack.c.b16 %v1507, %v1507
  %v1572 = vpack.c.b16 %v1508, %v1508
  %v1573 = vpack.c.b16 %v1509, %v1509
  %v1574 = vpack.c.b16 %v1510, %v1510
  %1639 = vst [vmem:[%s4] sm:$0xf] %v1511
  %1640 = vst [vmem:[%s4 + $0x4] sm:$0xf] %v1512
  %1641 = vst [vmem:[%s4 + $0x8] sm:$0xf] %v1513
  %1642 = vst [vmem:[%s4 + $0xc] sm:$0xf] %v1514
  %1643 = vst [vmem:[%s4 + $0x10] sm:$0xf] %v1515
  %1644 = vst [vmem:[%s4 + $0x14] sm:$0xf] %v1516
  %1645 = vst [vmem:[%s4 + $0x18] sm:$0xf] %v1517
  %1646 = vst [vmem:[%s4 + $0x1c] sm:$0xf] %v1518
  %1647 = vst [vmem:[%s4 + $0x20] sm:$0xf] %v1519
  %1648 = vst [vmem:[%s4 + $0x24] sm:$0xf] %v1520
  %1649 = vst [vmem:[%s4 + $0x28] sm:$0xf] %v1521
  %1650 = vst [vmem:[%s4 + $0x2c] sm:$0xf] %v1522
  %1651 = vst [vmem:[%s4 + $0x30] sm:$0xf] %v1523
  %1652 = vst [vmem:[%s4 + $0x34] sm:$0xf] %v1524
  %1653 = vst [vmem:[%s4 + $0x38] sm:$0xf] %v1525
  %1654 = vst [vmem:[%s4 + $0x3c] sm:$0xf] %v1526
  %1655 = vst [vmem:[%s4 + $0x40] sm:$0xf] %v1527
  %1656 = vst [vmem:[%s4 + $0x44] sm:$0xf] %v1528
  %1657 = vst [vmem:[%s4 + $0x48] sm:$0xf] %v1529
  %1658 = vst [vmem:[%s4 + $0x4c] sm:$0xf] %v1530
  %1659 = vst [vmem:[%s4 + $0x50] sm:$0xf] %v1531
  %1660 = vst [vmem:[%s4 + $0x54] sm:$0xf] %v1532
  %1661 = vst [vmem:[%s4 + $0x58] sm:$0xf] %v1533
  %1662 = vst [vmem:[%s4 + $0x5c] sm:$0xf] %v1534
  %1663 = vst [vmem:[%s4 + $0x60] sm:$0xf] %v1535
  %1664 = vst [vmem:[%s4 + $0x64] sm:$0xf] %v1536
  %1665 = vst [vmem:[%s4 + $0x68] sm:$0xf] %v1537
  %1666 = vst [vmem:[%s4 + $0x6c] sm:$0xf] %v1538
  %1667 = vst [vmem:[%s4 + $0x70] sm:$0xf] %v1539
  %1668 = vst [vmem:[%s4 + $0x74] sm:$0xf] %v1540
  %1669 = vst [vmem:[%s4 + $0x78] sm:$0xf] %v1541
  %1670 = vst [vmem:[%s4 + $0x7c] sm:$0xf] %v1542
  %1671 = vst [vmem:[%s4 + $0x80] sm:$0xf] %v1543
  %1672 = vst [vmem:[%s4 + $0x84] sm:$0xf] %v1544
  %1673 = vst [vmem:[%s4 + $0x88] sm:$0xf] %v1545
  %1674 = vst [vmem:[%s4 + $0x8c] sm:$0xf] %v1546
  %1675 = vst [vmem:[%s4 + $0x90] sm:$0xf] %v1547
  %1676 = vst [vmem:[%s4 + $0x94] sm:$0xf] %v1548
  %1677 = vst [vmem:[%s4 + $0x98] sm:$0xf] %v1549
  %1678 = vst [vmem:[%s4 + $0x9c] sm:$0xf] %v1550
  %1679 = vst [vmem:[%s4 + $0xa0] sm:$0xf] %v1551
  %1680 = vst [vmem:[%s4 + $0xa4] sm:$0xf] %v1552
  %1681 = vst [vmem:[%s4 + $0xa8] sm:$0xf] %v1553
  %1682 = vst [vmem:[%s4 + $0xac] sm:$0xf] %v1554
  %1683 = vst [vmem:[%s4 + $0xb0] sm:$0xf] %v1555
  %1684 = vst [vmem:[%s4 + $0xb4] sm:$0xf] %v1556
  %1685 = vst [vmem:[%s4 + $0xb8] sm:$0xf] %v1557
  %1686 = vst [vmem:[%s4 + $0xbc] sm:$0xf] %v1558
  %1687 = vst [vmem:[%s4 + $0xc0] sm:$0xf] %v1559
  %1688 = vst [vmem:[%s4 + $0xc4] sm:$0xf] %v1560
  %1689 = vst [vmem:[%s4 + $0xc8] sm:$0xf] %v1561
  %1690 = vst [vmem:[%s4 + $0xcc] sm:$0xf] %v1562
  %1691 = vst [vmem:[%s4 + $0xd0] sm:$0xf] %v1563
  %1692 = vst [vmem:[%s4 + $0xd4] sm:$0xf] %v1564
  %1693 = vst [vmem:[%s4 + $0xd8] sm:$0xf] %v1565
  %1694 = vst [vmem:[%s4 + $0xdc] sm:$0xf] %v1566
  %1695 = vst [vmem:[%s4 + $0xe0] sm:$0xf] %v1567
  %1696 = vst [vmem:[%s4 + $0xe4] sm:$0xf] %v1568
  %1697 = vst [vmem:[%s4 + $0xe8] sm:$0xf] %v1569
  %1698 = vst [vmem:[%s4 + $0xec] sm:$0xf] %v1570
  %1699 = vst [vmem:[%s4 + $0xf0] sm:$0xf] %v1571
  %1700 = vst [vmem:[%s4 + $0xf4] sm:$0xf] %v1572
  %1701 = vst [vmem:[%s4 + $0xf8] sm:$0xf] %v1573
  %1702 = vst [vmem:[%s4 + $0xfc] sm:$0xf] %v1574
  %v1703 = vadd.f32 %v1129, %v1132
  %v1704 = vadd.f32 %v1703, %v1137
  %v1705 = vadd.f32 %v1704, %v1140
  %v1706 = vadd.f32 %v1705, %v1145
  %v1707 = vadd.f32 %v1706, %v1148
  %v1708 = vadd.f32 %v1707, %v1153
  %v1709 = vadd.f32 %v1708, %v1156
  %v1710 = vadd.f32 %v1709, %v1161
  %v1711 = vadd.f32 %v1710, %v1164
  %v1712 = vadd.f32 %v1711, %v1169
  %v1713 = vadd.f32 %v1712, %v1172
  %v1714 = vadd.f32 %v1713, %v1177
  %v1715 = vadd.f32 %v1714, %v1180
  %v1716 = vadd.f32 %v1715, %v1185
  %v1717 = vadd.f32 %v1716, %v1188
  %v1718 = vadd.f32 %v1717, %v1193
  %v1719 = vadd.f32 %v1718, %v1196
  %v1720 = vadd.f32 %v1719, %v1201
  %v1721 = vadd.f32 %v1720, %v1204
  %v1722 = vadd.f32 %v1721, %v1209
  %v1723 = vadd.f32 %v1722, %v1212
  %v1724 = vadd.f32 %v1723, %v1217
  %v1725 = vadd.f32 %v1724, %v1220
  %v1726 = vadd.f32 %v1725, %v1225
  %v1727 = vadd.f32 %v1726, %v1228
  %v1728 = vadd.f32 %v1727, %v1233
  %v1729 = vadd.f32 %v1728, %v1236
  %v1730 = vadd.f32 %v1729, %v1241
  %v1731 = vadd.f32 %v1730, %v1244
  %v1732 = vadd.f32 %v1731, %v1249
  %v1733 = vadd.f32 %v1732, %v1252
  %v1734 = vadd.f32 %v1733, %v1257
  %v1735 = vadd.f32 %v1734, %v1260
  %v1736 = vadd.f32 %v1735, %v1265
  %v1737 = vadd.f32 %v1736, %v1268
  %v1738 = vadd.f32 %v1737, %v1273
  %v1739 = vadd.f32 %v1738, %v1276
  %v1740 = vadd.f32 %v1739, %v1281
  %v1741 = vadd.f32 %v1740, %v1284
  %v1742 = vadd.f32 %v1741, %v1289
  %v1743 = vadd.f32 %v1742, %v1292
  %v1744 = vadd.f32 %v1743, %v1297
  %v1745 = vadd.f32 %v1744, %v1300
  %v1746 = vadd.f32 %v1745, %v1305
  %v1747 = vadd.f32 %v1746, %v1308
  %v1748 = vadd.f32 %v1747, %v1313
  %v1749 = vadd.f32 %v1748, %v1316
  %v1750 = vadd.f32 %v1749, %v1321
  %v1751 = vadd.f32 %v1750, %v1324
  %v1752 = vadd.f32 %v1751, %v1329
  %v1753 = vadd.f32 %v1752, %v1332
  %v1754 = vadd.f32 %v1753, %v1337
  %v1755 = vadd.f32 %v1754, %v1340
  %v1756 = vadd.f32 %v1755, %v1345
  %v1757 = vadd.f32 %v1756, %v1348
  %v1758 = vadd.f32 %v1757, %v1353
  %v1759 = vadd.f32 %v1758, %v1356
  %v1760 = vadd.f32 %v1759, %v1361
  %v1761 = vadd.f32 %v1760, %v1364
  %v1762 = vadd.f32 %v1761, %v1369
  %v1763 = vadd.f32 %v1762, %v1372
  %v1764 = vadd.f32 %v1763, %v1377
  %v1765 = vadd.f32 %v1764, %v1380
  %v1766 = vrot.slane %v1765, 4
  %v1767 = vadd.f32 %v1765, %v1766
  %v1768 = vrot.slane %v1767, 2
  %v1769 = vadd.f32 %v1767, %v1768
  %v1770 = vrot.slane %v1769, 1
  %v1771 = vadd.f32 %v1769, %v1770
  %1772 = vst [vmem:[%s5] sm:$0x1] %v1771
  %v1773 = vmul.f32 %v1129, %v1129
  %v1774 = vmul.f32 %v1132, %v1132
  %v1775 = vmul.f32 %v1137, %v1137
  %v1776 = vmul.f32 %v1140, %v1140
  %v1777 = vmul.f32 %v1145, %v1145
  %v1778 = vmul.f32 %v1148, %v1148
  %v1779 = vmul.f32 %v1153, %v1153
  %v1780 = vmul.f32 %v1156, %v1156
  %v1781 = vmul.f32 %v1161, %v1161
  %v1782 = vmul.f32 %v1164, %v1164
  %v1783 = vmul.f32 %v1169, %v1169
  %v1784 = vmul.f32 %v1172, %v1172
  %v1785 = vmul.f32 %v1177, %v1177
  %v1786 = vmul.f32 %v1180, %v1180
  %v1787 = vmul.f32 %v1185, %v1185
  %v1788 = vmul.f32 %v1188, %v1188
  %v1789 = vmul.f32 %v1193, %v1193
  %v1790 = vmul.f32 %v1196, %v1196
  %v1791 = vmul.f32 %v1201, %v1201
  %v1792 = vmul.f32 %v1204, %v1204
  %v1793 = vmul.f32 %v1209, %v1209
  %v1794 = vmul.f32 %v1212, %v1212
  %v1795 = vmul.f32 %v1217, %v1217
  %v1796 = vmul.f32 %v1220, %v1220
  %v1797 = vmul.f32 %v1225, %v1225
  %v1798 = vmul.f32 %v1228, %v1228
  %v1799 = vmul.f32 %v1233, %v1233
  %v1800 = vmul.f32 %v1236, %v1236
  %v1801 = vmul.f32 %v1241, %v1241
  %v1802 = vmul.f32 %v1244, %v1244
  %v1803 = vmul.f32 %v1249, %v1249
  %v1804 = vmul.f32 %v1252, %v1252
  %v1805 = vmul.f32 %v1257, %v1257
  %v1806 = vmul.f32 %v1260, %v1260
  %v1807 = vmul.f32 %v1265, %v1265
  %v1808 = vmul.f32 %v1268, %v1268
  %v1809 = vmul.f32 %v1273, %v1273
  %v1810 = vmul.f32 %v1276, %v1276
  %v1811 = vmul.f32 %v1281, %v1281
  %v1812 = vmul.f32 %v1284, %v1284
  %v1813 = vmul.f32 %v1289, %v1289
  %v1814 = vmul.f32 %v1292, %v1292
  %v1815 = vmul.f32 %v1297, %v1297
  %v1816 = vmul.f32 %v1300, %v1300
  %v1817 = vmul.f32 %v1305, %v1305
  %v1818 = vmul.f32 %v1308, %v1308
  %v1819 = vmul.f32 %v1313, %v1313
  %v1820 = vmul.f32 %v1316, %v1316
  %v1821 = vmul.f32 %v1321, %v1321
  %v1822 = vmul.f32 %v1324, %v1324
  %v1823 = vmul.f32 %v1329, %v1329
  %v1824 = vmul.f32 %v1332, %v1332
  %v1825 = vmul.f32 %v1337, %v1337
  %v1826 = vmul.f32 %v1340, %v1340
  %v1827 = vmul.f32 %v1345, %v1345
  %v1828 = vmul.f32 %v1348, %v1348
  %v1829 = vmul.f32 %v1353, %v1353
  %v1830 = vmul.f32 %v1356, %v1356
  %v1831 = vmul.f32 %v1361, %v1361
  %v1832 = vmul.f32 %v1364, %v1364
  %v1833 = vmul.f32 %v1369, %v1369
  %v1834 = vmul.f32 %v1372, %v1372
  %v1835 = vmul.f32 %v1377, %v1377
  %v1836 = vmul.f32 %v1380, %v1380
  %v1837 = vadd.f32 %v1773, %v1774
  %v1838 = vadd.f32 %v1837, %v1775
  %v1839 = vadd.f32 %v1838, %v1776
  %v1840 = vadd.f32 %v1839, %v1777
  %v1841 = vadd.f32 %v1840, %v1778
  %v1842 = vadd.f32 %v1841, %v1779
  %v1843 = vadd.f32 %v1842, %v1780
  %v1844 = vadd.f32 %v1843, %v1781
  %v1845 = vadd.f32 %v1844, %v1782
  %v1846 = vadd.f32 %v1845, %v1783
  %v1847 = vadd.f32 %v1846, %v1784
  %v1848 = vadd.f32 %v1847, %v1785
  %v1849 = vadd.f32 %v1848, %v1786
  %v1850 = vadd.f32 %v1849, %v1787
  %v1851 = vadd.f32 %v1850, %v1788
  %v1852 = vadd.f32 %v1851, %v1789
  %v1853 = vadd.f32 %v1852, %v1790
  %v1854 = vadd.f32 %v1853, %v1791
  %v1855 = vadd.f32 %v1854, %v1792
  %v1856 = vadd.f32 %v1855, %v1793
  %v1857 = vadd.f32 %v1856, %v1794
  %v1858 = vadd.f32 %v1857, %v1795
  %v1859 = vadd.f32 %v1858, %v1796
  %v1860 = vadd.f32 %v1859, %v1797
  %v1861 = vadd.f32 %v1860, %v1798
  %v1862 = vadd.f32 %v1861, %v1799
  %v1863 = vadd.f32 %v1862, %v1800
  %v1864 = vadd.f32 %v1863, %v1801
  %v1865 = vadd.f32 %v1864, %v1802
  %v1866 = vadd.f32 %v1865, %v1803
  %v1867 = vadd.f32 %v1866, %v1804
  %v1868 = vadd.f32 %v1867, %v1805
  %v1869 = vadd.f32 %v1868, %v1806
  %v1870 = vadd.f32 %v1869, %v1807
  %v1871 = vadd.f32 %v1870, %v1808
  %v1872 = vadd.f32 %v1871, %v1809
  %v1873 = vadd.f32 %v1872, %v1810
  %v1874 = vadd.f32 %v1873, %v1811
  %v1875 = vadd.f32 %v1874, %v1812
  %v1876 = vadd.f32 %v1875, %v1813
  %v1877 = vadd.f32 %v1876, %v1814
  %v1878 = vadd.f32 %v1877, %v1815
  %v1879 = vadd.f32 %v1878, %v1816
  %v1880 = vadd.f32 %v1879, %v1817
  %v1881 = vadd.f32 %v1880, %v1818
  %v1882 = vadd.f32 %v1881, %v1819
  %v1883 = vadd.f32 %v1882, %v1820
  %v1884 = vadd.f32 %v1883, %v1821
  %v1885 = vadd.f32 %v1884, %v1822
  %v1886 = vadd.f32 %v1885, %v1823
  %v1887 = vadd.f32 %v1886, %v1824
  %v1888 = vadd.f32 %v1887, %v1825
  %v1889 = vadd.f32 %v1888, %v1826
  %v1890 = vadd.f32 %v1889, %v1827
  %v1891 = vadd.f32 %v1890, %v1828
  %v1892 = vadd.f32 %v1891, %v1829
  %v1893 = vadd.f32 %v1892, %v1830
  %v1894 = vadd.f32 %v1893, %v1831
  %v1895 = vadd.f32 %v1894, %v1832
  %v1896 = vadd.f32 %v1895, %v1833
  %v1897 = vadd.f32 %v1896, %v1834
  %v1898 = vadd.f32 %v1897, %v1835
  %v1899 = vadd.f32 %v1898, %v1836
  %v1900 = vrot.slane %v1899, 4
  %v1901 = vadd.f32 %v1899, %v1900
  %v1902 = vrot.slane %v1901, 2
  %v1903 = vadd.f32 %v1901, %v1902
  %v1904 = vrot.slane %v1903, 1
  %v1905 = vadd.f32 %v1903, %v1904
  %1906 = vst [vmem:[%s6] sm:$0x1] %v1905
  // Predicated region
  $region18: #{bottleneck_block.4} parent=0 // pred_check
    _
  $region19: #{bottleneck_block.4} parent=0 // pred_check_branch
    %1908 = sbr.rel (0) target = $region21
  $region20: #{bottleneck_block.4} parent=0 // pred_region
    _
  $region21: #{bottleneck_block.4} parent=0 // pred_fallthru
    _
  // Predicated region
  $region22: #{bottleneck_block.4} parent=0 // pred_check
    _
  $region23: #{bottleneck_block.4} parent=0 // pred_check_branch
    %1910 = sbr.rel (0) target = $region25
  $region24: #{bottleneck_block.4} parent=0 // pred_region
    _
  $region25: #{bottleneck_block.4} parent=0 // pred_fallthru
    _
  // Predicated region
  $region26: #{bottleneck_block.4} parent=0 // pred_check
    _
  $region27: #{bottleneck_block.4} parent=0 // pred_check_branch
    %1912 = sbr.rel (0) target = $region29
  $region28: #{bottleneck_block.4} parent=0 // pred_region
    _
  $region29: #{bottleneck_block.4} parent=0 // pred_fallthru
    _
  // Predicated region
  $region30: #{bottleneck_block.4} parent=0 // pred_check
    _
  $region31: #{bottleneck_block.4} parent=0 // pred_check_branch
    %1914 = sbr.rel (0) target = $region33
  $region32: #{bottleneck_block.4} parent=0 // pred_region
    _
  $region33: #{bottleneck_block.4} parent=0 // pred_fallthru
    _
  // Predicated region
  $region34: #{bottleneck_block.4} parent=0 // pred_check
    _
  $region35: #{bottleneck_block.4} parent=0 // pred_check_branch
    %1916 = sbr.rel (0) target = $region37
  $region36: #{bottleneck_block.4} parent=0 // pred_region
    _
  $region37: #{bottleneck_block.4} parent=0 // pred_fallthru
    _
  // Predicated region
  $region38: #{bottleneck_block.4} parent=0 // pred_check
    _
  $region39: #{bottleneck_block.4} parent=0 // pred_check_branch
    %1918 = sbr.rel (0) target = $region41
  $region40: #{bottleneck_block.4} parent=0 // pred_region
    _
  $region41: #{bottleneck_block.4} parent=0 // pred_fallthru
    _

// kernel: bottleneck_block.5
$region0: #{bottleneck_block.5}
  #allocation0 [shape = 'u32[]', space=smem, size = 0x4, offset = 0x4, fixed_abs, tag = 'smem constant byte address 0x4 - core index']
  #allocation1 [shape = 'u32[144,128]{1,0:T(1,128)}', space=vmem, size = 0x12000, scoped, tag = 'internal scratch']
  %s0 = inlined_call_operand.vmem [shape: bf16[2,326,128], index: 0, kind: input, shape index: {}]
  %s1 = inlined_call_operand.vmem [shape: f32[1,128], index: 1, kind: input, shape index: {}]
  %s2 = inlined_call_operand.vmem [shape: f32[1,128], index: 2, kind: input, shape index: {}]
  %s3 = inlined_call_operand.vmem [shape: f32[326,1], index: 3, kind: input, shape index: {}]
  %s4 = inlined_call_operand.vmem [shape: bf16[9,128,128], index: 4, kind: input, shape index: {}]
  %s5 = inlined_call_operand.vmem [shape: f32[2,288,128], index: 5, kind: output, shape index: {}]
  %s6 = sld [smem:[#allocation0]]
  $region53: #{bottleneck_block.5} parent=0
    _
  %s8 = ssub.s32 1, %s6
  %s9 = scalar_select 0, %s8, %s6
  loop: start=0, step=1, limit=4
  $region2: #{bottleneck_block.5} parent=0 // loop_pre_header
    _
  $region3: #{bottleneck_block.5} parent=0 // loop_header
    %s11 = sphi 0, %s15
    %p12 = scmp.ge.s32.totalorder %s11, 4
    %s21 = sphi 0, %s23
    %s24 = sphi 0, %s21
    %s25 = sphi 0, %s24
    %s41 = sphi 0, %s25
    %s45 = sphi 0, %s45
    %s47 = sphi 0, %s45
    %s48 = sphi 0, %s47
    %s62 = sphi 0, %s48
    %s66 = sphi 0, %s66
    %s68 = sphi 0, %s66
    %s69 = sphi 0, %s68
    %s83 = sphi 0, %s69
    %s87 = sphi 0, %s87
    %s89 = sphi 0, %s87
    %s90 = sphi 0, %s89
    %s104 = sphi 0, %s90
    %s108 = sphi 0, %s108
    %s110 = sphi 0, %s108
    %s111 = sphi 0, %s110
    %s125 = sphi 0, %s111
    %s131 = sphi 0, %s133
    %s134 = sphi 0, %s131
    %s135 = sphi 0, %s134
    %s151 = sphi 0, %s135
  $region4: #{bottleneck_block.5} parent=0 // loop_header_branch
    %14 = sbr.rel (%p12) target = $region8
  $region5: #{bottleneck_block.5} parent=0 // loop_body
    %s16 = ssub.s32 %s11, 1
    %s17 = ssub.s32 %s11, 2
    %s18 = sadd.s32 %s11, 1
    %s19 = ssub.s32 %s11, %s18
    %p20 = scmp.eq.s32.totalorder %s19, 0
    %s22 = sadd.s32 %s21, 1
    %s23 = scalar_select %p20, %s21, %s22
    %p26 = pneg %p20
    %p27 = scmp.eq.s32.totalorder %s11, 1
    %p28 = por %p26, %p27
    %p29 = scmp.ne.s32.totalorder %s21, %s24
    %p30 = scmp.eq.s32.totalorder %s11, 0
    %p31 = por %p29, %p30
    %p32 = scmp.ne.s32.totalorder %s21, %s24
    %p33 = scmp.eq.s32.totalorder %s16, 1
    %p34 = por %p32, %p33
    %p35 = scmp.ne.s32.totalorder %s24, %s25
    %p36 = scmp.eq.s32.totalorder %s16, 0
    %p37 = por %p35, %p36
    %p38 = scmp.ne.s32.totalorder %s24, %s25
    %p39 = scmp.eq.s32.totalorder %s17, 1
    %p40 = por %p38, %p39
    %p42 = scmp.ne.s32.totalorder %s25, %s41
    %p43 = scmp.eq.s32.totalorder %s17, 0
    %p44 = por %p42, %p43
    %s46 = sadd.s32 %s45, 1
    %p49 = scmp.eq.s32.totalorder %s11, 1
    %p50 = scmp.ne.s32.totalorder %s45, %s47
    %p51 = scmp.eq.s32.totalorder %s11, 0
    %p52 = por %p50, %p51
    %p53 = scmp.ne.s32.totalorder %s45, %s47
    %p54 = scmp.eq.s32.totalorder %s16, 1
    %p55 = por %p53, %p54
    %p56 = scmp.ne.s32.totalorder %s47, %s48
    %p57 = scmp.eq.s32.totalorder %s16, 0
    %p58 = por %p56, %p57
    %p59 = scmp.ne.s32.totalorder %s47, %s48
    %p60 = scmp.eq.s32.totalorder %s17, 1
    %p61 = por %p59, %p60
    %p63 = scmp.ne.s32.totalorder %s48, %s62
    %p64 = scmp.eq.s32.totalorder %s17, 0
    %p65 = por %p63, %p64
    %s67 = sadd.s32 %s66, 1
    %p70 = scmp.eq.s32.totalorder %s11, 1
    %p71 = scmp.ne.s32.totalorder %s66, %s68
    %p72 = scmp.eq.s32.totalorder %s11, 0
    %p73 = por %p71, %p72
    %p74 = scmp.ne.s32.totalorder %s66, %s68
    %p75 = scmp.eq.s32.totalorder %s16, 1
    %p76 = por %p74, %p75
    %p77 = scmp.ne.s32.totalorder %s68, %s69
    %p78 = scmp.eq.s32.totalorder %s16, 0
    %p79 = por %p77, %p78
    %p80 = scmp.ne.s32.totalorder %s68, %s69
    %p81 = scmp.eq.s32.totalorder %s17, 1
    %p82 = por %p80, %p81
    %p84 = scmp.ne.s32.totalorder %s69, %s83
    %p85 = scmp.eq.s32.totalorder %s17, 0
    %p86 = por %p84, %p85
    %s88 = sadd.s32 %s87, 1
    %p91 = scmp.eq.s32.totalorder %s11, 1
    %p92 = scmp.ne.s32.totalorder %s87, %s89
    %p93 = scmp.eq.s32.totalorder %s11, 0
    %p94 = por %p92, %p93
    %p95 = scmp.ne.s32.totalorder %s87, %s89
    %p96 = scmp.eq.s32.totalorder %s16, 1
    %p97 = por %p95, %p96
    %p98 = scmp.ne.s32.totalorder %s89, %s90
    %p99 = scmp.eq.s32.totalorder %s16, 0
    %p100 = por %p98, %p99
    %p101 = scmp.ne.s32.totalorder %s89, %s90
    %p102 = scmp.eq.s32.totalorder %s17, 1
    %p103 = por %p101, %p102
    %p105 = scmp.ne.s32.totalorder %s90, %s104
    %p106 = scmp.eq.s32.totalorder %s17, 0
    %p107 = por %p105, %p106
    %s109 = sadd.s32 %s108, 1
    %p112 = scmp.eq.s32.totalorder %s11, 1
    %p113 = scmp.ne.s32.totalorder %s108, %s110
    %p114 = scmp.eq.s32.totalorder %s11, 0
    %p115 = por %p113, %p114
    %p116 = scmp.ne.s32.totalorder %s108, %s110
    %p117 = scmp.eq.s32.totalorder %s16, 1
    %p118 = por %p116, %p117
    %p119 = scmp.ne.s32.totalorder %s110, %s111
    %p120 = scmp.eq.s32.totalorder %s16, 0
    %p121 = por %p119, %p120
    %p122 = scmp.ne.s32.totalorder %s110, %s111
    %p123 = scmp.eq.s32.totalorder %s17, 1
    %p124 = por %p122, %p123
    %p126 = scmp.ne.s32.totalorder %s111, %s125
    %p127 = scmp.eq.s32.totalorder %s17, 0
    %p128 = por %p126, %p127
    %s129 = ssub.s32 %s11, %s18
    %p130 = scmp.eq.s32.totalorder %s129, 0
    %s132 = sadd.s32 %s131, 1
    %s133 = scalar_select %p130, %s131, %s132
    %p136 = pneg %p130
    %p137 = scmp.eq.s32.totalorder %s11, 1
    %p138 = por %p136, %p137
    %p139 = scmp.ne.s32.totalorder %s131, %s134
    %p140 = scmp.eq.s32.totalorder %s11, 0
    %p141 = por %p139, %p140
    %p142 = scmp.ne.s32.totalorder %s131, %s134
    %p143 = scmp.eq.s32.totalorder %s16, 1
    %p144 = por %p142, %p143
    %p145 = scmp.ne.s32.totalorder %s134, %s135
    %p146 = scmp.eq.s32.totalorder %s16, 0
    %p147 = por %p145, %p146
    %p148 = scmp.ne.s32.totalorder %s134, %s135
    %p149 = scmp.eq.s32.totalorder %s17, 1
    %p150 = por %p148, %p149
    %p152 = scmp.ne.s32.totalorder %s135, %s151
    %p153 = scmp.eq.s32.totalorder %s17, 0
    %p154 = por %p152, %p153
    %p155 = scmp.le.s32.totalorder 1, %s11
    %p156 = scmp.lt.s32.totalorder %s11, 3
    %p157 = pnand %p155, %p156
    %p158 = pneg %p157
    // Predicated region
    $region9: #{bottleneck_block.5} parent=5 // pred_check
      _
    $region10: #{bottleneck_block.5} parent=5 // pred_check_branch
      %160 = sbr.rel (%p157) target = $region12
    $region11: #{bottleneck_block.5} parent=5 // pred_region
      %s161 = ssub.s32 %s11, 1
      // Predicated region
      $region13: #{bottleneck_block.5} parent=11 // pred_check
        %p162 = pneg %p58
      $region14: #{bottleneck_block.5} parent=11 // pred_check_branch
        %164 = sbr.rel (%p162) target = $region16
      $region15: #{bottleneck_block.5} parent=11 // pred_region
        _
      $region16: #{bottleneck_block.5} parent=11 // pred_fallthru
        _
      // Predicated region
      $region17: #{bottleneck_block.5} parent=11 // pred_check
        %p165 = pneg %p79
      $region18: #{bottleneck_block.5} parent=11 // pred_check_branch
        %167 = sbr.rel (%p165) target = $region20
      $region19: #{bottleneck_block.5} parent=11 // pred_region
        _
      $region20: #{bottleneck_block.5} parent=11 // pred_fallthru
        _
      // Predicated region
      $region21: #{bottleneck_block.5} parent=11 // pred_check
        %p168 = pneg %p100
      $region22: #{bottleneck_block.5} parent=11 // pred_check_branch
        %170 = sbr.rel (%p168) target = $region24
      $region23: #{bottleneck_block.5} parent=11 // pred_region
        _
      $region24: #{bottleneck_block.5} parent=11 // pred_fallthru
        _
      // Predicated region
      $region25: #{bottleneck_block.5} parent=11 // pred_check
        %p171 = pneg %p121
      $region26: #{bottleneck_block.5} parent=11 // pred_check_branch
        %173 = sbr.rel (%p171) target = $region28
      $region27: #{bottleneck_block.5} parent=11 // pred_region
        _
      $region28: #{bottleneck_block.5} parent=11 // pred_fallthru
        _
    $region12: #{bottleneck_block.5} parent=5 // pred_fallthru
      _
    %p174 = scmp.lt.s32.totalorder %s11, 2
    // Predicated region
    $region29: #{bottleneck_block.5} parent=5 // pred_check
      %p175 = pneg %p174
    $region30: #{bottleneck_block.5} parent=5 // pred_check_branch
      %177 = sbr.rel (%p175) target = $region32
    $region31: #{bottleneck_block.5} parent=5 // pred_region
      // Predicated region
      $region33: #{bottleneck_block.5} parent=31 // pred_check
        %p178 = pneg %p31
      $region34: #{bottleneck_block.5} parent=31 // pred_check_branch
        %180 = sbr.rel (%p178) target = $region36
      $region35: #{bottleneck_block.5} parent=31 // pred_region
        %p181 = scmp.lt.s32.totalorder %s11, 1
        %s182 = scalar_select %p181, %s11, 1
        %s183 = smul.addr %s182, 41
        %s184 = smul.addr %s183, 4
        %s185 = scalar_lea.vmem %s0, %s184
      $region36: #{bottleneck_block.5} parent=31 // pred_fallthru
        _
    $region32: #{bottleneck_block.5} parent=5 // pred_fallthru
      _
    %p186 = scmp.le.s32.totalorder 1, %s11
    %p187 = scmp.lt.s32.totalorder %s11, 3
    %p188 = pnand %p186, %p187
    %p189 = pneg %p188
    // Predicated region
    $region37: #{bottleneck_block.5} parent=5 // pred_check
      _
    $region38: #{bottleneck_block.5} parent=5 // pred_check_branch
      %191 = sbr.rel (%p188) target = $region40
    $region39: #{bottleneck_block.5} parent=5 // pred_region
      %s192 = ssub.s32 %s11, 1
      %p193 = scmp.lt.s32.totalorder %s16, 1
      %s194 = scalar_select %p193, %s16, 1
      %s195 = smul.addr %s194, 41
      %s196 = smul.addr %s195, 4
      %s197 = scalar_lea.vmem %s0, %s196
      %p198 = pneg %p37
      %p199 = pneg %p34
      %p200 = pneg %p58
      %p201 = pneg %p55
      %p202 = pneg %p79
      %p203 = pneg %p76
      %p204 = pneg %p100
      %p205 = pneg %p97
      %p206 = pneg %p121
      %p207 = pneg %p118
      %p208 = pneg %p147
      %p209 = pneg %p144
      %p210 = scmp.lt.s32.totalorder %s16, 1
      %s211 = scalar_select %p210, %s16, 1
      %s212 = smul.addr %s211, 36
      %s213 = smul.addr %s212, 8
      %s214 = scalar_lea.vmem %s5, %s213
      %p215 = scmp.lt.s32.totalorder %s16, 1
      %s216 = scalar_select %p215, %s16, 1
      %s217 = smul.addr %s216, 41
      %s218 = smul.addr %s217, 4
      %s219 = scalar_lea.vmem %s0, %s218
      %p220 = scmp.lt.s32.totalorder %s16, 1
      %s221 = scalar_select %p220, %s16, 1
      %s222 = smul.addr %s221, 36
      %s223 = smul.addr %s222, 8
      %s224 = scalar_lea.vmem %s5, %s223
      %v226 = vld [vmem:[%s219] sm:$0xf]
      %v227 = vld [vmem:[%s219 + $0x4] sm:$0xf]
      %v228 = vld [vmem:[%s219 + $0x8] sm:$0xf]
      %v229 = vld [vmem:[%s219 + $0xc] sm:$0xf]
      %v230 = vld [vmem:[%s219 + $0x10] sm:$0xf]
      %v231 = vld [vmem:[%s219 + $0x14] sm:$0xf]
      %v232 = vld [vmem:[%s219 + $0x18] sm:$0xf]
      %v233 = vld [vmem:[%s219 + $0x1c] sm:$0xf]
      %v234 = vld [vmem:[%s219 + $0x20] sm:$0xf]
      %v235 = vld [vmem:[%s219 + $0x24] sm:$0xf]
      %v236 = vld [vmem:[%s219 + $0x28] sm:$0xf]
      %v237 = vld [vmem:[%s219 + $0x2c] sm:$0xf]
      %v238 = vld [vmem:[%s219 + $0x30] sm:$0xf]
      %v239 = vld [vmem:[%s219 + $0x34] sm:$0xf]
      %v240 = vld [vmem:[%s219 + $0x38] sm:$0xf]
      %v241 = vld [vmem:[%s219 + $0x3c] sm:$0xf]
      %v242 = vld [vmem:[%s219 + $0x40] sm:$0xf]
      %v243 = vld [vmem:[%s219 + $0x44] sm:$0xf]
      %v244 = vld [vmem:[%s219 + $0x48] sm:$0xf]
      %v245 = vld [vmem:[%s219 + $0x4c] sm:$0xf]
      %v246 = vld [vmem:[%s219 + $0x50] sm:$0xf]
      %v247 = vld [vmem:[%s219 + $0x54] sm:$0xf]
      %v248 = vld [vmem:[%s219 + $0x58] sm:$0xf]
      %v249 = vld [vmem:[%s219 + $0x5c] sm:$0xf]
      %v250 = vld [vmem:[%s219 + $0x60] sm:$0xf]
      %v251 = vld [vmem:[%s219 + $0x64] sm:$0xf]
      %v252 = vld [vmem:[%s219 + $0x68] sm:$0xf]
      %v253 = vld [vmem:[%s219 + $0x6c] sm:$0xf]
      %v254 = vld [vmem:[%s219 + $0x70] sm:$0xf]
      %v255 = vld [vmem:[%s219 + $0x74] sm:$0xf]
      %v256 = vld [vmem:[%s219 + $0x78] sm:$0xf]
      %v257 = vld [vmem:[%s219 + $0x7c] sm:$0xf]
      %v258 = vld [vmem:[%s219 + $0x80] sm:$0xf]
      %v259 = vld [vmem:[%s219 + $0x84] sm:$0xf]
      %v260 = vld [vmem:[%s219 + $0x88] sm:$0xf]
      %v261 = vld [vmem:[%s219 + $0x8c] sm:$0xf]
      %v262 = vld [vmem:[%s219 + $0x90] sm:$0xf]
      %v263 = vld [vmem:[%s219 + $0x94] sm:$0xf]
      %v264 = vld [vmem:[%s219 + $0x98] sm:$0xf]
      %v265 = vld [vmem:[%s219 + $0x9c] sm:$0xf]
      %v266 = vld [vmem:[%s219 + $0xa0] sm:$0x7]
      %v267 = vunpack.c.l.bf16 %v226
      %v268 = vunpack.c.l.bf16 %v227
      %v269 = vunpack.c.l.bf16 %v228
      %v270 = vunpack.c.l.bf16 %v229
      %v271 = vunpack.c.l.bf16 %v230
      %v272 = vunpack.c.l.bf16 %v231
      %v273 = vunpack.c.l.bf16 %v232
      %v274 = vunpack.c.l.bf16 %v233
      %v275 = vunpack.c.l.bf16 %v234
      %v276 = vunpack.c.l.bf16 %v235
      %v277 = vunpack.c.l.bf16 %v236
      %v278 = vunpack.c.l.bf16 %v237
      %v279 = vunpack.c.l.bf16 %v238
      %v280 = vunpack.c.l.bf16 %v239
      %v281 = vunpack.c.l.bf16 %v240
      %v282 = vunpack.c.l.bf16 %v241
      %v283 = vunpack.c.l.bf16 %v242
      %v284 = vunpack.c.l.bf16 %v243
      %v285 = vunpack.c.l.bf16 %v244
      %v286 = vunpack.c.l.bf16 %v245
      %v287 = vunpack.c.l.bf16 %v246
      %v288 = vunpack.c.l.bf16 %v247
      %v289 = vunpack.c.l.bf16 %v248
      %v290 = vunpack.c.l.bf16 %v249
      %v291 = vunpack.c.l.bf16 %v250
      %v292 = vunpack.c.l.bf16 %v251
      %v293 = vunpack.c.l.bf16 %v252
      %v294 = vunpack.c.l.bf16 %v253
      %v295 = vunpack.c.l.bf16 %v254
      %v296 = vunpack.c.l.bf16 %v255
      %v297 = vunpack.c.l.bf16 %v256
      %v298 = vunpack.c.l.bf16 %v257
      %v299 = vunpack.c.l.bf16 %v258
      %v300 = vunpack.c.l.bf16 %v259
      %v301 = vunpack.c.l.bf16 %v260
      %v302 = vunpack.c.l.bf16 %v261
      %v303 = vunpack.c.l.bf16 %v262
      %v304 = vunpack.c.l.bf16 %v263
      %v305 = vunpack.c.l.bf16 %v264
      %v306 = vunpack.c.l.bf16 %v265
      %v307 = vunpack.c.l.bf16 %v266
      %v308 = vld [vmem:[%s1] sm:$0x1]
      %v310 = vlaneseq
      %v311 = vshrl.u32 %v310, 7
      %v312 = vsub.s32 0, %v311
      %v313 = vrot.slane %v308, %v312
      %v315 = vmul.f32 %v267, %v313
      %v316 = vmul.f32 %v268, %v313
      %v317 = vmul.f32 %v269, %v313
      %v318 = vmul.f32 %v270, %v313
      %v319 = vmul.f32 %v271, %v313
      %v320 = vmul.f32 %v272, %v313
      %v321 = vmul.f32 %v273, %v313
      %v322 = vmul.f32 %v274, %v313
      %v323 = vmul.f32 %v275, %v313
      %v324 = vmul.f32 %v276, %v313
      %v325 = vmul.f32 %v277, %v313
      %v326 = vmul.f32 %v278, %v313
      %v327 = vmul.f32 %v279, %v313
      %v328 = vmul.f32 %v280, %v313
      %v329 = vmul.f32 %v281, %v313
      %v330 = vmul.f32 %v282, %v313
      %v331 = vmul.f32 %v283, %v313
      %v332 = vmul.f32 %v284, %v313
      %v333 = vmul.f32 %v285, %v313
      %v334 = vmul.f32 %v286, %v313
      %v335 = vmul.f32 %v287, %v313
      %v336 = vmul.f32 %v288, %v313
      %v337 = vmul.f32 %v289, %v313
      %v338 = vmul.f32 %v290, %v313
      %v339 = vmul.f32 %v291, %v313
      %v340 = vmul.f32 %v292, %v313
      %v341 = vmul.f32 %v293, %v313
      %v342 = vmul.f32 %v294, %v313
      %v343 = vmul.f32 %v295, %v313
      %v344 = vmul.f32 %v296, %v313
      %v345 = vmul.f32 %v297, %v313
      %v346 = vmul.f32 %v298, %v313
      %v347 = vmul.f32 %v299, %v313
      %v348 = vmul.f32 %v300, %v313
      %v349 = vmul.f32 %v301, %v313
      %v350 = vmul.f32 %v302, %v313
      %v351 = vmul.f32 %v303, %v313
      %v352 = vmul.f32 %v304, %v313
      %v353 = vmul.f32 %v305, %v313
      %v354 = vmul.f32 %v306, %v313
      %v355 = vmul.f32 %v307, %v313
      %v356 = vld [vmem:[%s2] sm:$0x1]
      %v358 = vlaneseq
      %v359 = vshrl.u32 %v358, 7
      %v360 = vsub.s32 0, %v359
      %v361 = vrot.slane %v356, %v360
      %v363 = vadd.f32 %v315, %v361
      %v364 = vadd.f32 %v316, %v361
      %v365 = vadd.f32 %v317, %v361
      %v366 = vadd.f32 %v318, %v361
      %v367 = vadd.f32 %v319, %v361
      %v368 = vadd.f32 %v320, %v361
      %v369 = vadd.f32 %v321, %v361
      %v370 = vadd.f32 %v322, %v361
      %v371 = vadd.f32 %v323, %v361
      %v372 = vadd.f32 %v324, %v361
      %v373 = vadd.f32 %v325, %v361
      %v374 = vadd.f32 %v326, %v361
      %v375 = vadd.f32 %v327, %v361
      %v376 = vadd.f32 %v328, %v361
      %v377 = vadd.f32 %v329, %v361
      %v378 = vadd.f32 %v330, %v361
      %v379 = vadd.f32 %v331, %v361
      %v380 = vadd.f32 %v332, %v361
      %v381 = vadd.f32 %v333, %v361
      %v382 = vadd.f32 %v334, %v361
      %v383 = vadd.f32 %v335, %v361
      %v384 = vadd.f32 %v336, %v361
      %v385 = vadd.f32 %v337, %v361
      %v386 = vadd.f32 %v338, %v361
      %v387 = vadd.f32 %v339, %v361
      %v388 = vadd.f32 %v340, %v361
      %v389 = vadd.f32 %v341, %v361
      %v390 = vadd.f32 %v342, %v361
      %v391 = vadd.f32 %v343, %v361
      %v392 = vadd.f32 %v344, %v361
      %v393 = vadd.f32 %v345, %v361
      %v394 = vadd.f32 %v346, %v361
      %v395 = vadd.f32 %v347, %v361
      %v396 = vadd.f32 %v348, %v361
      %v397 = vadd.f32 %v349, %v361
      %v398 = vadd.f32 %v350, %v361
      %v399 = vadd.f32 %v351, %v361
      %v400 = vadd.f32 %v352, %v361
      %v401 = vadd.f32 %v353, %v361
      %v402 = vadd.f32 %v354, %v361
      %v403 = vadd.f32 %v355, %v361
      %vm404 = vcmp.gt.f32.partialorder %v363, 0.0
      %vm405 = vcmp.gt.f32.partialorder %v364, 0.0
      %vm406 = vcmp.gt.f32.partialorder %v365, 0.0
      %vm407 = vcmp.gt.f32.partialorder %v366, 0.0
      %vm408 = vcmp.gt.f32.partialorder %v367, 0.0
      %vm409 = vcmp.gt.f32.partialorder %v368, 0.0
      %vm410 = vcmp.gt.f32.partialorder %v369, 0.0
      %vm411 = vcmp.gt.f32.partialorder %v370, 0.0
      %vm412 = vcmp.gt.f32.partialorder %v371, 0.0
      %vm413 = vcmp.gt.f32.partialorder %v372, 0.0
      %vm414 = vcmp.gt.f32.partialorder %v373, 0.0
      %vm415 = vcmp.gt.f32.partialorder %v374, 0.0
      %vm416 = vcmp.gt.f32.partialorder %v375, 0.0
      %vm417 = vcmp.gt.f32.partialorder %v376, 0.0
      %vm418 = vcmp.gt.f32.partialorder %v377, 0.0
      %vm419 = vcmp.gt.f32.partialorder %v378, 0.0
      %vm420 = vcmp.gt.f32.partialorder %v379, 0.0
      %vm421 = vcmp.gt.f32.partialorder %v380, 0.0
      %vm422 = vcmp.gt.f32.partialorder %v381, 0.0
      %vm423 = vcmp.gt.f32.partialorder %v382, 0.0
      %vm424 = vcmp.gt.f32.partialorder %v383, 0.0
      %vm425 = vcmp.gt.f32.partialorder %v384, 0.0
      %vm426 = vcmp.gt.f32.partialorder %v385, 0.0
      %vm427 = vcmp.gt.f32.partialorder %v386, 0.0
      %vm428 = vcmp.gt.f32.partialorder %v387, 0.0
      %vm429 = vcmp.gt.f32.partialorder %v388, 0.0
      %vm430 = vcmp.gt.f32.partialorder %v389, 0.0
      %vm431 = vcmp.gt.f32.partialorder %v390, 0.0
      %vm432 = vcmp.gt.f32.partialorder %v391, 0.0
      %vm433 = vcmp.gt.f32.partialorder %v392, 0.0
      %vm434 = vcmp.gt.f32.partialorder %v393, 0.0
      %vm435 = vcmp.gt.f32.partialorder %v394, 0.0
      %vm436 = vcmp.gt.f32.partialorder %v395, 0.0
      %vm437 = vcmp.gt.f32.partialorder %v396, 0.0
      %vm438 = vcmp.gt.f32.partialorder %v397, 0.0
      %vm439 = vcmp.gt.f32.partialorder %v398, 0.0
      %vm440 = vcmp.gt.f32.partialorder %v399, 0.0
      %vm441 = vcmp.gt.f32.partialorder %v400, 0.0
      %vm442 = vcmp.gt.f32.partialorder %v401, 0.0
      %vm443 = vcmp.gt.f32.partialorder %v402, 0.0
      %vm444 = vcmp.gt.f32.partialorder %v403, 0.0
      %v445 = vmin.f32 %v363, 0.0
      %v446 = vmin.f32 %v364, 0.0
      %v447 = vmin.f32 %v365, 0.0
      %v448 = vmin.f32 %v366, 0.0
      %v449 = vmin.f32 %v367, 0.0
      %v450 = vmin.f32 %v368, 0.0
      %v451 = vmin.f32 %v369, 0.0
      %v452 = vmin.f32 %v370, 0.0
      %v453 = vmin.f32 %v371, 0.0
      %v454 = vmin.f32 %v372, 0.0
      %v455 = vmin.f32 %v373, 0.0
      %v456 = vmin.f32 %v374, 0.0
      %v457 = vmin.f32 %v375, 0.0
      %v458 = vmin.f32 %v376, 0.0
      %v459 = vmin.f32 %v377, 0.0
      %v460 = vmin.f32 %v378, 0.0
      %v461 = vmin.f32 %v379, 0.0
      %v462 = vmin.f32 %v380, 0.0
      %v463 = vmin.f32 %v381, 0.0
      %v464 = vmin.f32 %v382, 0.0
      %v465 = vmin.f32 %v383, 0.0
      %v466 = vmin.f32 %v384, 0.0
      %v467 = vmin.f32 %v385, 0.0
      %v468 = vmin.f32 %v386, 0.0
      %v469 = vmin.f32 %v387, 0.0
      %v470 = vmin.f32 %v388, 0.0
      %v471 = vmin.f32 %v389, 0.0
      %v472 = vmin.f32 %v390, 0.0
      %v473 = vmin.f32 %v391, 0.0
      %v474 = vmin.f32 %v392, 0.0
      %v475 = vmin.f32 %v393, 0.0
      %v476 = vmin.f32 %v394, 0.0
      %v477 = vmin.f32 %v395, 0.0
      %v478 = vmin.f32 %v396, 0.0
      %v479 = vmin.f32 %v397, 0.0
      %v480 = vmin.f32 %v398, 0.0
      %v481 = vmin.f32 %v399, 0.0
      %v482 = vmin.f32 %v400, 0.0
      %v483 = vmin.f32 %v401, 0.0
      %v484 = vmin.f32 %v402, 0.0
      %v485 = vmin.f32 %v403, 0.0
      %v486 = vmul.f32 %v445, 1.442695
      %v487 = vpow.pop %v486
      %v488 = vmul.f32 %v446, 1.442695
      %v489 = vpow.pop %v488
      %v490 = vmul.f32 %v447, 1.442695
      %v491 = vpow.pop %v490
      %v492 = vmul.f32 %v448, 1.442695
      %v493 = vpow.pop %v492
      %v494 = vmul.f32 %v449, 1.442695
      %v495 = vpow.pop %v494
      %v496 = vmul.f32 %v450, 1.442695
      %v497 = vpow.pop %v496
      %v498 = vmul.f32 %v451, 1.442695
      %v499 = vpow.pop %v498
      %v500 = vmul.f32 %v452, 1.442695
      %v501 = vpow.pop %v500
      %v502 = vmul.f32 %v453, 1.442695
      %v503 = vpow.pop %v502
      %v504 = vmul.f32 %v454, 1.442695
      %v505 = vpow.pop %v504
      %v506 = vmul.f32 %v455, 1.442695
      %v507 = vpow.pop %v506
      %v508 = vmul.f32 %v456, 1.442695
      %v509 = vpow.pop %v508
      %v510 = vmul.f32 %v457, 1.442695
      %v511 = vpow.pop %v510
      %v512 = vmul.f32 %v458, 1.442695
      %v513 = vpow.pop %v512
      %v514 = vmul.f32 %v459, 1.442695
      %v515 = vpow.pop %v514
      %v516 = vmul.f32 %v460, 1.442695
      %v517 = vpow.pop %v516
      %v518 = vmul.f32 %v461, 1.442695
      %v519 = vpow.pop %v518
      %v520 = vmul.f32 %v462, 1.442695
      %v521 = vpow.pop %v520
      %v522 = vmul.f32 %v463, 1.442695
      %v523 = vpow.pop %v522
      %v524 = vmul.f32 %v464, 1.442695
      %v525 = vpow.pop %v524
      %v526 = vmul.f32 %v465, 1.442695
      %v527 = vpow.pop %v526
      %v528 = vmul.f32 %v466, 1.442695
      %v529 = vpow.pop %v528
      %v530 = vmul.f32 %v467, 1.442695
      %v531 = vpow.pop %v530
      %v532 = vmul.f32 %v468, 1.442695
      %v533 = vpow.pop %v532
      %v534 = vmul.f32 %v469, 1.442695
      %v535 = vpow.pop %v534
      %v536 = vmul.f32 %v470, 1.442695
      %v537 = vpow.pop %v536
      %v538 = vmul.f32 %v471, 1.442695
      %v539 = vpow.pop %v538
      %v540 = vmul.f32 %v472, 1.442695
      %v541 = vpow.pop %v540
      %v542 = vmul.f32 %v473, 1.442695
      %v543 = vpow.pop %v542
      %v544 = vmul.f32 %v474, 1.442695
      %v545 = vpow.pop %v544
      %v546 = vmul.f32 %v475, 1.442695
      %v547 = vpow.pop %v546
      %v548 = vmul.f32 %v476, 1.442695
      %v549 = vpow.pop %v548
      %v550 = vmul.f32 %v477, 1.442695
      %v551 = vpow.pop %v550
      %v552 = vmul.f32 %v478, 1.442695
      %v553 = vpow.pop %v552
      %v554 = vmul.f32 %v479, 1.442695
      %v555 = vpow.pop %v554
      %v556 = vmul.f32 %v480, 1.442695
      %v557 = vpow.pop %v556
      %v558 = vmul.f32 %v481, 1.442695
      %v559 = vpow.pop %v558
      %v560 = vmul.f32 %v482, 1.442695
      %v561 = vpow.pop %v560
      %v562 = vmul.f32 %v483, 1.442695
      %v563 = vpow.pop %v562
      %v564 = vmul.f32 %v484, 1.442695
      %v565 = vpow.pop %v564
      %v566 = vmul.f32 %v485, 1.442695
      %v567 = vpow.pop %v566
      %v568 = vsub.f32 %v487, 1.0
      %v569 = vsub.f32 %v489, 1.0
      %v570 = vsub.f32 %v491, 1.0
      %v571 = vsub.f32 %v493, 1.0
      %v572 = vsub.f32 %v495, 1.0
      %v573 = vsub.f32 %v497, 1.0
      %v574 = vsub.f32 %v499, 1.0
      %v575 = vsub.f32 %v501, 1.0
      %v576 = vsub.f32 %v503, 1.0
      %v577 = vsub.f32 %v505, 1.0
      %v578 = vsub.f32 %v507, 1.0
      %v579 = vsub.f32 %v509, 1.0
      %v580 = vsub.f32 %v511, 1.0
      %v581 = vsub.f32 %v513, 1.0
      %v582 = vsub.f32 %v515, 1.0
      %v583 = vsub.f32 %v517, 1.0
      %v584 = vsub.f32 %v519, 1.0
      %v585 = vsub.f32 %v521, 1.0
      %v586 = vsub.f32 %v523, 1.0
      %v587 = vsub.f32 %v525, 1.0
      %v588 = vsub.f32 %v527, 1.0
      %v589 = vsub.f32 %v529, 1.0
      %v590 = vsub.f32 %v531, 1.0
      %v591 = vsub.f32 %v533, 1.0
      %v592 = vsub.f32 %v535, 1.0
      %v593 = vsub.f32 %v537, 1.0
      %v594 = vsub.f32 %v539, 1.0
      %v595 = vsub.f32 %v541, 1.0
      %v596 = vsub.f32 %v543, 1.0
      %v597 = vsub.f32 %v545, 1.0
      %v598 = vsub.f32 %v547, 1.0
      %v599 = vsub.f32 %v549, 1.0
      %v600 = vsub.f32 %v551, 1.0
      %v601 = vsub.f32 %v553, 1.0
      %v602 = vsub.f32 %v555, 1.0
      %v603 = vsub.f32 %v557, 1.0
      %v604 = vsub.f32 %v559, 1.0
      %v605 = vsub.f32 %v561, 1.0
      %v606 = vsub.f32 %v563, 1.0
      %v607 = vsub.f32 %v565, 1.0
      %v608 = vsub.f32 %v567, 1.0
      %v609 = vsel %vm404, %v363, %v568
      %v610 = vsel %vm405, %v364, %v569
      %v611 = vsel %vm406, %v365, %v570
      %v612 = vsel %vm407, %v366, %v571
      %v613 = vsel %vm408, %v367, %v572
      %v614 = vsel %vm409, %v368, %v573
      %v615 = vsel %vm410, %v369, %v574
      %v616 = vsel %vm411, %v370, %v575
      %v617 = vsel %vm412, %v371, %v576
      %v618 = vsel %vm413, %v372, %v577
      %v619 = vsel %vm414, %v373, %v578
      %v620 = vsel %vm415, %v374, %v579
      %v621 = vsel %vm416, %v375, %v580
      %v622 = vsel %vm417, %v376, %v581
      %v623 = vsel %vm418, %v377, %v582
      %v624 = vsel %vm419, %v378, %v583
      %v625 = vsel %vm420, %v379, %v584
      %v626 = vsel %vm421, %v380, %v585
      %v627 = vsel %vm422, %v381, %v586
      %v628 = vsel %vm423, %v382, %v587
      %v629 = vsel %vm424, %v383, %v588
      %v630 = vsel %vm425, %v384, %v589
      %v631 = vsel %vm426, %v385, %v590
      %v632 = vsel %vm427, %v386, %v591
      %v633 = vsel %vm428, %v387, %v592
      %v634 = vsel %vm429, %v388, %v593
      %v635 = vsel %vm430, %v389, %v594
      %v636 = vsel %vm431, %v390, %v595
      %v637 = vsel %vm432, %v391, %v596
      %v638 = vsel %vm433, %v392, %v597
      %v639 = vsel %vm434, %v393, %v598
      %v640 = vsel %vm435, %v394, %v599
      %v641 = vsel %vm436, %v395, %v600
      %v642 = vsel %vm437, %v396, %v601
      %v643 = vsel %vm438, %v397, %v602
      %v644 = vsel %vm439, %v398, %v603
      %v645 = vsel %vm440, %v399, %v604
      %v646 = vsel %vm441, %v400, %v605
      %v647 = vsel %vm442, %v401, %v606
      %v648 = vsel %vm443, %v402, %v607
      %v649 = vsel %vm444, %v403, %v608
      %v650 = vld [vmem:[%s3] sm:$0xff]
      %v651 = vld [vmem:[%s3 + $0x8] sm:$0xff]
      %v652 = vld [vmem:[%s3 + $0x10] sm:$0xff]
      %v653 = vld [vmem:[%s3 + $0x18] sm:$0xff]
      %v654 = vld [vmem:[%s3 + $0x20] sm:$0xff]
      %v655 = vld [vmem:[%s3 + $0x28] sm:$0xff]
      %v656 = vld [vmem:[%s3 + $0x30] sm:$0xff]
      %v657 = vld [vmem:[%s3 + $0x38] sm:$0xff]
      %v658 = vld [vmem:[%s3 + $0x40] sm:$0xff]
      %v659 = vld [vmem:[%s3 + $0x48] sm:$0xff]
      %v660 = vld [vmem:[%s3 + $0x50] sm:$0xff]
      %v661 = vld [vmem:[%s3 + $0x58] sm:$0xff]
      %v662 = vld [vmem:[%s3 + $0x60] sm:$0xff]
      %v663 = vld [vmem:[%s3 + $0x68] sm:$0xff]
      %v664 = vld [vmem:[%s3 + $0x70] sm:$0xff]
      %v665 = vld [vmem:[%s3 + $0x78] sm:$0xff]
      %v666 = vld [vmem:[%s3 + $0x80] sm:$0xff]
      %v667 = vld [vmem:[%s3 + $0x88] sm:$0xff]
      %v668 = vld [vmem:[%s3 + $0x90] sm:$0xff]
      %v669 = vld [vmem:[%s3 + $0x98] sm:$0xff]
      %v670 = vld [vmem:[%s3 + $0xa0] sm:$0xff]
      %v671 = vld [vmem:[%s3 + $0xa8] sm:$0xff]
      %v672 = vld [vmem:[%s3 + $0xb0] sm:$0xff]
      %v673 = vld [vmem:[%s3 + $0xb8] sm:$0xff]
      %v674 = vld [vmem:[%s3 + $0xc0] sm:$0xff]
      %v675 = vld [vmem:[%s3 + $0xc8] sm:$0xff]
      %v676 = vld [vmem:[%s3 + $0xd0] sm:$0xff]
      %v677 = vld [vmem:[%s3 + $0xd8] sm:$0xff]
      %v678 = vld [vmem:[%s3 + $0xe0] sm:$0xff]
      %v679 = vld [vmem:[%s3 + $0xe8] sm:$0xff]
      %v680 = vld [vmem:[%s3 + $0xf0] sm:$0xff]
      %v681 = vld [vmem:[%s3 + $0xf8] sm:$0xff]
      %v682 = vld [vmem:[%s3 + $0x100] sm:$0xff]
      %v683 = vld [vmem:[%s3 + $0x108] sm:$0xff]
      %v684 = vld [vmem:[%s3 + $0x110] sm:$0xff]
      %v685 = vld [vmem:[%s3 + $0x118] sm:$0xff]
      %v686 = vld [vmem:[%s3 + $0x120] sm:$0xff]
      %v687 = vld [vmem:[%s3 + $0x128] sm:$0xff]
      %v688 = vld [vmem:[%s3 + $0x130] sm:$0xff]
      %v689 = vld [vmem:[%s3 + $0x138] sm:$0xff]
      %v690 = vld [vmem:[%s3 + $0x140] sm:$0x3f]
      %692 = vset.pattern.permute.xlu0 0
      %693 = vperm.xlu0 %692, %v650
      %v694 = vpop.permute.xlu0 %693
      %697 = vset.pattern.permute.xlu0 0
      %698 = vperm.xlu0 %697, %v651
      %v699 = vpop.permute.xlu0 %698
      %702 = vset.pattern.permute.xlu0 0
      %703 = vperm.xlu0 %702, %v652
      %v704 = vpop.permute.xlu0 %703
      %707 = vset.pattern.permute.xlu0 0
      %708 = vperm.xlu0 %707, %v653
      %v709 = vpop.permute.xlu0 %708
      %712 = vset.pattern.permute.xlu0 0
      %713 = vperm.xlu0 %712, %v654
      %v714 = vpop.permute.xlu0 %713
      %717 = vset.pattern.permute.xlu0 0
      %718 = vperm.xlu0 %717, %v655
      %v719 = vpop.permute.xlu0 %718
      %722 = vset.pattern.permute.xlu0 0
      %723 = vperm.xlu0 %722, %v656
      %v724 = vpop.permute.xlu0 %723
      %727 = vset.pattern.permute.xlu0 0
      %728 = vperm.xlu0 %727, %v657
      %v729 = vpop.permute.xlu0 %728
      %732 = vset.pattern.permute.xlu0 0
      %733 = vperm.xlu0 %732, %v658
      %v734 = vpop.permute.xlu0 %733
      %737 = vset.pattern.permute.xlu0 0
      %738 = vperm.xlu0 %737, %v659
      %v739 = vpop.permute.xlu0 %738
      %742 = vset.pattern.permute.xlu0 0
      %743 = vperm.xlu0 %742, %v660
      %v744 = vpop.permute.xlu0 %743
      %747 = vset.pattern.permute.xlu0 0
      %748 = vperm.xlu0 %747, %v661
      %v749 = vpop.permute.xlu0 %748
      %752 = vset.pattern.permute.xlu0 0
      %753 = vperm.xlu0 %752, %v662
      %v754 = vpop.permute.xlu0 %753
      %757 = vset.pattern.permute.xlu0 0
      %758 = vperm.xlu0 %757, %v663
      %v759 = vpop.permute.xlu0 %758
      %762 = vset.pattern.permute.xlu0 0
      %763 = vperm.xlu0 %762, %v664
      %v764 = vpop.permute.xlu0 %763
      %767 = vset.pattern.permute.xlu0 0
      %768 = vperm.xlu0 %767, %v665
      %v769 = vpop.permute.xlu0 %768
      %772 = vset.pattern.permute.xlu0 0
      %773 = vperm.xlu0 %772, %v666
      %v774 = vpop.permute.xlu0 %773
      %777 = vset.pattern.permute.xlu0 0
      %778 = vperm.xlu0 %777, %v667
      %v779 = vpop.permute.xlu0 %778
      %782 = vset.pattern.permute.xlu0 0
      %783 = vperm.xlu0 %782, %v668
      %v784 = vpop.permute.xlu0 %783
      %787 = vset.pattern.permute.xlu0 0
      %788 = vperm.xlu0 %787, %v669
      %v789 = vpop.permute.xlu0 %788
      %792 = vset.pattern.permute.xlu0 0
      %793 = vperm.xlu0 %792, %v670
      %v794 = vpop.permute.xlu0 %793
      %797 = vset.pattern.permute.xlu0 0
      %798 = vperm.xlu0 %797, %v671
      %v799 = vpop.permute.xlu0 %798
      %802 = vset.pattern.permute.xlu0 0
      %803 = vperm.xlu0 %802, %v672
      %v804 = vpop.permute.xlu0 %803
      %807 = vset.pattern.permute.xlu0 0
      %808 = vperm.xlu0 %807, %v673
      %v809 = vpop.permute.xlu0 %808
      %812 = vset.pattern.permute.xlu0 0
      %813 = vperm.xlu0 %812, %v674
      %v814 = vpop.permute.xlu0 %813
      %817 = vset.pattern.permute.xlu0 0
      %818 = vperm.xlu0 %817, %v675
      %v819 = vpop.permute.xlu0 %818
      %822 = vset.pattern.permute.xlu0 0
      %823 = vperm.xlu0 %822, %v676
      %v824 = vpop.permute.xlu0 %823
      %827 = vset.pattern.permute.xlu0 0
      %828 = vperm.xlu0 %827, %v677
      %v829 = vpop.permute.xlu0 %828
      %832 = vset.pattern.permute.xlu0 0
      %833 = vperm.xlu0 %832, %v678
      %v834 = vpop.permute.xlu0 %833
      %837 = vset.pattern.permute.xlu0 0
      %838 = vperm.xlu0 %837, %v679
      %v839 = vpop.permute.xlu0 %838
      %842 = vset.pattern.permute.xlu0 0
      %843 = vperm.xlu0 %842, %v680
      %v844 = vpop.permute.xlu0 %843
      %847 = vset.pattern.permute.xlu0 0
      %848 = vperm.xlu0 %847, %v681
      %v849 = vpop.permute.xlu0 %848
      %852 = vset.pattern.permute.xlu0 0
      %853 = vperm.xlu0 %852, %v682
      %v854 = vpop.permute.xlu0 %853
      %857 = vset.pattern.permute.xlu0 0
      %858 = vperm.xlu0 %857, %v683
      %v859 = vpop.permute.xlu0 %858
      %862 = vset.pattern.permute.xlu0 0
      %863 = vperm.xlu0 %862, %v684
      %v864 = vpop.permute.xlu0 %863
      %867 = vset.pattern.permute.xlu0 0
      %868 = vperm.xlu0 %867, %v685
      %v869 = vpop.permute.xlu0 %868
      %872 = vset.pattern.permute.xlu0 0
      %873 = vperm.xlu0 %872, %v686
      %v874 = vpop.permute.xlu0 %873
      %877 = vset.pattern.permute.xlu0 0
      %878 = vperm.xlu0 %877, %v687
      %v879 = vpop.permute.xlu0 %878
      %882 = vset.pattern.permute.xlu0 0
      %883 = vperm.xlu0 %882, %v688
      %v884 = vpop.permute.xlu0 %883
      %887 = vset.pattern.permute.xlu0 0
      %888 = vperm.xlu0 %887, %v689
      %v889 = vpop.permute.xlu0 %888
      %892 = vset.pattern.permute.xlu0 0
      %893 = vperm.xlu0 %892, %v690
      %v894 = vpop.permute.xlu0 %893
      %v896 = vmul.f32 %v609, %v694
      %v897 = vmul.f32 %v610, %v699
      %v898 = vmul.f32 %v611, %v704
      %v899 = vmul.f32 %v612, %v709
      %v900 = vmul.f32 %v613, %v714
      %v901 = vmul.f32 %v614, %v719
      %v902 = vmul.f32 %v615, %v724
      %v903 = vmul.f32 %v616, %v729
      %v904 = vmul.f32 %v617, %v734
      %v905 = vmul.f32 %v618, %v739
      %v906 = vmul.f32 %v619, %v744
      %v907 = vmul.f32 %v620, %v749
      %v908 = vmul.f32 %v621, %v754
      %v909 = vmul.f32 %v622, %v759
      %v910 = vmul.f32 %v623, %v764
      %v911 = vmul.f32 %v624, %v769
      %v912 = vmul.f32 %v625, %v774
      %v913 = vmul.f32 %v626, %v779
      %v914 = vmul.f32 %v627, %v784
      %v915 = vmul.f32 %v628, %v789
      %v916 = vmul.f32 %v629, %v794
      %v917 = vmul.f32 %v630, %v799
      %v918 = vmul.f32 %v631, %v804
      %v919 = vmul.f32 %v632, %v809
      %v920 = vmul.f32 %v633, %v814
      %v921 = vmul.f32 %v634, %v819
      %v922 = vmul.f32 %v635, %v824
      %v923 = vmul.f32 %v636, %v829
      %v924 = vmul.f32 %v637, %v834
      %v925 = vmul.f32 %v638, %v839
      %v926 = vmul.f32 %v639, %v844
      %v927 = vmul.f32 %v640, %v849
      %v928 = vmul.f32 %v641, %v854
      %v929 = vmul.f32 %v642, %v859
      %v930 = vmul.f32 %v643, %v864
      %v931 = vmul.f32 %v644, %v869
      %v932 = vmul.f32 %v645, %v874
      %v933 = vmul.f32 %v646, %v879
      %v934 = vmul.f32 %v647, %v884
      %v935 = vmul.f32 %v648, %v889
      %v936 = vmul.f32 %v649, %v894
      %v937 = vpack.c.bf16 %v897, %v896
      %v938 = vpack.c.bf16 %v899, %v898
      %v939 = vpack.c.bf16 %v901, %v900
      %v940 = vpack.c.bf16 %v903, %v902
      %v941 = vpack.c.bf16 %v905, %v904
      %v942 = vpack.c.bf16 %v907, %v906
      %v943 = vpack.c.bf16 %v909, %v908
      %v944 = vpack.c.bf16 %v911, %v910
      %v945 = vpack.c.bf16 %v913, %v912
      %v946 = vpack.c.bf16 %v915, %v914
      %v947 = vpack.c.bf16 %v917, %v916
      %v948 = vpack.c.bf16 %v919, %v918
      %v949 = vpack.c.bf16 %v921, %v920
      %v950 = vpack.c.bf16 %v923, %v922
      %v951 = vpack.c.bf16 %v925, %v924
      %v952 = vpack.c.bf16 %v927, %v926
      %v953 = vpack.c.bf16 %v929, %v928
      %v954 = vpack.c.bf16 %v931, %v930
      %v955 = vld [vmem:[%s4] sm:$0xf]
      %v956 = vld [vmem:[%s4 + $0x4] sm:$0xf]
      %v957 = vld [vmem:[%s4 + $0x8] sm:$0xf]
      %v958 = vld [vmem:[%s4 + $0xc] sm:$0xf]
      %v959 = vld [vmem:[%s4 + $0x10] sm:$0xf]
      %v960 = vld [vmem:[%s4 + $0x14] sm:$0xf]
      %v961 = vld [vmem:[%s4 + $0x18] sm:$0xf]
      %v962 = vld [vmem:[%s4 + $0x1c] sm:$0xf]
      %v963 = vld [vmem:[%s4 + $0x20] sm:$0xf]
      %v964 = vld [vmem:[%s4 + $0x24] sm:$0xf]
      %v965 = vld [vmem:[%s4 + $0x28] sm:$0xf]
      %v966 = vld [vmem:[%s4 + $0x2c] sm:$0xf]
      %v967 = vld [vmem:[%s4 + $0x30] sm:$0xf]
      %v968 = vld [vmem:[%s4 + $0x34] sm:$0xf]
      %v969 = vld [vmem:[%s4 + $0x38] sm:$0xf]
      %v970 = vld [vmem:[%s4 + $0x3c] sm:$0xf]
      %v971 = vpack.c.bf16 %v932, %v932
      %s972 = scalar_lea.vmem %s4, 64
      %v973 = vld [vmem:[%s972] sm:$0xf]
      %v974 = vld [vmem:[%s972 + $0x4] sm:$0xf]
      %v975 = vld [vmem:[%s972 + $0x8] sm:$0xf]
      %v976 = vld [vmem:[%s972 + $0xc] sm:$0xf]
      %v977 = vld [vmem:[%s972 + $0x10] sm:$0xf]
      %v978 = vld [vmem:[%s972 + $0x14] sm:$0xf]
      %v979 = vld [vmem:[%s972 + $0x18] sm:$0xf]
      %v980 = vld [vmem:[%s972 + $0x1c] sm:$0xf]
      %v981 = vld [vmem:[%s972 + $0x20] sm:$0xf]
      %v982 = vld [vmem:[%s972 + $0x24] sm:$0xf]
      %v983 = vld [vmem:[%s972 + $0x28] sm:$0xf]
      %v984 = vld [vmem:[%s972 + $0x2c] sm:$0xf]
      %v985 = vld [vmem:[%s972 + $0x30] sm:$0xf]
      %v986 = vld [vmem:[%s972 + $0x34] sm:$0xf]
      %v987 = vld [vmem:[%s972 + $0x38] sm:$0xf]
      %v988 = vld [vmem:[%s972 + $0x3c] sm:$0xf]
      %vm989 = vsmask.f32 7424
      %v991 = vshrl.u32 %v937, 16
      %v993 = vshll.u32 %v937, 16
      %v995 = vrot.slane %v993, 1
      %v996 = vor.u32 %v991, %v995
      %v998 = vshll.u32 %v938, 16
      %v1000 = vrot.slane %v998, 1
      %v1001 = vsel %vm989, %v996, %v1000
      %v1002 = vshrl.u32 %v938, 16
      %v1004 = vor.u32 %v1002, %v1000
      %v1006 = vshll.u32 %v939, 16
      %v1008 = vrot.slane %v1006, 1
      %v1009 = vsel %vm989, %v1004, %v1008
      %v1010 = vshrl.u32 %v939, 16
      %v1012 = vor.u32 %v1010, %v1008
      %v1014 = vshll.u32 %v940, 16
      %v1016 = vrot.slane %v1014, 1
      %v1017 = vsel %vm989, %v1012, %v1016
      %v1018 = vshrl.u32 %v940, 16
      %v1020 = vor.u32 %v1018, %v1016
      %v1022 = vshll.u32 %v941, 16
      %v1024 = vrot.slane %v1022, 1
      %v1025 = vsel %vm989, %v1020, %v1024
      %v1026 = vshrl.u32 %v941, 16
      %v1028 = vor.u32 %v1026, %v1024
      %v1030 = vshll.u32 %v942, 16
      %v1032 = vrot.slane %v1030, 1
      %v1033 = vsel %vm989, %v1028, %v1032
      %v1034 = vshrl.u32 %v942, 16
      %v1036 = vor.u32 %v1034, %v1032
      %v1038 = vshll.u32 %v943, 16
      %v1040 = vrot.slane %v1038, 1
      %v1041 = vsel %vm989, %v1036, %v1040
      %v1042 = vshrl.u32 %v943, 16
      %v1044 = vor.u32 %v1042, %v1040
      %v1046 = vshll.u32 %v944, 16
      %v1048 = vrot.slane %v1046, 1
      %v1049 = vsel %vm989, %v1044, %v1048
      %v1050 = vshrl.u32 %v944, 16
      %v1052 = vor.u32 %v1050, %v1048
      %v1054 = vshll.u32 %v945, 16
      %v1056 = vrot.slane %v1054, 1
      %v1057 = vsel %vm989, %v1052, %v1056
      %v1058 = vshrl.u32 %v945, 16
      %v1060 = vor.u32 %v1058, %v1056
      %v1062 = vshll.u32 %v946, 16
      %v1064 = vrot.slane %v1062, 1
      %v1065 = vsel %vm989, %v1060, %v1064
      %v1066 = vshrl.u32 %v946, 16
      %v1068 = vor.u32 %v1066, %v1064
      %v1070 = vshll.u32 %v947, 16
      %v1072 = vrot.slane %v1070, 1
      %v1073 = vsel %vm989, %v1068, %v1072
      %v1074 = vshrl.u32 %v947, 16
      %v1076 = vor.u32 %v1074, %v1072
      %v1078 = vshll.u32 %v948, 16
      %v1080 = vrot.slane %v1078, 1
      %v1081 = vsel %vm989, %v1076, %v1080
      %v1082 = vshrl.u32 %v948, 16
      %v1084 = vor.u32 %v1082, %v1080
      %v1086 = vshll.u32 %v949, 16
      %v1088 = vrot.slane %v1086, 1
      %v1089 = vsel %vm989, %v1084, %v1088
      %v1090 = vshrl.u32 %v949, 16
      %v1092 = vor.u32 %v1090, %v1088
      %v1094 = vshll.u32 %v950, 16
      %v1096 = vrot.slane %v1094, 1
      %v1097 = vsel %vm989, %v1092, %v1096
      %v1098 = vshrl.u32 %v950, 16
      %v1100 = vor.u32 %v1098, %v1096
      %v1102 = vshll.u32 %v951, 16
      %v1104 = vrot.slane %v1102, 1
      %v1105 = vsel %vm989, %v1100, %v1104
      %v1106 = vshrl.u32 %v951, 16
      %v1108 = vor.u32 %v1106, %v1104
      %v1110 = vshll.u32 %v952, 16
      %v1112 = vrot.slane %v1110, 1
      %v1113 = vsel %vm989, %v1108, %v1112
      %v1114 = vshrl.u32 %v952, 16
      %v1116 = vor.u32 %v1114, %v1112
      %v1118 = vshll.u32 %v953, 16
      %v1120 = vrot.slane %v1118, 1
      %v1121 = vsel %vm989, %v1116, %v1120
      %v1122 = vshrl.u32 %v953, 16
      %v1124 = vor.u32 %v1122, %v1120
      %v1126 = vshll.u32 %v954, 16
      %v1128 = vrot.slane %v1126, 1
      %v1129 = vsel %vm989, %v1124, %v1128
      %v1130 = vshrl.u32 %v954, 16
      %v1132 = vor.u32 %v1130, %v1128
      %v1134 = vshll.u32 %v971, 16
      %v1136 = vrot.slane %v1134, 1
      %v1137 = vsel %vm989, %v1132, %v1136
      %v1172 = vunpack.c.l.b16 %v973
      %v1173 = vunpack.c.l.b16 %v974
      %v1174 = vunpack.c.l.b16 %v975
      %v1175 = vunpack.c.l.b16 %v976
      %v1176 = vunpack.c.l.b16 %v977
      %v1177 = vunpack.c.l.b16 %v978
      %v1178 = vunpack.c.l.b16 %v979
      %v1179 = vunpack.c.l.b16 %v980
      %v1180 = vunpack.c.l.b16 %v981
      %v1181 = vunpack.c.l.b16 %v982
      %v1182 = vunpack.c.l.b16 %v983
      %v1183 = vunpack.c.l.b16 %v984
      %v1184 = vunpack.c.l.b16 %v985
      %v1185 = vunpack.c.l.b16 %v986
      %v1186 = vunpack.c.l.b16 %v987
      %v1187 = vunpack.c.l.b16 %v988
      %v1188 = vpack.c.b16 %v1173, %v1172
      %v1189 = vpack.c.b16 %v1175, %v1174
      %v1190 = vpack.c.b16 %v1177, %v1176
      %v1191 = vpack.c.b16 %v1179, %v1178
      %v1192 = vpack.c.b16 %v1181, %v1180
      %v1193 = vpack.c.b16 %v1183, %v1182
      %v1194 = vpack.c.b16 %v1185, %v1184
      %v1195 = vpack.c.b16 %v1187, %v1186
      %1204 = vmatprep.subr.bf16.mxu0 0
      %1205 = vmatpush1.bf16.msra.mxu0 %v1188
      %1206 = vmatprep.subr.bf16.mxu0 0
      %1207 = vmatpush1.bf16.msra.mxu0 %v1189
      %1208 = vmatprep.subr.bf16.mxu0 0
      %1209 = vmatpush1.bf16.msra.mxu0 %v1190
      %1210 = vmatprep.subr.bf16.mxu0 0
      %1211 = vmatpush1.bf16.msra.mxu0 %v1191
      %1212 = vmatprep.subr.bf16.mxu0 0
      %1213 = vmatpush1.bf16.msra.mxu0 %v1192
      %1214 = vmatprep.subr.bf16.mxu0 0
      %1215 = vmatpush1.bf16.msra.mxu0 %v1193
      %1216 = vmatprep.subr.bf16.mxu0 0
      %1217 = vmatpush1.bf16.msra.mxu0 %v1194
      %1218 = vmatprep.subr.bf16.mxu0 0
      %1219 = vmatpush1.bf16.msra.mxu0 %v1195
      %1220 = vmatprep.subr.bf16.mxu0 0
      %1221 = vmatpush1.bf16.msra.mxu0 0
      %1222 = vmatprep.subr.bf16.mxu0 0
      %1223 = vmatpush1.bf16.msra.mxu0 0
      %1224 = vmatprep.subr.bf16.mxu0 0
      %1225 = vmatpush1.bf16.msra.mxu0 0
      %1226 = vmatprep.subr.bf16.mxu0 0
      %1227 = vmatpush1.bf16.msra.mxu0 0
      %1228 = vmatprep.subr.bf16.mxu0 0
      %1229 = vmatpush1.bf16.msra.mxu0 0
      %1230 = vmatprep.subr.bf16.mxu0 0
      %1231 = vmatpush1.bf16.msra.mxu0 0
      %1232 = vmatprep.subr.bf16.mxu0 0
      %1233 = vmatpush1.bf16.msra.mxu0 0
      %1234 = vmatprep.subr.bf16.mxu0 0
      %1235 = vmatpush1.bf16.msra.mxu0 0
      %1236 = vmatprep.mubr.bf16.mxu0 0
      %1237 = vmatmul.mubr.bf16.gmra.mrb[0].mxu0 %v1001
      %v1238 = vpop.f32.mrb[0].mxu0
      %v1239 = vadd.f32 0.0, %v1238
      %v1240 = vpop.f32.mrb[0].mxu0
      %v1241 = vpop.f32.mrb[0].mxu0
      %v1242 = vadd.f32 0.0, %v1241
      %v1243 = vpop.f32.mrb[0].mxu0
      %1244 = vmatprep.mubr.bf16.mxu0 0
      %1245 = vmatmul.mubr.bf16.gmra.mrb[0].mxu0 %v1009
      %v1246 = vpop.f32.mrb[0].mxu0
      %v1247 = vadd.f32 0.0, %v1246
      %v1248 = vpop.f32.mrb[0].mxu0
      %v1249 = vpop.f32.mrb[0].mxu0
      %v1250 = vadd.f32 0.0, %v1249
      %v1251 = vpop.f32.mrb[0].mxu0
      %1252 = vmatprep.mubr.bf16.mxu0 0
      %1253 = vmatmul.mubr.bf16.gmra.mrb[0].mxu0 %v1017
      %v1254 = vpop.f32.mrb[0].mxu0
      %v1255 = vadd.f32 0.0, %v1254
      %v1256 = vpop.f32.mrb[0].mxu0
      %v1257 = vpop.f32.mrb[0].mxu0
      %v1258 = vadd.f32 0.0, %v1257
      %v1259 = vpop.f32.mrb[0].mxu0
      %1260 = vmatprep.mubr.bf16.mxu0 0
      %1261 = vmatmul.mubr.bf16.gmra.mrb[0].mxu0 %v1025
      %v1262 = vpop.f32.mrb[0].mxu0
      %v1263 = vadd.f32 0.0, %v1262
      %v1264 = vpop.f32.mrb[0].mxu0
      %v1265 = vpop.f32.mrb[0].mxu0
      %v1266 = vadd.f32 0.0, %v1265
      %v1267 = vpop.f32.mrb[0].mxu0
      %1268 = vmatprep.mubr.bf16.mxu0 0
      %1269 = vmatmul.mubr.bf16.gmra.mrb[0].mxu0 %v1033
      %v1270 = vpop.f32.mrb[0].mxu0
      %v1271 = vadd.f32 0.0, %v1270
      %v1272 = vpop.f32.mrb[0].mxu0
      %v1273 = vpop.f32.mrb[0].mxu0
      %v1274 = vadd.f32 0.0, %v1273
      %v1275 = vpop.f32.mrb[0].mxu0
      %1276 = vmatprep.mubr.bf16.mxu0 0
      %1277 = vmatmul.mubr.bf16.gmra.mrb[0].mxu0 %v1041
      %v1278 = vpop.f32.mrb[0].mxu0
      %v1279 = vadd.f32 0.0, %v1278
      %v1280 = vpop.f32.mrb[0].mxu0
      %v1281 = vpop.f32.mrb[0].mxu0
      %v1282 = vadd.f32 0.0, %v1281
      %v1283 = vpop.f32.mrb[0].mxu0
      %1284 = vmatprep.mubr.bf16.mxu0 0
      %1285 = vmatmul.mubr.bf16.gmra.mrb[0].mxu0 %v1049
      %v1286 = vpop.f32.mrb[0].mxu0
      %v1287 = vadd.f32 0.0, %v1286
      %v1288 = vpop.f32.mrb[0].mxu0
      %v1289 = vpop.f32.mrb[0].mxu0
      %v1290 = vadd.f32 0.0, %v1289
      %v1291 = vpop.f32.mrb[0].mxu0
      %1292 = vmatprep.mubr.bf16.mxu0 0
      %1293 = vmatmul.mubr.bf16.gmra.mrb[0].mxu0 %v1057
      %v1294 = vpop.f32.mrb[0].mxu0
      %v1295 = vadd.f32 0.0, %v1294
      %v1296 = vpop.f32.mrb[0].mxu0
      %v1297 = vpop.f32.mrb[0].mxu0
      %v1298 = vadd.f32 0.0, %v1297
      %v1299 = vpop.f32.mrb[0].mxu0
      %1300 = vmatprep.mubr.bf16.mxu0 0
      %1301 = vmatmul.mubr.bf16.gmra.mrb[0].mxu0 %v1065
      %v1302 = vpop.f32.mrb[0].mxu0
      %v1303 = vadd.f32 0.0, %v1302
      %v1304 = vpop.f32.mrb[0].mxu0
      %v1305 = vpop.f32.mrb[0].mxu0
      %v1306 = vadd.f32 0.0, %v1305
      %v1307 = vpop.f32.mrb[0].mxu0
      %1308 = vmatprep.mubr.bf16.mxu0 0
      %1309 = vmatmul.mubr.bf16.gmra.mrb[0].mxu0 %v1073
      %v1310 = vpop.f32.mrb[0].mxu0
      %v1311 = vadd.f32 0.0, %v1310
      %v1312 = vpop.f32.mrb[0].mxu0
      %v1313 = vpop.f32.mrb[0].mxu0
      %v1314 = vadd.f32 0.0, %v1313
      %v1315 = vpop.f32.mrb[0].mxu0
      %1316 = vmatprep.mubr.bf16.mxu0 0
      %1317 = vmatmul.mubr.bf16.gmra.mrb[0].mxu0 %v1081
      %v1318 = vpop.f32.mrb[0].mxu0
      %v1319 = vadd.f32 0.0, %v1318
      %v1320 = vpop.f32.mrb[0].mxu0
      %v1321 = vpop.f32.mrb[0].mxu0
      %v1322 = vadd.f32 0.0, %v1321
      %v1323 = vpop.f32.mrb[0].mxu0
      %1324 = vmatprep.mubr.bf16.mxu0 0
      %1325 = vmatmul.mubr.bf16.gmra.mrb[0].mxu0 %v1089
      %v1326 = vpop.f32.mrb[0].mxu0
      %v1327 = vadd.f32 0.0, %v1326
      %v1328 = vpop.f32.mrb[0].mxu0
      %v1329 = vpop.f32.mrb[0].mxu0
      %v1330 = vadd.f32 0.0, %v1329
      %v1331 = vpop.f32.mrb[0].mxu0
      %1332 = vmatprep.mubr.bf16.mxu0 0
      %1333 = vmatmul.mubr.bf16.gmra.mrb[0].mxu0 %v1097
      %v1334 = vpop.f32.mrb[0].mxu0
      %v1335 = vadd.f32 0.0, %v1334
      %v1336 = vpop.f32.mrb[0].mxu0
      %v1337 = vpop.f32.mrb[0].mxu0
      %v1338 = vadd.f32 0.0, %v1337
      %v1339 = vpop.f32.mrb[0].mxu0
      %1340 = vmatprep.mubr.bf16.mxu0 0
      %1341 = vmatmul.mubr.bf16.gmra.mrb[0].mxu0 %v1105
      %v1342 = vpop.f32.mrb[0].mxu0
      %v1343 = vadd.f32 0.0, %v1342
      %v1344 = vpop.f32.mrb[0].mxu0
      %v1345 = vpop.f32.mrb[0].mxu0
      %v1346 = vadd.f32 0.0, %v1345
      %v1347 = vpop.f32.mrb[0].mxu0
      %1348 = vmatprep.mubr.bf16.mxu0 0
      %1349 = vmatmul.mubr.bf16.gmra.mrb[0].mxu0 %v1113
      %v1350 = vpop.f32.mrb[0].mxu0
      %v1351 = vadd.f32 0.0, %v1350
      %v1352 = vpop.f32.mrb[0].mxu0
      %v1353 = vpop.f32.mrb[0].mxu0
      %v1354 = vadd.f32 0.0, %v1353
      %v1355 = vpop.f32.mrb[0].mxu0
      %1356 = vmatprep.mubr.bf16.mxu0 0
      %1357 = vmatmul.mubr.bf16.gmra.mrb[0].mxu0 %v1121
      %v1358 = vpop.f32.mrb[0].mxu0
      %v1359 = vadd.f32 0.0, %v1358
      %v1360 = vpop.f32.mrb[0].mxu0
      %v1361 = vpop.f32.mrb[0].mxu0
      %v1362 = vadd.f32 0.0, %v1361
      %v1363 = vpop.f32.mrb[0].mxu0
      %1364 = vmatprep.mubr.bf16.mxu0 0
      %1365 = vmatmul.mubr.bf16.gmra.mrb[0].mxu0 %v1129
      %v1366 = vpop.f32.mrb[0].mxu0
      %v1367 = vadd.f32 0.0, %v1366
      %v1368 = vpop.f32.mrb[0].mxu0
      %v1369 = vpop.f32.mrb[0].mxu0
      %v1370 = vadd.f32 0.0, %v1369
      %v1371 = vpop.f32.mrb[0].mxu0
      %1372 = vmatprep.mubr.bf16.mxu0 0
      %1373 = vmatmul.mubr.bf16.gmra.mrb[0].mxu0 %v1137
      %v1374 = vpop.f32.mrb[0].mxu0
      %v1375 = vadd.f32 0.0, %v1374
      %v1376 = vpop.f32.mrb[0].mxu0
      %v1377 = vpop.f32.mrb[0].mxu0
      %v1378 = vadd.f32 0.0, %v1377
      %v1379 = vpop.f32.mrb[0].mxu0
      %1380 = vdwg.mxu0
      %v1397 = vunpack.c.l.b16 %v955
      %v1398 = vunpack.c.l.b16 %v956
      %v1399 = vunpack.c.l.b16 %v957
      %v1400 = vunpack.c.l.b16 %v958
      %v1401 = vunpack.c.l.b16 %v959
      %v1402 = vunpack.c.l.b16 %v960
      %v1403 = vunpack.c.l.b16 %v961
      %v1404 = vunpack.c.l.b16 %v962
      %v1405 = vunpack.c.l.b16 %v963
      %v1406 = vunpack.c.l.b16 %v964
      %v1407 = vunpack.c.l.b16 %v965
      %v1408 = vunpack.c.l.b16 %v966
      %v1409 = vunpack.c.l.b16 %v967
      %v1410 = vunpack.c.l.b16 %v968
      %v1411 = vunpack.c.l.b16 %v969
      %v1412 = vunpack.c.l.b16 %v970
      %v1413 = vpack.c.b16 %v1398, %v1397
      %v1414 = vpack.c.b16 %v1400, %v1399
      %v1415 = vpack.c.b16 %v1402, %v1401
      %v1416 = vpack.c.b16 %v1404, %v1403
      %v1417 = vpack.c.b16 %v1406, %v1405
      %v1418 = vpack.c.b16 %v1408, %v1407
      %v1419 = vpack.c.b16 %v1410, %v1409
      %v1420 = vpack.c.b16 %v1412, %v1411
      %1429 = vmatprep.subr.bf16.mxu0 0
      %1430 = vmatpush1.bf16.msra.mxu0 %v1413
      %1431 = vmatprep.subr.bf16.mxu0 0
      %1432 = vmatpush1.bf16.msra.mxu0 %v1414
      %1433 = vmatprep.subr.bf16.mxu0 0
      %1434 = vmatpush1.bf16.msra.mxu0 %v1415
      %1435 = vmatprep.subr.bf16.mxu0 0
      %1436 = vmatpush1.bf16.msra.mxu0 %v1416
      %1437 = vmatprep.subr.bf16.mxu0 0
      %1438 = vmatpush1.bf16.msra.mxu0 %v1417
      %1439 = vmatprep.subr.bf16.mxu0 0
      %1440 = vmatpush1.bf16.msra.mxu0 %v1418
      %1441 = vmatprep.subr.bf16.mxu0 0
      %1442 = vmatpush1.bf16.msra.mxu0 %v1419
      %1443 = vmatprep.subr.bf16.mxu0 0
      %1444 = vmatpush1.bf16.msra.mxu0 %v1420
      %1445 = vmatprep.subr.bf16.mxu0 0
      %1446 = vmatpush1.bf16.msra.mxu0 0
      %1447 = vmatprep.subr.bf16.mxu0 0
      %1448 = vmatpush1.bf16.msra.mxu0 0
      %1449 = vmatprep.subr.bf16.mxu0 0
      %1450 = vmatpush1.bf16.msra.mxu0 0
      %1451 = vmatprep.subr.bf16.mxu0 0
      %1452 = vmatpush1.bf16.msra.mxu0 0
      %1453 = vmatprep.subr.bf16.mxu0 0
      %1454 = vmatpush1.bf16.msra.mxu0 0
      %1455 = vmatprep.subr.bf16.mxu0 0
      %1456 = vmatpush1.bf16.msra.mxu0 0
      %1457 = vmatprep.subr.bf16.mxu0 0
      %1458 = vmatpush1.bf16.msra.mxu0 0
      %1459 = vmatprep.subr.bf16.mxu0 0
      %1460 = vmatpush1.bf16.msra.mxu0 0
      %1461 = vmatprep.mubr.bf16.mxu0 0
      %1462 = vmatmul.mubr.bf16.gmra.mrb[0].mxu0 %v937
      %v1463 = vpop.f32.mrb[0].mxu0
      %v1464 = vadd.f32 %v1239, %v1463
      %v1465 = vpop.f32.mrb[0].mxu0
      %v1466 = vpop.f32.mrb[0].mxu0
      %v1467 = vadd.f32 %v1242, %v1466
      %v1468 = vpop.f32.mrb[0].mxu0
      %1469 = vmatprep.mubr.bf16.mxu0 0
      %1470 = vmatmul.mubr.bf16.gmra.mrb[0].mxu0 %v938
      %v1471 = vpop.f32.mrb[0].mxu0
      %v1472 = vadd.f32 %v1247, %v1471
      %v1473 = vpop.f32.mrb[0].mxu0
      %v1474 = vpop.f32.mrb[0].mxu0
      %v1475 = vadd.f32 %v1250, %v1474
      %v1476 = vpop.f32.mrb[0].mxu0
      %1477 = vmatprep.mubr.bf16.mxu0 0
      %1478 = vmatmul.mubr.bf16.gmra.mrb[0].mxu0 %v939
      %v1479 = vpop.f32.mrb[0].mxu0
      %v1480 = vadd.f32 %v1255, %v1479
      %v1481 = vpop.f32.mrb[0].mxu0
      %v1482 = vpop.f32.mrb[0].mxu0
      %v1483 = vadd.f32 %v1258, %v1482
      %v1484 = vpop.f32.mrb[0].mxu0
      %1485 = vmatprep.mubr.bf16.mxu0 0
      %1486 = vmatmul.mubr.bf16.gmra.mrb[0].mxu0 %v940
      %v1487 = vpop.f32.mrb[0].mxu0
      %v1488 = vadd.f32 %v1263, %v1487
      %v1489 = vpop.f32.mrb[0].mxu0
      %v1490 = vpop.f32.mrb[0].mxu0
      %v1491 = vadd.f32 %v1266, %v1490
      %v1492 = vpop.f32.mrb[0].mxu0
      %1493 = vmatprep.mubr.bf16.mxu0 0
      %1494 = vmatmul.mubr.bf16.gmra.mrb[0].mxu0 %v941
      %v1495 = vpop.f32.mrb[0].mxu0
      %v1496 = vadd.f32 %v1271, %v1495
      %v1497 = vpop.f32.mrb[0].mxu0
      %v1498 = vpop.f32.mrb[0].mxu0
      %v1499 = vadd.f32 %v1274, %v1498
      %v1500 = vpop.f32.mrb[0].mxu0
      %1501 = vmatprep.mubr.bf16.mxu0 0
      %1502 = vmatmul.mubr.bf16.gmra.mrb[0].mxu0 %v942
      %v1503 = vpop.f32.mrb[0].mxu0
      %v1504 = vadd.f32 %v1279, %v1503
      %v1505 = vpop.f32.mrb[0].mxu0
      %v1506 = vpop.f32.mrb[0].mxu0
      %v1507 = vadd.f32 %v1282, %v1506
      %v1508 = vpop.f32.mrb[0].mxu0
      %1509 = vmatprep.mubr.bf16.mxu0 0
      %1510 = vmatmul.mubr.bf16.gmra.mrb[0].mxu0 %v943
      %v1511 = vpop.f32.mrb[0].mxu0
      %v1512 = vadd.f32 %v1287, %v1511
      %v1513 = vpop.f32.mrb[0].mxu0
      %v1514 = vpop.f32.mrb[0].mxu0
      %v1515 = vadd.f32 %v1290, %v1514
      %v1516 = vpop.f32.mrb[0].mxu0
      %1517 = vmatprep.mubr.bf16.mxu0 0
      %1518 = vmatmul.mubr.bf16.gmra.mrb[0].mxu0 %v944
      %v1519 = vpop.f32.mrb[0].mxu0
      %v1520 = vadd.f32 %v1295, %v1519
      %v1521 = vpop.f32.mrb[0].mxu0
      %v1522 = vpop.f32.mrb[0].mxu0
      %v1523 = vadd.f32 %v1298, %v1522
      %v1524 = vpop.f32.mrb[0].mxu0
      %1525 = vmatprep.mubr.bf16.mxu0 0
      %1526 = vmatmul.mubr.bf16.gmra.mrb[0].mxu0 %v945
      %v1527 = vpop.f32.mrb[0].mxu0
      %v1528 = vadd.f32 %v1303, %v1527
      %v1529 = vpop.f32.mrb[0].mxu0
      %v1530 = vpop.f32.mrb[0].mxu0
      %v1531 = vadd.f32 %v1306, %v1530
      %v1532 = vpop.f32.mrb[0].mxu0
      %1533 = vmatprep.mubr.bf16.mxu0 0
      %1534 = vmatmul.mubr.bf16.gmra.mrb[0].mxu0 %v946
      %v1535 = vpop.f32.mrb[0].mxu0
      %v1536 = vadd.f32 %v1311, %v1535
      %v1537 = vpop.f32.mrb[0].mxu0
      %v1538 = vpop.f32.mrb[0].mxu0
      %v1539 = vadd.f32 %v1314, %v1538
      %v1540 = vpop.f32.mrb[0].mxu0
      %1541 = vmatprep.mubr.bf16.mxu0 0
      %1542 = vmatmul.mubr.bf16.gmra.mrb[0].mxu0 %v947
      %v1543 = vpop.f32.mrb[0].mxu0
      %v1544 = vadd.f32 %v1319, %v1543
      %v1545 = vpop.f32.mrb[0].mxu0
      %v1546 = vpop.f32.mrb[0].mxu0
      %v1547 = vadd.f32 %v1322, %v1546
      %v1548 = vpop.f32.mrb[0].mxu0
      %1549 = vmatprep.mubr.bf16.mxu0 0
      %1550 = vmatmul.mubr.bf16.gmra.mrb[0].mxu0 %v948
      %v1551 = vpop.f32.mrb[0].mxu0
      %v1552 = vadd.f32 %v1327, %v1551
      %v1553 = vpop.f32.mrb[0].mxu0
      %v1554 = vpop.f32.mrb[0].mxu0
      %v1555 = vadd.f32 %v1330, %v1554
      %v1556 = vpop.f32.mrb[0].mxu0
      %1557 = vmatprep.mubr.bf16.mxu0 0
      %1558 = vmatmul.mubr.bf16.gmra.mrb[0].mxu0 %v949
      %v1559 = vpop.f32.mrb[0].mxu0
      %v1560 = vadd.f32 %v1335, %v1559
      %v1561 = vpop.f32.mrb[0].mxu0
      %v1562 = vpop.f32.mrb[0].mxu0
      %v1563 = vadd.f32 %v1338, %v1562
      %v1564 = vpop.f32.mrb[0].mxu0
      %1565 = vmatprep.mubr.bf16.mxu0 0
      %1566 = vmatmul.mubr.bf16.gmra.mrb[0].mxu0 %v950
      %v1567 = vpop.f32.mrb[0].mxu0
      %v1568 = vadd.f32 %v1343, %v1567
      %v1569 = vpop.f32.mrb[0].mxu0
      %v1570 = vpop.f32.mrb[0].mxu0
      %v1571 = vadd.f32 %v1346, %v1570
      %v1572 = vpop.f32.mrb[0].mxu0
      %1573 = vmatprep.mubr.bf16.mxu0 0
      %1574 = vmatmul.mubr.bf16.gmra.mrb[0].mxu0 %v951
      %v1575 = vpop.f32.mrb[0].mxu0
      %v1576 = vadd.f32 %v1351, %v1575
      %v1577 = vpop.f32.mrb[0].mxu0
      %v1578 = vpop.f32.mrb[0].mxu0
      %v1579 = vadd.f32 %v1354, %v1578
      %v1580 = vpop.f32.mrb[0].mxu0
      %1581 = vmatprep.mubr.bf16.mxu0 0
      %1582 = vmatmul.mubr.bf16.gmra.mrb[0].mxu0 %v952
      %v1583 = vpop.f32.mrb[0].mxu0
      %v1584 = vadd.f32 %v1359, %v1583
      %v1585 = vpop.f32.mrb[0].mxu0
      %v1586 = vpop.f32.mrb[0].mxu0
      %v1587 = vadd.f32 %v1362, %v1586
      %v1588 = vpop.f32.mrb[0].mxu0
      %1589 = vmatprep.mubr.bf16.mxu0 0
      %1590 = vmatmul.mubr.bf16.gmra.mrb[0].mxu0 %v953
      %v1591 = vpop.f32.mrb[0].mxu0
      %v1592 = vadd.f32 %v1367, %v1591
      %v1593 = vpop.f32.mrb[0].mxu0
      %v1594 = vpop.f32.mrb[0].mxu0
      %v1595 = vadd.f32 %v1370, %v1594
      %v1596 = vpop.f32.mrb[0].mxu0
      %1597 = vmatprep.mubr.bf16.mxu0 0
      %1598 = vmatmul.mubr.bf16.gmra.mrb[0].mxu0 %v954
      %v1599 = vpop.f32.mrb[0].mxu0
      %v1600 = vadd.f32 %v1375, %v1599
      %v1601 = vpop.f32.mrb[0].mxu0
      %v1602 = vpop.f32.mrb[0].mxu0
      %v1603 = vadd.f32 %v1378, %v1602
      %v1604 = vpop.f32.mrb[0].mxu0
      %1605 = vdwg.mxu0
      %s1606 = scalar_lea.vmem %s4, 128
      %v1607 = vld [vmem:[%s1606] sm:$0xf]
      %v1608 = vld [vmem:[%s1606 + $0x4] sm:$0xf]
      %v1609 = vld [vmem:[%s1606 + $0x8] sm:$0xf]
      %v1610 = vld [vmem:[%s1606 + $0xc] sm:$0xf]
      %v1611 = vld [vmem:[%s1606 + $0x10] sm:$0xf]
      %v1612 = vld [vmem:[%s1606 + $0x14] sm:$0xf]
      %v1613 = vld [vmem:[%s1606 + $0x18] sm:$0xf]
      %v1614 = vld [vmem:[%s1606 + $0x1c] sm:$0xf]
      %v1615 = vld [vmem:[%s1606 + $0x20] sm:$0xf]
      %v1616 = vld [vmem:[%s1606 + $0x24] sm:$0xf]
      %v1617 = vld [vmem:[%s1606 + $0x28] sm:$0xf]
      %v1618 = vld [vmem:[%s1606 + $0x2c] sm:$0xf]
      %v1619 = vld [vmem:[%s1606 + $0x30] sm:$0xf]
      %v1620 = vld [vmem:[%s1606 + $0x34] sm:$0xf]
      %v1621 = vld [vmem:[%s1606 + $0x38] sm:$0xf]
      %v1622 = vld [vmem:[%s1606 + $0x3c] sm:$0xf]
      %vm1642 = vcmask 1046528
      %v1643 = vrot.slane %v937, 1
      %v1644 = vrot.slane %v938, 1
      %v1645 = vsel %vm1642, %v1643, %v1644
      %v1646 = vrot.slane %v939, 1
      %v1647 = vsel %vm1642, %v1644, %v1646
      %v1648 = vrot.slane %v940, 1
      %v1649 = vsel %vm1642, %v1646, %v1648
      %v1650 = vrot.slane %v941, 1
      %v1651 = vsel %vm1642, %v1648, %v1650
      %v1652 = vrot.slane %v942, 1
      %v1653 = vsel %vm1642, %v1650, %v1652
      %v1654 = vrot.slane %v943, 1
      %v1655 = vsel %vm1642, %v1652, %v1654
      %v1656 = vrot.slane %v944, 1
      %v1657 = vsel %vm1642, %v1654, %v1656
      %v1658 = vrot.slane %v945, 1
      %v1659 = vsel %vm1642, %v1656, %v1658
      %v1660 = vrot.slane %v946, 1
      %v1661 = vsel %vm1642, %v1658, %v1660
      %v1662 = vrot.slane %v947, 1
      %v1663 = vsel %vm1642, %v1660, %v1662
      %v1664 = vrot.slane %v948, 1
      %v1665 = vsel %vm1642, %v1662, %v1664
      %v1666 = vrot.slane %v949, 1
      %v1667 = vsel %vm1642, %v1664, %v1666
      %v1668 = vrot.slane %v950, 1
      %v1669 = vsel %vm1642, %v1666, %v1668
      %v1670 = vrot.slane %v951, 1
      %v1671 = vsel %vm1642, %v1668, %v1670
      %v1672 = vrot.slane %v952, 1
      %v1673 = vsel %vm1642, %v1670, %v1672
      %v1674 = vrot.slane %v953, 1
      %v1675 = vsel %vm1642, %v1672, %v1674
      %v1676 = vrot.slane %v954, 1
      %v1677 = vsel %vm1642, %v1674, %v1676
      %v1678 = vrot.slane %v971, 1
      %v1679 = vsel %vm1642, %v1676, %v1678
      %v1714 = vunpack.c.l.b16 %v1607
      %v1715 = vunpack.c.l.b16 %v1608
      %v1716 = vunpack.c.l.b16 %v1609
      %v1717 = vunpack.c.l.b16 %v1610
      %v1718 = vunpack.c.l.b16 %v1611
      %v1719 = vunpack.c.l.b16 %v1612
      %v1720 = vunpack.c.l.b16 %v1613
      %v1721 = vunpack.c.l.b16 %v1614
      %v1722 = vunpack.c.l.b16 %v1615
      %v1723 = vunpack.c.l.b16 %v1616
      %v1724 = vunpack.c.l.b16 %v1617
      %v1725 = vunpack.c.l.b16 %v1618
      %v1726 = vunpack.c.l.b16 %v1619
      %v1727 = vunpack.c.l.b16 %v1620
      %v1728 = vunpack.c.l.b16 %v1621
      %v1729 = vunpack.c.l.b16 %v1622
      %v1730 = vpack.c.b16 %v1715, %v1714
      %v1731 = vpack.c.b16 %v1717, %v1716
      %v1732 = vpack.c.b16 %v1719, %v1718
      %v1733 = vpack.c.b16 %v1721, %v1720
      %v1734 = vpack.c.b16 %v1723, %v1722
      %v1735 = vpack.c.b16 %v1725, %v1724
      %v1736 = vpack.c.b16 %v1727, %v1726
      %v1737 = vpack.c.b16 %v1729, %v1728
      %1746 = vmatprep.subr.bf16.mxu0 0
      %1747 = vmatpush1.bf16.msra.mxu0 %v1730
      %1748 = vmatprep.subr.bf16.mxu0 0
      %1749 = vmatpush1.bf16.msra.mxu0 %v1731
      %1750 = vmatprep.subr.bf16.mxu0 0
      %1751 = vmatpush1.bf16.msra.mxu0 %v1732
      %1752 = vmatprep.subr.bf16.mxu0 0
      %1753 = vmatpush1.bf16.msra.mxu0 %v1733
      %1754 = vmatprep.subr.bf16.mxu0 0
      %1755 = vmatpush1.bf16.msra.mxu0 %v1734
      %1756 = vmatprep.subr.bf16.mxu0 0
      %1757 = vmatpush1.bf16.msra.mxu0 %v1735
      %1758 = vmatprep.subr.bf16.mxu0 0
      %1759 = vmatpush1.bf16.msra.mxu0 %v1736
      %1760 = vmatprep.subr.bf16.mxu0 0
      %1761 = vmatpush1.bf16.msra.mxu0 %v1737
      %1762 = vmatprep.subr.bf16.mxu0 0
      %1763 = vmatpush1.bf16.msra.mxu0 0
      %1764 = vmatprep.subr.bf16.mxu0 0
      %1765 = vmatpush1.bf16.msra.mxu0 0
      %1766 = vmatprep.subr.bf16.mxu0 0
      %1767 = vmatpush1.bf16.msra.mxu0 0
      %1768 = vmatprep.subr.bf16.mxu0 0
      %1769 = vmatpush1.bf16.msra.mxu0 0
      %1770 = vmatprep.subr.bf16.mxu0 0
      %1771 = vmatpush1.bf16.msra.mxu0 0
      %1772 = vmatprep.subr.bf16.mxu0 0
      %1773 = vmatpush1.bf16.msra.mxu0 0
      %1774 = vmatprep.subr.bf16.mxu0 0
      %1775 = vmatpush1.bf16.msra.mxu0 0
      %1776 = vmatprep.subr.bf16.mxu0 0
      %1777 = vmatpush1.bf16.msra.mxu0 0
      %1778 = vmatprep.mubr.bf16.mxu0 0
      %1779 = vmatmul.mubr.bf16.gmra.mrb[0].mxu0 %v1645
      %v1780 = vpop.f32.mrb[0].mxu0
      %v1781 = vadd.f32 0.0, %v1780
      %v1782 = vpop.f32.mrb[0].mxu0
      %v1783 = vpop.f32.mrb[0].mxu0
      %v1784 = vadd.f32 0.0, %v1783
      %v1785 = vpop.f32.mrb[0].mxu0
      %1786 = vmatprep.mubr.bf16.mxu0 0
      %1787 = vmatmul.mubr.bf16.gmra.mrb[0].mxu0 %v1647
      %v1788 = vpop.f32.mrb[0].mxu0
      %v1789 = vadd.f32 0.0, %v1788
      %v1790 = vpop.f32.mrb[0].mxu0
      %v1791 = vpop.f32.mrb[0].mxu0
      %v1792 = vadd.f32 0.0, %v1791
      %v1793 = vpop.f32.mrb[0].mxu0
      %1794 = vmatprep.mubr.bf16.mxu0 0
      %1795 = vmatmul.mubr.bf16.gmra.mrb[0].mxu0 %v1649
      %v1796 = vpop.f32.mrb[0].mxu0
      %v1797 = vadd.f32 0.0, %v1796
      %v1798 = vpop.f32.mrb[0].mxu0
      %v1799 = vpop.f32.mrb[0].mxu0
      %v1800 = vadd.f32 0.0, %v1799
      %v1801 = vpop.f32.mrb[0].mxu0
      %1802 = vmatprep.mubr.bf16.mxu0 0
      %1803 = vmatmul.mubr.bf16.gmra.mrb[0].mxu0 %v1651
      %v1804 = vpop.f32.mrb[0].mxu0
      %v1805 = vadd.f32 0.0, %v1804
      %v1806 = vpop.f32.mrb[0].mxu0
      %v1807 = vpop.f32.mrb[0].mxu0
      %v1808 = vadd.f32 0.0, %v1807
      %v1809 = vpop.f32.mrb[0].mxu0
      %1810 = vmatprep.mubr.bf16.mxu0 0
      %1811 = vmatmul.mubr.bf16.gmra.mrb[0].mxu0 %v1653
      %v1812 = vpop.f32.mrb[0].mxu0
      %v1813 = vadd.f32 0.0, %v1812
      %v1814 = vpop.f32.mrb[0].mxu0
      %v1815 = vpop.f32.mrb[0].mxu0
      %v1816 = vadd.f32 0.0, %v1815
      %v1817 = vpop.f32.mrb[0].mxu0
      %1818 = vmatprep.mubr.bf16.mxu0 0
      %1819 = vmatmul.mubr.bf16.gmra.mrb[0].mxu0 %v1655
      %v1820 = vpop.f32.mrb[0].mxu0
      %v1821 = vadd.f32 0.0, %v1820
      %v1822 = vpop.f32.mrb[0].mxu0
      %v1823 = vpop.f32.mrb[0].mxu0
      %v1824 = vadd.f32 0.0, %v1823
      %v1825 = vpop.f32.mrb[0].mxu0
      %1826 = vmatprep.mubr.bf16.mxu0 0
      %1827 = vmatmul.mubr.bf16.gmra.mrb[0].mxu0 %v1657
      %v1828 = vpop.f32.mrb[0].mxu0
      %v1829 = vadd.f32 0.0, %v1828
      %v1830 = vpop.f32.mrb[0].mxu0
      %v1831 = vpop.f32.mrb[0].mxu0
      %v1832 = vadd.f32 0.0, %v1831
      %v1833 = vpop.f32.mrb[0].mxu0
      %1834 = vmatprep.mubr.bf16.mxu0 0
      %1835 = vmatmul.mubr.bf16.gmra.mrb[0].mxu0 %v1659
      %v1836 = vpop.f32.mrb[0].mxu0
      %v1837 = vadd.f32 0.0, %v1836
      %v1838 = vpop.f32.mrb[0].mxu0
      %v1839 = vpop.f32.mrb[0].mxu0
      %v1840 = vadd.f32 0.0, %v1839
      %v1841 = vpop.f32.mrb[0].mxu0
      %1842 = vmatprep.mubr.bf16.mxu0 0
      %1843 = vmatmul.mubr.bf16.gmra.mrb[0].mxu0 %v1661
      %v1844 = vpop.f32.mrb[0].mxu0
      %v1845 = vadd.f32 0.0, %v1844
      %v1846 = vpop.f32.mrb[0].mxu0
      %v1847 = vpop.f32.mrb[0].mxu0
      %v1848 = vadd.f32 0.0, %v1847
      %v1849 = vpop.f32.mrb[0].mxu0
      %1850 = vmatprep.mubr.bf16.mxu0 0
      %1851 = vmatmul.mubr.bf16.gmra.mrb[0].mxu0 %v1663
      %v1852 = vpop.f32.mrb[0].mxu0
      %v1853 = vadd.f32 0.0, %v1852
      %v1854 = vpop.f32.mrb[0].mxu0
      %v1855 = vpop.f32.mrb[0].mxu0
      %v1856 = vadd.f32 0.0, %v1855
      %v1857 = vpop.f32.mrb[0].mxu0
      %1858 = vmatprep.mubr.bf16.mxu0 0
      %1859 = vmatmul.mubr.bf16.gmra.mrb[0].mxu0 %v1665
      %v1860 = vpop.f32.mrb[0].mxu0
      %v1861 = vadd.f32 0.0, %v1860
      %v1862 = vpop.f32.mrb[0].mxu0
      %v1863 = vpop.f32.mrb[0].mxu0
      %v1864 = vadd.f32 0.0, %v1863
      %v1865 = vpop.f32.mrb[0].mxu0
      %1866 = vmatprep.mubr.bf16.mxu0 0
      %1867 = vmatmul.mubr.bf16.gmra.mrb[0].mxu0 %v1667
      %v1868 = vpop.f32.mrb[0].mxu0
      %v1869 = vadd.f32 0.0, %v1868
      %v1870 = vpop.f32.mrb[0].mxu0
      %v1871 = vpop.f32.mrb[0].mxu0
      %v1872 = vadd.f32 0.0, %v1871
      %v1873 = vpop.f32.mrb[0].mxu0
      %1874 = vmatprep.mubr.bf16.mxu0 0
      %1875 = vmatmul.mubr.bf16.gmra.mrb[0].mxu0 %v1669
      %v1876 = vpop.f32.mrb[0].mxu0
      %v1877 = vadd.f32 0.0, %v1876
      %v1878 = vpop.f32.mrb[0].mxu0
      %v1879 = vpop.f32.mrb[0].mxu0
      %v1880 = vadd.f32 0.0, %v1879
      %v1881 = vpop.f32.mrb[0].mxu0
      %1882 = vmatprep.mubr.bf16.mxu0 0
      %1883 = vmatmul.mubr.bf16.gmra.mrb[0].mxu0 %v1671
      %v1884 = vpop.f32.mrb[0].mxu0
      %v1885 = vadd.f32 0.0, %v1884
      %v1886 = vpop.f32.mrb[0].mxu0
      %v1887 = vpop.f32.mrb[0].mxu0
      %v1888 = vadd.f32 0.0, %v1887
      %v1889 = vpop.f32.mrb[0].mxu0
      %1890 = vmatprep.mubr.bf16.mxu0 0
      %1891 = vmatmul.mubr.bf16.gmra.mrb[0].mxu0 %v1673
      %v1892 = vpop.f32.mrb[0].mxu0
      %v1893 = vadd.f32 0.0, %v1892
      %v1894 = vpop.f32.mrb[0].mxu0
      %v1895 = vpop.f32.mrb[0].mxu0
      %v1896 = vadd.f32 0.0, %v1895
      %v1897 = vpop.f32.mrb[0].mxu0
      %1898 = vmatprep.mubr.bf16.mxu0 0
      %1899 = vmatmul.mubr.bf16.gmra.mrb[0].mxu0 %v1675
      %v1900 = vpop.f32.mrb[0].mxu0
      %v1901 = vadd.f32 0.0, %v1900
      %v1902 = vpop.f32.mrb[0].mxu0
      %v1903 = vpop.f32.mrb[0].mxu0
      %v1904 = vadd.f32 0.0, %v1903
      %v1905 = vpop.f32.mrb[0].mxu0
      %1906 = vmatprep.mubr.bf16.mxu0 0
      %1907 = vmatmul.mubr.bf16.gmra.mrb[0].mxu0 %v1677
      %v1908 = vpop.f32.mrb[0].mxu0
      %v1909 = vadd.f32 0.0, %v1908
      %v1910 = vpop.f32.mrb[0].mxu0
      %v1911 = vpop.f32.mrb[0].mxu0
      %v1912 = vadd.f32 0.0, %v1911
      %v1913 = vpop.f32.mrb[0].mxu0
      %1914 = vmatprep.mubr.bf16.mxu0 0
      %1915 = vmatmul.mubr.bf16.gmra.mrb[0].mxu0 %v1679
      %v1916 = vpop.f32.mrb[0].mxu0
      %v1917 = vadd.f32 0.0, %v1916
      %v1918 = vpop.f32.mrb[0].mxu0
      %v1919 = vpop.f32.mrb[0].mxu0
      %v1920 = vadd.f32 0.0, %v1919
      %v1921 = vpop.f32.mrb[0].mxu0
      %1922 = vdwg.mxu0
      %v1923 = vadd.f32 %v1464, %v1781
      %v1924 = vadd.f32 %v1467, %v1784
      %v1925 = vadd.f32 %v1472, %v1789
      %v1926 = vadd.f32 %v1475, %v1792
      %v1927 = vadd.f32 %v1480, %v1797
      %v1928 = vadd.f32 %v1483, %v1800
      %v1929 = vadd.f32 %v1488, %v1805
      %v1930 = vadd.f32 %v1491, %v1808
      %v1931 = vadd.f32 %v1496, %v1813
      %v1932 = vadd.f32 %v1499, %v1816
      %v1933 = vadd.f32 %v1504, %v1821
      %v1934 = vadd.f32 %v1507, %v1824
      %v1935 = vadd.f32 %v1512, %v1829
      %v1936 = vadd.f32 %v1515, %v1832
      %v1937 = vadd.f32 %v1520, %v1837
      %v1938 = vadd.f32 %v1523, %v1840
      %v1939 = vadd.f32 %v1528, %v1845
      %v1940 = vadd.f32 %v1531, %v1848
      %v1941 = vadd.f32 %v1536, %v1853
      %v1942 = vadd.f32 %v1539, %v1856
      %v1943 = vadd.f32 %v1544, %v1861
      %v1944 = vadd.f32 %v1547, %v1864
      %v1945 = vadd.f32 %v1552, %v1869
      %v1946 = vadd.f32 %v1555, %v1872
      %v1947 = vadd.f32 %v1560, %v1877
      %v1948 = vadd.f32 %v1563, %v1880
      %v1949 = vadd.f32 %v1568, %v1885
      %v1950 = vadd.f32 %v1571, %v1888
      %v1951 = vadd.f32 %v1576, %v1893
      %v1952 = vadd.f32 %v1579, %v1896
      %v1953 = vadd.f32 %v1584, %v1901
      %v1954 = vadd.f32 %v1587, %v1904
      %v1955 = vadd.f32 %v1592, %v1909
      %v1956 = vadd.f32 %v1595, %v1912
      %v1957 = vadd.f32 %v1600, %v1917
      %v1958 = vadd.f32 %v1603, %v1920
      %v1959 = vpack.c.bf16 %v933, %v932
      %v1960 = vpack.c.bf16 %v934, %v934
      %s1961 = scalar_lea.vmem %s4, 192
      %v1962 = vld [vmem:[%s1961] sm:$0xf]
      %v1963 = vld [vmem:[%s1961 + $0x4] sm:$0xf]
      %v1964 = vld [vmem:[%s1961 + $0x8] sm:$0xf]
      %v1965 = vld [vmem:[%s1961 + $0xc] sm:$0xf]
      %v1966 = vld [vmem:[%s1961 + $0x10] sm:$0xf]
      %v1967 = vld [vmem:[%s1961 + $0x14] sm:$0xf]
      %v1968 = vld [vmem:[%s1961 + $0x18] sm:$0xf]
      %v1969 = vld [vmem:[%s1961 + $0x1c] sm:$0xf]
      %v1970 = vld [vmem:[%s1961 + $0x20] sm:$0xf]
      %v1971 = vld [vmem:[%s1961 + $0x24] sm:$0xf]
      %v1972 = vld [vmem:[%s1961 + $0x28] sm:$0xf]
      %v1973 = vld [vmem:[%s1961 + $0x2c] sm:$0xf]
      %v1974 = vld [vmem:[%s1961 + $0x30] sm:$0xf]
      %v1975 = vld [vmem:[%s1961 + $0x34] sm:$0xf]
      %v1976 = vld [vmem:[%s1961 + $0x38] sm:$0xf]
      %v1977 = vld [vmem:[%s1961 + $0x3c] sm:$0xf]
      %v1980 = vrot.slane %v1959, 1
      %v1981 = vsel %vm1642, %v1676, %v1980
      %v1982 = vrot.slane %v1960, 1
      %v1983 = vsel %vm1642, %v1980, %v1982
      %v2002 = vunpack.c.l.b16 %v1962
      %v2003 = vunpack.c.l.b16 %v1963
      %v2004 = vunpack.c.l.b16 %v1964
      %v2005 = vunpack.c.l.b16 %v1965
      %v2006 = vunpack.c.l.b16 %v1966
      %v2007 = vunpack.c.l.b16 %v1967
      %v2008 = vunpack.c.l.b16 %v1968
      %v2009 = vunpack.c.l.b16 %v1969
      %v2010 = vunpack.c.l.b16 %v1970
      %v2011 = vunpack.c.l.b16 %v1971
      %v2012 = vunpack.c.l.b16 %v1972
      %v2013 = vunpack.c.l.b16 %v1973
      %v2014 = vunpack.c.l.b16 %v1974
      %v2015 = vunpack.c.l.b16 %v1975
      %v2016 = vunpack.c.l.b16 %v1976
      %v2017 = vunpack.c.l.b16 %v1977
      %v2018 = vpack.c.b16 %v2003, %v2002
      %v2019 = vpack.c.b16 %v2005, %v2004
      %v2020 = vpack.c.b16 %v2007, %v2006
      %v2021 = vpack.c.b16 %v2009, %v2008
      %v2022 = vpack.c.b16 %v2011, %v2010
      %v2023 = vpack.c.b16 %v2013, %v2012
      %v2024 = vpack.c.b16 %v2015, %v2014
      %v2025 = vpack.c.b16 %v2017, %v2016
      %2034 = vmatprep.subr.bf16.mxu0 0
      %2035 = vmatpush1.bf16.msra.mxu0 %v2018
      %2036 = vmatprep.subr.bf16.mxu0 0
      %2037 = vmatpush1.bf16.msra.mxu0 %v2019
      %2038 = vmatprep.subr.bf16.mxu0 0
      %2039 = vmatpush1.bf16.msra.mxu0 %v2020
      %2040 = vmatprep.subr.bf16.mxu0 0
      %2041 = vmatpush1.bf16.msra.mxu0 %v2021
      %2042 = vmatprep.subr.bf16.mxu0 0
      %2043 = vmatpush1.bf16.msra.mxu0 %v2022
      %2044 = vmatprep.subr.bf16.mxu0 0
      %2045 = vmatpush1.bf16.msra.mxu0 %v2023
      %2046 = vmatprep.subr.bf16.mxu0 0
      %2047 = vmatpush1.bf16.msra.mxu0 %v2024
      %2048 = vmatprep.subr.bf16.mxu0 0
      %2049 = vmatpush1.bf16.msra.mxu0 %v2025
      %2050 = vmatprep.subr.bf16.mxu0 0
      %2051 = vmatpush1.bf16.msra.mxu0 0
      %2052 = vmatprep.subr.bf16.mxu0 0
      %2053 = vmatpush1.bf16.msra.mxu0 0
      %2054 = vmatprep.subr.bf16.mxu0 0
      %2055 = vmatpush1.bf16.msra.mxu0 0
      %2056 = vmatprep.subr.bf16.mxu0 0
      %2057 = vmatpush1.bf16.msra.mxu0 0
      %2058 = vmatprep.subr.bf16.mxu0 0
      %2059 = vmatpush1.bf16.msra.mxu0 0
      %2060 = vmatprep.subr.bf16.mxu0 0
      %2061 = vmatpush1.bf16.msra.mxu0 0
      %2062 = vmatprep.subr.bf16.mxu0 0
      %2063 = vmatpush1.bf16.msra.mxu0 0
      %2064 = vmatprep.subr.bf16.mxu0 0
      %2065 = vmatpush1.bf16.msra.mxu0 0
      %2066 = vmatprep.mubr.bf16.mxu0 0
      %2067 = vmatmul.mubr.bf16.gmra.mrb[0].mxu0 %v1647
      %v2068 = vpop.f32.mrb[0].mxu0
      %v2069 = vadd.f32 0.0, %v2068
      %v2070 = vpop.f32.mrb[0].mxu0
      %v2071 = vpop.f32.mrb[0].mxu0
      %v2072 = vadd.f32 0.0, %v2071
      %v2073 = vpop.f32.mrb[0].mxu0
      %2074 = vmatprep.mubr.bf16.mxu0 0
      %2075 = vmatmul.mubr.bf16.gmra.mrb[0].mxu0 %v1649
      %v2076 = vpop.f32.mrb[0].mxu0
      %v2077 = vadd.f32 0.0, %v2076
      %v2078 = vpop.f32.mrb[0].mxu0
      %v2079 = vpop.f32.mrb[0].mxu0
      %v2080 = vadd.f32 0.0, %v2079
      %v2081 = vpop.f32.mrb[0].mxu0
      %2082 = vmatprep.mubr.bf16.mxu0 0
      %2083 = vmatmul.mubr.bf16.gmra.mrb[0].mxu0 %v1651
      %v2084 = vpop.f32.mrb[0].mxu0
      %v2085 = vadd.f32 0.0, %v2084
      %v2086 = vpop.f32.mrb[0].mxu0
      %v2087 = vpop.f32.mrb[0].mxu0
      %v2088 = vadd.f32 0.0, %v2087
      %v2089 = vpop.f32.mrb[0].mxu0
      %2090 = vmatprep.mubr.bf16.mxu0 0
      %2091 = vmatmul.mubr.bf16.gmra.mrb[0].mxu0 %v1653
      %v2092 = vpop.f32.mrb[0].mxu0
      %v2093 = vadd.f32 0.0, %v2092
      %v2094 = vpop.f32.mrb[0].mxu0
      %v2095 = vpop.f32.mrb[0].mxu0
      %v2096 = vadd.f32 0.0, %v2095
      %v2097 = vpop.f32.mrb[0].mxu0
      %2098 = vmatprep.mubr.bf16.mxu0 0
      %2099 = vmatmul.mubr.bf16.gmra.mrb[0].mxu0 %v1655
      %v2100 = vpop.f32.mrb[0].mxu0
      %v2101 = vadd.f32 0.0, %v2100
      %v2102 = vpop.f32.mrb[0].mxu0
      %v2103 = vpop.f32.mrb[0].mxu0
      %v2104 = vadd.f32 0.0, %v2103
      %v2105 = vpop.f32.mrb[0].mxu0
      %2106 = vmatprep.mubr.bf16.mxu0 0
      %2107 = vmatmul.mubr.bf16.gmra.mrb[0].mxu0 %v1657
      %v2108 = vpop.f32.mrb[0].mxu0
      %v2109 = vadd.f32 0.0, %v2108
      %v2110 = vpop.f32.mrb[0].mxu0
      %v2111 = vpop.f32.mrb[0].mxu0
      %v2112 = vadd.f32 0.0, %v2111
      %v2113 = vpop.f32.mrb[0].mxu0
      %2114 = vmatprep.mubr.bf16.mxu0 0
      %2115 = vmatmul.mubr.bf16.gmra.mrb[0].mxu0 %v1659
      %v2116 = vpop.f32.mrb[0].mxu0
      %v2117 = vadd.f32 0.0, %v2116
      %v2118 = vpop.f32.mrb[0].mxu0
      %v2119 = vpop.f32.mrb[0].mxu0
      %v2120 = vadd.f32 0.0, %v2119
      %v2121 = vpop.f32.mrb[0].mxu0
      %2122 = vmatprep.mubr.bf16.mxu0 0
      %2123 = vmatmul.mubr.bf16.gmra.mrb[0].mxu0 %v1661
      %v2124 = vpop.f32.mrb[0].mxu0
      %v2125 = vadd.f32 0.0, %v2124
      %v2126 = vpop.f32.mrb[0].mxu0
      %v2127 = vpop.f32.mrb[0].mxu0
      %v2128 = vadd.f32 0.0, %v2127
      %v2129 = vpop.f32.mrb[0].mxu0
      %2130 = vmatprep.mubr.bf16.mxu0 0
      %2131 = vmatmul.mubr.bf16.gmra.mrb[0].mxu0 %v1663
      %v2132 = vpop.f32.mrb[0].mxu0
      %v2133 = vadd.f32 0.0, %v2132
      %v2134 = vpop.f32.mrb[0].mxu0
      %v2135 = vpop.f32.mrb[0].mxu0
      %v2136 = vadd.f32 0.0, %v2135
      %v2137 = vpop.f32.mrb[0].mxu0
      %2138 = vmatprep.mubr.bf16.mxu0 0
      %2139 = vmatmul.mubr.bf16.gmra.mrb[0].mxu0 %v1665
      %v2140 = vpop.f32.mrb[0].mxu0
      %v2141 = vadd.f32 0.0, %v2140
      %v2142 = vpop.f32.mrb[0].mxu0
      %v2143 = vpop.f32.mrb[0].mxu0
      %v2144 = vadd.f32 0.0, %v2143
      %v2145 = vpop.f32.mrb[0].mxu0
      %2146 = vmatprep.mubr.bf16.mxu0 0
      %2147 = vmatmul.mubr.bf16.gmra.mrb[0].mxu0 %v1667
      %v2148 = vpop.f32.mrb[0].mxu0
      %v2149 = vadd.f32 0.0, %v2148
      %v2150 = vpop.f32.mrb[0].mxu0
      %v2151 = vpop.f32.mrb[0].mxu0
      %v2152 = vadd.f32 0.0, %v2151
      %v2153 = vpop.f32.mrb[0].mxu0
      %2154 = vmatprep.mubr.bf16.mxu0 0
      %2155 = vmatmul.mubr.bf16.gmra.mrb[0].mxu0 %v1669
      %v2156 = vpop.f32.mrb[0].mxu0
      %v2157 = vadd.f32 0.0, %v2156
      %v2158 = vpop.f32.mrb[0].mxu0
      %v2159 = vpop.f32.mrb[0].mxu0
      %v2160 = vadd.f32 0.0, %v2159
      %v2161 = vpop.f32.mrb[0].mxu0
      %2162 = vmatprep.mubr.bf16.mxu0 0
      %2163 = vmatmul.mubr.bf16.gmra.mrb[0].mxu0 %v1671
      %v2164 = vpop.f32.mrb[0].mxu0
      %v2165 = vadd.f32 0.0, %v2164
      %v2166 = vpop.f32.mrb[0].mxu0
      %v2167 = vpop.f32.mrb[0].mxu0
      %v2168 = vadd.f32 0.0, %v2167
      %v2169 = vpop.f32.mrb[0].mxu0
      %2170 = vmatprep.mubr.bf16.mxu0 0
      %2171 = vmatmul.mubr.bf16.gmra.mrb[0].mxu0 %v1673
      %v2172 = vpop.f32.mrb[0].mxu0
      %v2173 = vadd.f32 0.0, %v2172
      %v2174 = vpop.f32.mrb[0].mxu0
      %v2175 = vpop.f32.mrb[0].mxu0
      %v2176 = vadd.f32 0.0, %v2175
      %v2177 = vpop.f32.mrb[0].mxu0
      %2178 = vmatprep.mubr.bf16.mxu0 0
      %2179 = vmatmul.mubr.bf16.gmra.mrb[0].mxu0 %v1675
      %v2180 = vpop.f32.mrb[0].mxu0
      %v2181 = vadd.f32 0.0, %v2180
      %v2182 = vpop.f32.mrb[0].mxu0
      %v2183 = vpop.f32.mrb[0].mxu0
      %v2184 = vadd.f32 0.0, %v2183
      %v2185 = vpop.f32.mrb[0].mxu0
      %2186 = vmatprep.mubr.bf16.mxu0 0
      %2187 = vmatmul.mubr.bf16.gmra.mrb[0].mxu0 %v1677
      %v2188 = vpop.f32.mrb[0].mxu0
      %v2189 = vadd.f32 0.0, %v2188
      %v2190 = vpop.f32.mrb[0].mxu0
      %v2191 = vpop.f32.mrb[0].mxu0
      %v2192 = vadd.f32 0.0, %v2191
      %v2193 = vpop.f32.mrb[0].mxu0
      %2194 = vmatprep.mubr.bf16.mxu0 0
      %2195 = vmatmul.mubr.bf16.gmra.mrb[0].mxu0 %v1981
      %v2196 = vpop.f32.mrb[0].mxu0
      %v2197 = vadd.f32 0.0, %v2196
      %v2198 = vpop.f32.mrb[0].mxu0
      %v2199 = vpop.f32.mrb[0].mxu0
      %v2200 = vadd.f32 0.0, %v2199
      %v2201 = vpop.f32.mrb[0].mxu0
      %2202 = vmatprep.mubr.bf16.mxu0 0
      %2203 = vmatmul.mubr.bf16.gmra.mrb[0].mxu0 %v1983
      %v2204 = vpop.f32.mrb[0].mxu0
      %v2205 = vadd.f32 0.0, %v2204
      %v2206 = vpop.f32.mrb[0].mxu0
      %v2207 = vpop.f32.mrb[0].mxu0
      %v2208 = vadd.f32 0.0, %v2207
      %v2209 = vpop.f32.mrb[0].mxu0
      %2210 = vdwg.mxu0
      %v2211 = vadd.f32 %v1923, %v2069
      %v2212 = vadd.f32 %v1924, %v2072
      %v2213 = vadd.f32 %v1925, %v2077
      %v2214 = vadd.f32 %v1926, %v2080
      %v2215 = vadd.f32 %v1927, %v2085
      %v2216 = vadd.f32 %v1928, %v2088
      %v2217 = vadd.f32 %v1929, %v2093
      %v2218 = vadd.f32 %v1930, %v2096
      %v2219 = vadd.f32 %v1931, %v2101
      %v2220 = vadd.f32 %v1932, %v2104
      %v2221 = vadd.f32 %v1933, %v2109
      %v2222 = vadd.f32 %v1934, %v2112
      %v2223 = vadd.f32 %v1935, %v2117
      %v2224 = vadd.f32 %v1936, %v2120
      %v2225 = vadd.f32 %v1937, %v2125
      %v2226 = vadd.f32 %v1938, %v2128
      %v2227 = vadd.f32 %v1939, %v2133
      %v2228 = vadd.f32 %v1940, %v2136
      %v2229 = vadd.f32 %v1941, %v2141
      %v2230 = vadd.f32 %v1942, %v2144
      %v2231 = vadd.f32 %v1943, %v2149
      %v2232 = vadd.f32 %v1944, %v2152
      %v2233 = vadd.f32 %v1945, %v2157
      %v2234 = vadd.f32 %v1946, %v2160
      %v2235 = vadd.f32 %v1947, %v2165
      %v2236 = vadd.f32 %v1948, %v2168
      %v2237 = vadd.f32 %v1949, %v2173
      %v2238 = vadd.f32 %v1950, %v2176
      %v2239 = vadd.f32 %v1951, %v2181
      %v2240 = vadd.f32 %v1952, %v2184
      %v2241 = vadd.f32 %v1953, %v2189
      %v2242 = vadd.f32 %v1954, %v2192
      %v2243 = vadd.f32 %v1955, %v2197
      %v2244 = vadd.f32 %v1956, %v2200
      %v2245 = vadd.f32 %v1957, %v2205
      %v2246 = vadd.f32 %v1958, %v2208
      %s2247 = scalar_lea.vmem %s4, 256
      %v2248 = vld [vmem:[%s2247] sm:$0xf]
      %v2249 = vld [vmem:[%s2247 + $0x4] sm:$0xf]
      %v2250 = vld [vmem:[%s2247 + $0x8] sm:$0xf]
      %v2251 = vld [vmem:[%s2247 + $0xc] sm:$0xf]
      %v2252 = vld [vmem:[%s2247 + $0x10] sm:$0xf]
      %v2253 = vld [vmem:[%s2247 + $0x14] sm:$0xf]
      %v2254 = vld [vmem:[%s2247 + $0x18] sm:$0xf]
      %v2255 = vld [vmem:[%s2247 + $0x1c] sm:$0xf]
      %v2256 = vld [vmem:[%s2247 + $0x20] sm:$0xf]
      %v2257 = vld [vmem:[%s2247 + $0x24] sm:$0xf]
      %v2258 = vld [vmem:[%s2247 + $0x28] sm:$0xf]
      %v2259 = vld [vmem:[%s2247 + $0x2c] sm:$0xf]
      %v2260 = vld [vmem:[%s2247 + $0x30] sm:$0xf]
      %v2261 = vld [vmem:[%s2247 + $0x34] sm:$0xf]
      %v2262 = vld [vmem:[%s2247 + $0x38] sm:$0xf]
      %v2263 = vld [vmem:[%s2247 + $0x3c] sm:$0xf]
      %vm2264 = vsmask.f32 6400
      %v2265 = vrot.slane %v1002, 1
      %v2266 = vrot.slane %v998, 2
      %v2267 = vor.u32 %v2265, %v2266
      %v2268 = vrot.slane %v1010, 1
      %v2269 = vrot.slane %v1006, 2
      %v2270 = vor.u32 %v2268, %v2269
      %v2271 = vsel %vm2264, %v2267, %v2270
      %v2272 = vrot.slane %v1018, 1
      %v2273 = vrot.slane %v1014, 2
      %v2274 = vor.u32 %v2272, %v2273
      %v2275 = vsel %vm2264, %v2270, %v2274
      %v2276 = vrot.slane %v1026, 1
      %v2277 = vrot.slane %v1022, 2
      %v2278 = vor.u32 %v2276, %v2277
      %v2279 = vsel %vm2264, %v2274, %v2278
      %v2280 = vrot.slane %v1034, 1
      %v2281 = vrot.slane %v1030, 2
      %v2282 = vor.u32 %v2280, %v2281
      %v2283 = vsel %vm2264, %v2278, %v2282
      %v2284 = vrot.slane %v1042, 1
      %v2285 = vrot.slane %v1038, 2
      %v2286 = vor.u32 %v2284, %v2285
      %v2287 = vsel %vm2264, %v2282, %v2286
      %v2288 = vrot.slane %v1050, 1
      %v2289 = vrot.slane %v1046, 2
      %v2290 = vor.u32 %v2288, %v2289
      %v2291 = vsel %vm2264, %v2286, %v2290
      %v2292 = vrot.slane %v1058, 1
      %v2293 = vrot.slane %v1054, 2
      %v2294 = vor.u32 %v2292, %v2293
      %v2295 = vsel %vm2264, %v2290, %v2294
      %v2296 = vrot.slane %v1066, 1
      %v2297 = vrot.slane %v1062, 2
      %v2298 = vor.u32 %v2296, %v2297
      %v2299 = vsel %vm2264, %v2294, %v2298
      %v2300 = vrot.slane %v1074, 1
      %v2301 = vrot.slane %v1070, 2
      %v2302 = vor.u32 %v2300, %v2301
      %v2303 = vsel %vm2264, %v2298, %v2302
      %v2304 = vrot.slane %v1082, 1
      %v2305 = vrot.slane %v1078, 2
      %v2306 = vor.u32 %v2304, %v2305
      %v2307 = vsel %vm2264, %v2302, %v2306
      %v2308 = vrot.slane %v1090, 1
      %v2309 = vrot.slane %v1086, 2
      %v2310 = vor.u32 %v2308, %v2309
      %v2311 = vsel %vm2264, %v2306, %v2310
      %v2312 = vrot.slane %v1098, 1
      %v2313 = vrot.slane %v1094, 2
      %v2314 = vor.u32 %v2312, %v2313
      %v2315 = vsel %vm2264, %v2310, %v2314
      %v2316 = vrot.slane %v1106, 1
      %v2317 = vrot.slane %v1102, 2
      %v2318 = vor.u32 %v2316, %v2317
      %v2319 = vsel %vm2264, %v2314, %v2318
      %v2320 = vrot.slane %v1114, 1
      %v2321 = vrot.slane %v1110, 2
      %v2322 = vor.u32 %v2320, %v2321
      %v2323 = vsel %vm2264, %v2318, %v2322
      %v2324 = vrot.slane %v1122, 1
      %v2325 = vrot.slane %v1118, 2
      %v2326 = vor.u32 %v2324, %v2325
      %v2327 = vsel %vm2264, %v2322, %v2326
      %v2328 = vrot.slane %v1130, 1
      %v2329 = vrot.slane %v1126, 2
      %v2330 = vor.u32 %v2328, %v2329
      %v2331 = vsel %vm2264, %v2326, %v2330
      %v2333 = vshrl.u32 %v1959, 16
      %v2335 = vrot.slane %v2333, 1
      %v2336 = vshll.u32 %v1959, 16
      %v2338 = vrot.slane %v2336, 2
      %v2339 = vor.u32 %v2335, %v2338
      %v2340 = vsel %vm2264, %v2330, %v2339
      %v2342 = vshrl.u32 %v1960, 16
      %v2344 = vrot.slane %v2342, 1
      %v2345 = vshll.u32 %v1960, 16
      %v2347 = vrot.slane %v2345, 2
      %v2348 = vor.u32 %v2344, %v2347
      %v2349 = vsel %vm2264, %v2339, %v2348
      %v2384 = vunpack.c.l.b16 %v2248
      %v2385 = vunpack.c.l.b16 %v2249
      %v2386 = vunpack.c.l.b16 %v2250
      %v2387 = vunpack.c.l.b16 %v2251
      %v2388 = vunpack.c.l.b16 %v2252
      %v2389 = vunpack.c.l.b16 %v2253
      %v2390 = vunpack.c.l.b16 %v2254
      %v2391 = vunpack.c.l.b16 %v2255
      %v2392 = vunpack.c.l.b16 %v2256
      %v2393 = vunpack.c.l.b16 %v2257
      %v2394 = vunpack.c.l.b16 %v2258
      %v2395 = vunpack.c.l.b16 %v2259
      %v2396 = vunpack.c.l.b16 %v2260
      %v2397 = vunpack.c.l.b16 %v2261
      %v2398 = vunpack.c.l.b16 %v2262
      %v2399 = vunpack.c.l.b16 %v2263
      %v2400 = vpack.c.b16 %v2385, %v2384
      %v2401 = vpack.c.b16 %v2387, %v2386
      %v2402 = vpack.c.b16 %v2389, %v2388
      %v2403 = vpack.c.b16 %v2391, %v2390
      %v2404 = vpack.c.b16 %v2393, %v2392
      %v2405 = vpack.c.b16 %v2395, %v2394
      %v2406 = vpack.c.b16 %v2397, %v2396
      %v2407 = vpack.c.b16 %v2399, %v2398
      %2416 = vmatprep.subr.bf16.mxu0 0
      %2417 = vmatpush1.bf16.msra.mxu0 %v2400
      %2418 = vmatprep.subr.bf16.mxu0 0
      %2419 = vmatpush1.bf16.msra.mxu0 %v2401
      %2420 = vmatprep.subr.bf16.mxu0 0
      %2421 = vmatpush1.bf16.msra.mxu0 %v2402
      %2422 = vmatprep.subr.bf16.mxu0 0
      %2423 = vmatpush1.bf16.msra.mxu0 %v2403
      %2424 = vmatprep.subr.bf16.mxu0 0
      %2425 = vmatpush1.bf16.msra.mxu0 %v2404
      %2426 = vmatprep.subr.bf16.mxu0 0
      %2427 = vmatpush1.bf16.msra.mxu0 %v2405
      %2428 = vmatprep.subr.bf16.mxu0 0
      %2429 = vmatpush1.bf16.msra.mxu0 %v2406
      %2430 = vmatprep.subr.bf16.mxu0 0
      %2431 = vmatpush1.bf16.msra.mxu0 %v2407
      %2432 = vmatprep.subr.bf16.mxu0 0
      %2433 = vmatpush1.bf16.msra.mxu0 0
      %2434 = vmatprep.subr.bf16.mxu0 0
      %2435 = vmatpush1.bf16.msra.mxu0 0
      %2436 = vmatprep.subr.bf16.mxu0 0
      %2437 = vmatpush1.bf16.msra.mxu0 0
      %2438 = vmatprep.subr.bf16.mxu0 0
      %2439 = vmatpush1.bf16.msra.mxu0 0
      %2440 = vmatprep.subr.bf16.mxu0 0
      %2441 = vmatpush1.bf16.msra.mxu0 0
      %2442 = vmatprep.subr.bf16.mxu0 0
      %2443 = vmatpush1.bf16.msra.mxu0 0
      %2444 = vmatprep.subr.bf16.mxu0 0
      %2445 = vmatpush1.bf16.msra.mxu0 0
      %2446 = vmatprep.subr.bf16.mxu0 0
      %2447 = vmatpush1.bf16.msra.mxu0 0
      %2448 = vmatprep.mubr.bf16.mxu0 0
      %2449 = vmatmul.mubr.bf16.gmra.mrb[0].mxu0 %v2271
      %v2450 = vpop.f32.mrb[0].mxu0
      %v2451 = vadd.f32 0.0, %v2450
      %v2452 = vpop.f32.mrb[0].mxu0
      %v2453 = vpop.f32.mrb[0].mxu0
      %v2454 = vadd.f32 0.0, %v2453
      %v2455 = vpop.f32.mrb[0].mxu0
      %2456 = vmatprep.mubr.bf16.mxu0 0
      %2457 = vmatmul.mubr.bf16.gmra.mrb[0].mxu0 %v2275
      %v2458 = vpop.f32.mrb[0].mxu0
      %v2459 = vadd.f32 0.0, %v2458
      %v2460 = vpop.f32.mrb[0].mxu0
      %v2461 = vpop.f32.mrb[0].mxu0
      %v2462 = vadd.f32 0.0, %v2461
      %v2463 = vpop.f32.mrb[0].mxu0
      %2464 = vmatprep.mubr.bf16.mxu0 0
      %2465 = vmatmul.mubr.bf16.gmra.mrb[0].mxu0 %v2279
      %v2466 = vpop.f32.mrb[0].mxu0
      %v2467 = vadd.f32 0.0, %v2466
      %v2468 = vpop.f32.mrb[0].mxu0
      %v2469 = vpop.f32.mrb[0].mxu0
      %v2470 = vadd.f32 0.0, %v2469
      %v2471 = vpop.f32.mrb[0].mxu0
      %2472 = vmatprep.mubr.bf16.mxu0 0
      %2473 = vmatmul.mubr.bf16.gmra.mrb[0].mxu0 %v2283
      %v2474 = vpop.f32.mrb[0].mxu0
      %v2475 = vadd.f32 0.0, %v2474
      %v2476 = vpop.f32.mrb[0].mxu0
      %v2477 = vpop.f32.mrb[0].mxu0
      %v2478 = vadd.f32 0.0, %v2477
      %v2479 = vpop.f32.mrb[0].mxu0
      %2480 = vmatprep.mubr.bf16.mxu0 0
      %2481 = vmatmul.mubr.bf16.gmra.mrb[0].mxu0 %v2287
      %v2482 = vpop.f32.mrb[0].mxu0
      %v2483 = vadd.f32 0.0, %v2482
      %v2484 = vpop.f32.mrb[0].mxu0
      %v2485 = vpop.f32.mrb[0].mxu0
      %v2486 = vadd.f32 0.0, %v2485
      %v2487 = vpop.f32.mrb[0].mxu0
      %2488 = vmatprep.mubr.bf16.mxu0 0
      %2489 = vmatmul.mubr.bf16.gmra.mrb[0].mxu0 %v2291
      %v2490 = vpop.f32.mrb[0].mxu0
      %v2491 = vadd.f32 0.0, %v2490
      %v2492 = vpop.f32.mrb[0].mxu0
      %v2493 = vpop.f32.mrb[0].mxu0
      %v2494 = vadd.f32 0.0, %v2493
      %v2495 = vpop.f32.mrb[0].mxu0
      %2496 = vmatprep.mubr.bf16.mxu0 0
      %2497 = vmatmul.mubr.bf16.gmra.mrb[0].mxu0 %v2295
      %v2498 = vpop.f32.mrb[0].mxu0
      %v2499 = vadd.f32 0.0, %v2498
      %v2500 = vpop.f32.mrb[0].mxu0
      %v2501 = vpop.f32.mrb[0].mxu0
      %v2502 = vadd.f32 0.0, %v2501
      %v2503 = vpop.f32.mrb[0].mxu0
      %2504 = vmatprep.mubr.bf16.mxu0 0
      %2505 = vmatmul.mubr.bf16.gmra.mrb[0].mxu0 %v2299
      %v2506 = vpop.f32.mrb[0].mxu0
      %v2507 = vadd.f32 0.0, %v2506
      %v2508 = vpop.f32.mrb[0].mxu0
      %v2509 = vpop.f32.mrb[0].mxu0
      %v2510 = vadd.f32 0.0, %v2509
      %v2511 = vpop.f32.mrb[0].mxu0
      %2512 = vmatprep.mubr.bf16.mxu0 0
      %2513 = vmatmul.mubr.bf16.gmra.mrb[0].mxu0 %v2303
      %v2514 = vpop.f32.mrb[0].mxu0
      %v2515 = vadd.f32 0.0, %v2514
      %v2516 = vpop.f32.mrb[0].mxu0
      %v2517 = vpop.f32.mrb[0].mxu0
      %v2518 = vadd.f32 0.0, %v2517
      %v2519 = vpop.f32.mrb[0].mxu0
      %2520 = vmatprep.mubr.bf16.mxu0 0
      %2521 = vmatmul.mubr.bf16.gmra.mrb[0].mxu0 %v2307
      %v2522 = vpop.f32.mrb[0].mxu0
      %v2523 = vadd.f32 0.0, %v2522
      %v2524 = vpop.f32.mrb[0].mxu0
      %v2525 = vpop.f32.mrb[0].mxu0
      %v2526 = vadd.f32 0.0, %v2525
      %v2527 = vpop.f32.mrb[0].mxu0
      %2528 = vmatprep.mubr.bf16.mxu0 0
      %2529 = vmatmul.mubr.bf16.gmra.mrb[0].mxu0 %v2311
      %v2530 = vpop.f32.mrb[0].mxu0
      %v2531 = vadd.f32 0.0, %v2530
      %v2532 = vpop.f32.mrb[0].mxu0
      %v2533 = vpop.f32.mrb[0].mxu0
      %v2534 = vadd.f32 0.0, %v2533
      %v2535 = vpop.f32.mrb[0].mxu0
      %2536 = vmatprep.mubr.bf16.mxu0 0
      %2537 = vmatmul.mubr.bf16.gmra.mrb[0].mxu0 %v2315
      %v2538 = vpop.f32.mrb[0].mxu0
      %v2539 = vadd.f32 0.0, %v2538
      %v2540 = vpop.f32.mrb[0].mxu0
      %v2541 = vpop.f32.mrb[0].mxu0
      %v2542 = vadd.f32 0.0, %v2541
      %v2543 = vpop.f32.mrb[0].mxu0
      %2544 = vmatprep.mubr.bf16.mxu0 0
      %2545 = vmatmul.mubr.bf16.gmra.mrb[0].mxu0 %v2319
      %v2546 = vpop.f32.mrb[0].mxu0
      %v2547 = vadd.f32 0.0, %v2546
      %v2548 = vpop.f32.mrb[0].mxu0
      %v2549 = vpop.f32.mrb[0].mxu0
      %v2550 = vadd.f32 0.0, %v2549
      %v2551 = vpop.f32.mrb[0].mxu0
      %2552 = vmatprep.mubr.bf16.mxu0 0
      %2553 = vmatmul.mubr.bf16.gmra.mrb[0].mxu0 %v2323
      %v2554 = vpop.f32.mrb[0].mxu0
      %v2555 = vadd.f32 0.0, %v2554
      %v2556 = vpop.f32.mrb[0].mxu0
      %v2557 = vpop.f32.mrb[0].mxu0
      %v2558 = vadd.f32 0.0, %v2557
      %v2559 = vpop.f32.mrb[0].mxu0
      %2560 = vmatprep.mubr.bf16.mxu0 0
      %2561 = vmatmul.mubr.bf16.gmra.mrb[0].mxu0 %v2327
      %v2562 = vpop.f32.mrb[0].mxu0
      %v2563 = vadd.f32 0.0, %v2562
      %v2564 = vpop.f32.mrb[0].mxu0
      %v2565 = vpop.f32.mrb[0].mxu0
      %v2566 = vadd.f32 0.0, %v2565
      %v2567 = vpop.f32.mrb[0].mxu0
      %2568 = vmatprep.mubr.bf16.mxu0 0
      %2569 = vmatmul.mubr.bf16.gmra.mrb[0].mxu0 %v2331
      %v2570 = vpop.f32.mrb[0].mxu0
      %v2571 = vadd.f32 0.0, %v2570
      %v2572 = vpop.f32.mrb[0].mxu0
      %v2573 = vpop.f32.mrb[0].mxu0
      %v2574 = vadd.f32 0.0, %v2573
      %v2575 = vpop.f32.mrb[0].mxu0
      %2576 = vmatprep.mubr.bf16.mxu0 0
      %2577 = vmatmul.mubr.bf16.gmra.mrb[0].mxu0 %v2340
      %v2578 = vpop.f32.mrb[0].mxu0
      %v2579 = vadd.f32 0.0, %v2578
      %v2580 = vpop.f32.mrb[0].mxu0
      %v2581 = vpop.f32.mrb[0].mxu0
      %v2582 = vadd.f32 0.0, %v2581
      %v2583 = vpop.f32.mrb[0].mxu0
      %2584 = vmatprep.mubr.bf16.mxu0 0
      %2585 = vmatmul.mubr.bf16.gmra.mrb[0].mxu0 %v2349
      %v2586 = vpop.f32.mrb[0].mxu0
      %v2587 = vadd.f32 0.0, %v2586
      %v2588 = vpop.f32.mrb[0].mxu0
      %v2589 = vpop.f32.mrb[0].mxu0
      %v2590 = vadd.f32 0.0, %v2589
      %v2591 = vpop.f32.mrb[0].mxu0
      %2592 = vdwg.mxu0
      %v2593 = vadd.f32 %v2211, %v2451
      %v2594 = vadd.f32 %v2212, %v2454
      %v2595 = vadd.f32 %v2213, %v2459
      %v2596 = vadd.f32 %v2214, %v2462
      %v2597 = vadd.f32 %v2215, %v2467
      %v2598 = vadd.f32 %v2216, %v2470
      %v2599 = vadd.f32 %v2217, %v2475
      %v2600 = vadd.f32 %v2218, %v2478
      %v2601 = vadd.f32 %v2219, %v2483
      %v2602 = vadd.f32 %v2220, %v2486
      %v2603 = vadd.f32 %v2221, %v2491
      %v2604 = vadd.f32 %v2222, %v2494
      %v2605 = vadd.f32 %v2223, %v2499
      %v2606 = vadd.f32 %v2224, %v2502
      %v2607 = vadd.f32 %v2225, %v2507
      %v2608 = vadd.f32 %v2226, %v2510
      %v2609 = vadd.f32 %v2227, %v2515
      %v2610 = vadd.f32 %v2228, %v2518
      %v2611 = vadd.f32 %v2229, %v2523
      %v2612 = vadd.f32 %v2230, %v2526
      %v2613 = vadd.f32 %v2231, %v2531
      %v2614 = vadd.f32 %v2232, %v2534
      %v2615 = vadd.f32 %v2233, %v2539
      %v2616 = vadd.f32 %v2234, %v2542
      %v2617 = vadd.f32 %v2235, %v2547
      %v2618 = vadd.f32 %v2236, %v2550
      %v2619 = vadd.f32 %v2237, %v2555
      %v2620 = vadd.f32 %v2238, %v2558
      %v2621 = vadd.f32 %v2239, %v2563
      %v2622 = vadd.f32 %v2240, %v2566
      %v2623 = vadd.f32 %v2241, %v2571
      %v2624 = vadd.f32 %v2242, %v2574
      %v2625 = vadd.f32 %v2243, %v2579
      %v2626 = vadd.f32 %v2244, %v2582
      %v2627 = vadd.f32 %v2245, %v2587
      %v2628 = vadd.f32 %v2246, %v2590
      %s2629 = scalar_lea.vmem %s4, 320
      %v2630 = vld [vmem:[%s2629] sm:$0xf]
      %v2631 = vld [vmem:[%s2629 + $0x4] sm:$0xf]
      %v2632 = vld [vmem:[%s2629 + $0x8] sm:$0xf]
      %v2633 = vld [vmem:[%s2629 + $0xc] sm:$0xf]
      %v2634 = vld [vmem:[%s2629 + $0x10] sm:$0xf]
      %v2635 = vld [vmem:[%s2629 + $0x14] sm:$0xf]
      %v2636 = vld [vmem:[%s2629 + $0x18] sm:$0xf]
      %v2637 = vld [vmem:[%s2629 + $0x1c] sm:$0xf]
      %v2638 = vld [vmem:[%s2629 + $0x20] sm:$0xf]
      %v2639 = vld [vmem:[%s2629 + $0x24] sm:$0xf]
      %v2640 = vld [vmem:[%s2629 + $0x28] sm:$0xf]
      %v2641 = vld [vmem:[%s2629 + $0x2c] sm:$0xf]
      %v2642 = vld [vmem:[%s2629 + $0x30] sm:$0xf]
      %v2643 = vld [vmem:[%s2629 + $0x34] sm:$0xf]
      %v2644 = vld [vmem:[%s2629 + $0x38] sm:$0xf]
      %v2645 = vld [vmem:[%s2629 + $0x3c] sm:$0xf]
      %vm2646 = vcmask 1045504
      %v2647 = vrot.slane %v938, 2
      %v2648 = vrot.slane %v939, 2
      %v2649 = vsel %vm2646, %v2647, %v2648
      %v2650 = vrot.slane %v940, 2
      %v2651 = vsel %vm2646, %v2648, %v2650
      %v2652 = vrot.slane %v941, 2
      %v2653 = vsel %vm2646, %v2650, %v2652
      %v2654 = vrot.slane %v942, 2
      %v2655 = vsel %vm2646, %v2652, %v2654
      %v2656 = vrot.slane %v943, 2
      %v2657 = vsel %vm2646, %v2654, %v2656
      %v2658 = vrot.slane %v944, 2
      %v2659 = vsel %vm2646, %v2656, %v2658
      %v2660 = vrot.slane %v945, 2
      %v2661 = vsel %vm2646, %v2658, %v2660
      %v2662 = vrot.slane %v946, 2
      %v2663 = vsel %vm2646, %v2660, %v2662
      %v2664 = vrot.slane %v947, 2
      %v2665 = vsel %vm2646, %v2662, %v2664
      %v2666 = vrot.slane %v948, 2
      %v2667 = vsel %vm2646, %v2664, %v2666
      %v2668 = vrot.slane %v949, 2
      %v2669 = vsel %vm2646, %v2666, %v2668
      %v2670 = vrot.slane %v950, 2
      %v2671 = vsel %vm2646, %v2668, %v2670
      %v2672 = vrot.slane %v951, 2
      %v2673 = vsel %vm2646, %v2670, %v2672
      %v2674 = vrot.slane %v952, 2
      %v2675 = vsel %vm2646, %v2672, %v2674
      %v2676 = vrot.slane %v953, 2
      %v2677 = vsel %vm2646, %v2674, %v2676
      %v2678 = vrot.slane %v954, 2
      %v2679 = vsel %vm2646, %v2676, %v2678
      %v2680 = vrot.slane %v1959, 2
      %v2681 = vsel %vm2646, %v2678, %v2680
      %v2682 = vrot.slane %v1960, 2
      %v2683 = vsel %vm2646, %v2680, %v2682
      %v2718 = vunpack.c.l.b16 %v2630
      %v2719 = vunpack.c.l.b16 %v2631
      %v2720 = vunpack.c.l.b16 %v2632
      %v2721 = vunpack.c.l.b16 %v2633
      %v2722 = vunpack.c.l.b16 %v2634
      %v2723 = vunpack.c.l.b16 %v2635
      %v2724 = vunpack.c.l.b16 %v2636
      %v2725 = vunpack.c.l.b16 %v2637
      %v2726 = vunpack.c.l.b16 %v2638
      %v2727 = vunpack.c.l.b16 %v2639
      %v2728 = vunpack.c.l.b16 %v2640
      %v2729 = vunpack.c.l.b16 %v2641
      %v2730 = vunpack.c.l.b16 %v2642
      %v2731 = vunpack.c.l.b16 %v2643
      %v2732 = vunpack.c.l.b16 %v2644
      %v2733 = vunpack.c.l.b16 %v2645
      %v2734 = vpack.c.b16 %v2719, %v2718
      %v2735 = vpack.c.b16 %v2721, %v2720
      %v2736 = vpack.c.b16 %v2723, %v2722
      %v2737 = vpack.c.b16 %v2725, %v2724
      %v2738 = vpack.c.b16 %v2727, %v2726
      %v2739 = vpack.c.b16 %v2729, %v2728
      %v2740 = vpack.c.b16 %v2731, %v2730
      %v2741 = vpack.c.b16 %v2733, %v2732
      %2750 = vmatprep.subr.bf16.mxu0 0
      %2751 = vmatpush1.bf16.msra.mxu0 %v2734
      %2752 = vmatprep.subr.bf16.mxu0 0
      %2753 = vmatpush1.bf16.msra.mxu0 %v2735
      %2754 = vmatprep.subr.bf16.mxu0 0
      %2755 = vmatpush1.bf16.msra.mxu0 %v2736
      %2756 = vmatprep.subr.bf16.mxu0 0
      %2757 = vmatpush1.bf16.msra.mxu0 %v2737
      %2758 = vmatprep.subr.bf16.mxu0 0
      %2759 = vmatpush1.bf16.msra.mxu0 %v2738
      %2760 = vmatprep.subr.bf16.mxu0 0
      %2761 = vmatpush1.bf16.msra.mxu0 %v2739
      %2762 = vmatprep.subr.bf16.mxu0 0
      %2763 = vmatpush1.bf16.msra.mxu0 %v2740
      %2764 = vmatprep.subr.bf16.mxu0 0
      %2765 = vmatpush1.bf16.msra.mxu0 %v2741
      %2766 = vmatprep.subr.bf16.mxu0 0
      %2767 = vmatpush1.bf16.msra.mxu0 0
      %2768 = vmatprep.subr.bf16.mxu0 0
      %2769 = vmatpush1.bf16.msra.mxu0 0
      %2770 = vmatprep.subr.bf16.mxu0 0
      %2771 = vmatpush1.bf16.msra.mxu0 0
      %2772 = vmatprep.subr.bf16.mxu0 0
      %2773 = vmatpush1.bf16.msra.mxu0 0
      %2774 = vmatprep.subr.bf16.mxu0 0
      %2775 = vmatpush1.bf16.msra.mxu0 0
      %2776 = vmatprep.subr.bf16.mxu0 0
      %2777 = vmatpush1.bf16.msra.mxu0 0
      %2778 = vmatprep.subr.bf16.mxu0 0
      %2779 = vmatpush1.bf16.msra.mxu0 0
      %2780 = vmatprep.subr.bf16.mxu0 0
      %2781 = vmatpush1.bf16.msra.mxu0 0
      %2782 = vmatprep.mubr.bf16.mxu0 0
      %2783 = vmatmul.mubr.bf16.gmra.mrb[0].mxu0 %v2649
      %v2784 = vpop.f32.mrb[0].mxu0
      %v2785 = vadd.f32 0.0, %v2784
      %v2786 = vpop.f32.mrb[0].mxu0
      %v2787 = vpop.f32.mrb[0].mxu0
      %v2788 = vadd.f32 0.0, %v2787
      %v2789 = vpop.f32.mrb[0].mxu0
      %2790 = vmatprep.mubr.bf16.mxu0 0
      %2791 = vmatmul.mubr.bf16.gmra.mrb[0].mxu0 %v2651
      %v2792 = vpop.f32.mrb[0].mxu0
      %v2793 = vadd.f32 0.0, %v2792
      %v2794 = vpop.f32.mrb[0].mxu0
      %v2795 = vpop.f32.mrb[0].mxu0
      %v2796 = vadd.f32 0.0, %v2795
      %v2797 = vpop.f32.mrb[0].mxu0
      %2798 = vmatprep.mubr.bf16.mxu0 0
      %2799 = vmatmul.mubr.bf16.gmra.mrb[0].mxu0 %v2653
      %v2800 = vpop.f32.mrb[0].mxu0
      %v2801 = vadd.f32 0.0, %v2800
      %v2802 = vpop.f32.mrb[0].mxu0
      %v2803 = vpop.f32.mrb[0].mxu0
      %v2804 = vadd.f32 0.0, %v2803
      %v2805 = vpop.f32.mrb[0].mxu0
      %2806 = vmatprep.mubr.bf16.mxu0 0
      %2807 = vmatmul.mubr.bf16.gmra.mrb[0].mxu0 %v2655
      %v2808 = vpop.f32.mrb[0].mxu0
      %v2809 = vadd.f32 0.0, %v2808
      %v2810 = vpop.f32.mrb[0].mxu0
      %v2811 = vpop.f32.mrb[0].mxu0
      %v2812 = vadd.f32 0.0, %v2811
      %v2813 = vpop.f32.mrb[0].mxu0
      %2814 = vmatprep.mubr.bf16.mxu0 0
      %2815 = vmatmul.mubr.bf16.gmra.mrb[0].mxu0 %v2657
      %v2816 = vpop.f32.mrb[0].mxu0
      %v2817 = vadd.f32 0.0, %v2816
      %v2818 = vpop.f32.mrb[0].mxu0
      %v2819 = vpop.f32.mrb[0].mxu0
      %v2820 = vadd.f32 0.0, %v2819
      %v2821 = vpop.f32.mrb[0].mxu0
      %2822 = vmatprep.mubr.bf16.mxu0 0
      %2823 = vmatmul.mubr.bf16.gmra.mrb[0].mxu0 %v2659
      %v2824 = vpop.f32.mrb[0].mxu0
      %v2825 = vadd.f32 0.0, %v2824
      %v2826 = vpop.f32.mrb[0].mxu0
      %v2827 = vpop.f32.mrb[0].mxu0
      %v2828 = vadd.f32 0.0, %v2827
      %v2829 = vpop.f32.mrb[0].mxu0
      %2830 = vmatprep.mubr.bf16.mxu0 0
      %2831 = vmatmul.mubr.bf16.gmra.mrb[0].mxu0 %v2661
      %v2832 = vpop.f32.mrb[0].mxu0
      %v2833 = vadd.f32 0.0, %v2832
      %v2834 = vpop.f32.mrb[0].mxu0
      %v2835 = vpop.f32.mrb[0].mxu0
      %v2836 = vadd.f32 0.0, %v2835
      %v2837 = vpop.f32.mrb[0].mxu0
      %2838 = vmatprep.mubr.bf16.mxu0 0
      %2839 = vmatmul.mubr.bf16.gmra.mrb[0].mxu0 %v2663
      %v2840 = vpop.f32.mrb[0].mxu0
      %v2841 = vadd.f32 0.0, %v2840
      %v2842 = vpop.f32.mrb[0].mxu0
      %v2843 = vpop.f32.mrb[0].mxu0
      %v2844 = vadd.f32 0.0, %v2843
      %v2845 = vpop.f32.mrb[0].mxu0
      %2846 = vmatprep.mubr.bf16.mxu0 0
      %2847 = vmatmul.mubr.bf16.gmra.mrb[0].mxu0 %v2665
      %v2848 = vpop.f32.mrb[0].mxu0
      %v2849 = vadd.f32 0.0, %v2848
      %v2850 = vpop.f32.mrb[0].mxu0
      %v2851 = vpop.f32.mrb[0].mxu0
      %v2852 = vadd.f32 0.0, %v2851
      %v2853 = vpop.f32.mrb[0].mxu0
      %2854 = vmatprep.mubr.bf16.mxu0 0
      %2855 = vmatmul.mubr.bf16.gmra.mrb[0].mxu0 %v2667
      %v2856 = vpop.f32.mrb[0].mxu0
      %v2857 = vadd.f32 0.0, %v2856
      %v2858 = vpop.f32.mrb[0].mxu0
      %v2859 = vpop.f32.mrb[0].mxu0
      %v2860 = vadd.f32 0.0, %v2859
      %v2861 = vpop.f32.mrb[0].mxu0
      %2862 = vmatprep.mubr.bf16.mxu0 0
      %2863 = vmatmul.mubr.bf16.gmra.mrb[0].mxu0 %v2669
      %v2864 = vpop.f32.mrb[0].mxu0
      %v2865 = vadd.f32 0.0, %v2864
      %v2866 = vpop.f32.mrb[0].mxu0
      %v2867 = vpop.f32.mrb[0].mxu0
      %v2868 = vadd.f32 0.0, %v2867
      %v2869 = vpop.f32.mrb[0].mxu0
      %2870 = vmatprep.mubr.bf16.mxu0 0
      %2871 = vmatmul.mubr.bf16.gmra.mrb[0].mxu0 %v2671
      %v2872 = vpop.f32.mrb[0].mxu0
      %v2873 = vadd.f32 0.0, %v2872
      %v2874 = vpop.f32.mrb[0].mxu0
      %v2875 = vpop.f32.mrb[0].mxu0
      %v2876 = vadd.f32 0.0, %v2875
      %v2877 = vpop.f32.mrb[0].mxu0
      %2878 = vmatprep.mubr.bf16.mxu0 0
      %2879 = vmatmul.mubr.bf16.gmra.mrb[0].mxu0 %v2673
      %v2880 = vpop.f32.mrb[0].mxu0
      %v2881 = vadd.f32 0.0, %v2880
      %v2882 = vpop.f32.mrb[0].mxu0
      %v2883 = vpop.f32.mrb[0].mxu0
      %v2884 = vadd.f32 0.0, %v2883
      %v2885 = vpop.f32.mrb[0].mxu0
      %2886 = vmatprep.mubr.bf16.mxu0 0
      %2887 = vmatmul.mubr.bf16.gmra.mrb[0].mxu0 %v2675
      %v2888 = vpop.f32.mrb[0].mxu0
      %v2889 = vadd.f32 0.0, %v2888
      %v2890 = vpop.f32.mrb[0].mxu0
      %v2891 = vpop.f32.mrb[0].mxu0
      %v2892 = vadd.f32 0.0, %v2891
      %v2893 = vpop.f32.mrb[0].mxu0
      %2894 = vmatprep.mubr.bf16.mxu0 0
      %2895 = vmatmul.mubr.bf16.gmra.mrb[0].mxu0 %v2677
      %v2896 = vpop.f32.mrb[0].mxu0
      %v2897 = vadd.f32 0.0, %v2896
      %v2898 = vpop.f32.mrb[0].mxu0
      %v2899 = vpop.f32.mrb[0].mxu0
      %v2900 = vadd.f32 0.0, %v2899
      %v2901 = vpop.f32.mrb[0].mxu0
      %2902 = vmatprep.mubr.bf16.mxu0 0
      %2903 = vmatmul.mubr.bf16.gmra.mrb[0].mxu0 %v2679
      %v2904 = vpop.f32.mrb[0].mxu0
      %v2905 = vadd.f32 0.0, %v2904
      %v2906 = vpop.f32.mrb[0].mxu0
      %v2907 = vpop.f32.mrb[0].mxu0
      %v2908 = vadd.f32 0.0, %v2907
      %v2909 = vpop.f32.mrb[0].mxu0
      %2910 = vmatprep.mubr.bf16.mxu0 0
      %2911 = vmatmul.mubr.bf16.gmra.mrb[0].mxu0 %v2681
      %v2912 = vpop.f32.mrb[0].mxu0
      %v2913 = vadd.f32 0.0, %v2912
      %v2914 = vpop.f32.mrb[0].mxu0
      %v2915 = vpop.f32.mrb[0].mxu0
      %v2916 = vadd.f32 0.0, %v2915
      %v2917 = vpop.f32.mrb[0].mxu0
      %2918 = vmatprep.mubr.bf16.mxu0 0
      %2919 = vmatmul.mubr.bf16.gmra.mrb[0].mxu0 %v2683
      %v2920 = vpop.f32.mrb[0].mxu0
      %v2921 = vadd.f32 0.0, %v2920
      %v2922 = vpop.f32.mrb[0].mxu0
      %v2923 = vpop.f32.mrb[0].mxu0
      %v2924 = vadd.f32 0.0, %v2923
      %v2925 = vpop.f32.mrb[0].mxu0
      %2926 = vdwg.mxu0
      %v2927 = vadd.f32 %v2593, %v2785
      %v2928 = vadd.f32 %v2594, %v2788
      %v2929 = vadd.f32 %v2595, %v2793
      %v2930 = vadd.f32 %v2596, %v2796
      %v2931 = vadd.f32 %v2597, %v2801
      %v2932 = vadd.f32 %v2598, %v2804
      %v2933 = vadd.f32 %v2599, %v2809
      %v2934 = vadd.f32 %v2600, %v2812
      %v2935 = vadd.f32 %v2601, %v2817
      %v2936 = vadd.f32 %v2602, %v2820
      %v2937 = vadd.f32 %v2603, %v2825
      %v2938 = vadd.f32 %v2604, %v2828
      %v2939 = vadd.f32 %v2605, %v2833
      %v2940 = vadd.f32 %v2606, %v2836
      %v2941 = vadd.f32 %v2607, %v2841
      %v2942 = vadd.f32 %v2608, %v2844
      %v2943 = vadd.f32 %v2609, %v2849
      %v2944 = vadd.f32 %v2610, %v2852
      %v2945 = vadd.f32 %v2611, %v2857
      %v2946 = vadd.f32 %v2612, %v2860
      %v2947 = vadd.f32 %v2613, %v2865
      %v2948 = vadd.f32 %v2614, %v2868
      %v2949 = vadd.f32 %v2615, %v2873
      %v2950 = vadd.f32 %v2616, %v2876
      %v2951 = vadd.f32 %v2617, %v2881
      %v2952 = vadd.f32 %v2618, %v2884
      %v2953 = vadd.f32 %v2619, %v2889
      %v2954 = vadd.f32 %v2620, %v2892
      %v2955 = vadd.f32 %v2621, %v2897
      %v2956 = vadd.f32 %v2622, %v2900
      %v2957 = vadd.f32 %v2623, %v2905
      %v2958 = vadd.f32 %v2624, %v2908
      %v2959 = vadd.f32 %v2625, %v2913
      %v2960 = vadd.f32 %v2626, %v2916
      %v2961 = vadd.f32 %v2627, %v2921
      %v2962 = vadd.f32 %v2628, %v2924
      %v2963 = vpack.c.bf16 %v935, %v934
      %v2964 = vpack.c.bf16 %v936, %v936
      %s2965 = scalar_lea.vmem %s4, 384
      %v2966 = vld [vmem:[%s2965] sm:$0xf]
      %v2967 = vld [vmem:[%s2965 + $0x4] sm:$0xf]
      %v2968 = vld [vmem:[%s2965 + $0x8] sm:$0xf]
      %v2969 = vld [vmem:[%s2965 + $0xc] sm:$0xf]
      %v2970 = vld [vmem:[%s2965 + $0x10] sm:$0xf]
      %v2971 = vld [vmem:[%s2965 + $0x14] sm:$0xf]
      %v2972 = vld [vmem:[%s2965 + $0x18] sm:$0xf]
      %v2973 = vld [vmem:[%s2965 + $0x1c] sm:$0xf]
      %v2974 = vld [vmem:[%s2965 + $0x20] sm:$0xf]
      %v2975 = vld [vmem:[%s2965 + $0x24] sm:$0xf]
      %v2976 = vld [vmem:[%s2965 + $0x28] sm:$0xf]
      %v2977 = vld [vmem:[%s2965 + $0x2c] sm:$0xf]
      %v2978 = vld [vmem:[%s2965 + $0x30] sm:$0xf]
      %v2979 = vld [vmem:[%s2965 + $0x34] sm:$0xf]
      %v2980 = vld [vmem:[%s2965 + $0x38] sm:$0xf]
      %v2981 = vld [vmem:[%s2965 + $0x3c] sm:$0xf]
      %v2984 = vrot.slane %v2963, 2
      %v2985 = vsel %vm2646, %v2680, %v2984
      %v2986 = vrot.slane %v2964, 2
      %v2987 = vsel %vm2646, %v2984, %v2986
      %v3006 = vunpack.c.l.b16 %v2966
      %v3007 = vunpack.c.l.b16 %v2967
      %v3008 = vunpack.c.l.b16 %v2968
      %v3009 = vunpack.c.l.b16 %v2969
      %v3010 = vunpack.c.l.b16 %v2970
      %v3011 = vunpack.c.l.b16 %v2971
      %v3012 = vunpack.c.l.b16 %v2972
      %v3013 = vunpack.c.l.b16 %v2973
      %v3014 = vunpack.c.l.b16 %v2974
      %v3015 = vunpack.c.l.b16 %v2975
      %v3016 = vunpack.c.l.b16 %v2976
      %v3017 = vunpack.c.l.b16 %v2977
      %v3018 = vunpack.c.l.b16 %v2978
      %v3019 = vunpack.c.l.b16 %v2979
      %v3020 = vunpack.c.l.b16 %v2980
      %v3021 = vunpack.c.l.b16 %v2981
      %v3022 = vpack.c.b16 %v3007, %v3006
      %v3023 = vpack.c.b16 %v3009, %v3008
      %v3024 = vpack.c.b16 %v3011, %v3010
      %v3025 = vpack.c.b16 %v3013, %v3012
      %v3026 = vpack.c.b16 %v3015, %v3014
      %v3027 = vpack.c.b16 %v3017, %v3016
      %v3028 = vpack.c.b16 %v3019, %v3018
      %v3029 = vpack.c.b16 %v3021, %v3020
      %3038 = vmatprep.subr.bf16.mxu0 0
      %3039 = vmatpush1.bf16.msra.mxu0 %v3022
      %3040 = vmatprep.subr.bf16.mxu0 0
      %3041 = vmatpush1.bf16.msra.mxu0 %v3023
      %3042 = vmatprep.subr.bf16.mxu0 0
      %3043 = vmatpush1.bf16.msra.mxu0 %v3024
      %3044 = vmatprep.subr.bf16.mxu0 0
      %3045 = vmatpush1.bf16.msra.mxu0 %v3025
      %3046 = vmatprep.subr.bf16.mxu0 0
      %3047 = vmatpush1.bf16.msra.mxu0 %v3026
      %3048 = vmatprep.subr.bf16.mxu0 0
      %3049 = vmatpush1.bf16.msra.mxu0 %v3027
      %3050 = vmatprep.subr.bf16.mxu0 0
      %3051 = vmatpush1.bf16.msra.mxu0 %v3028
      %3052 = vmatprep.subr.bf16.mxu0 0
      %3053 = vmatpush1.bf16.msra.mxu0 %v3029
      %3054 = vmatprep.subr.bf16.mxu0 0
      %3055 = vmatpush1.bf16.msra.mxu0 0
      %3056 = vmatprep.subr.bf16.mxu0 0
      %3057 = vmatpush1.bf16.msra.mxu0 0
      %3058 = vmatprep.subr.bf16.mxu0 0
      %3059 = vmatpush1.bf16.msra.mxu0 0
      %3060 = vmatprep.subr.bf16.mxu0 0
      %3061 = vmatpush1.bf16.msra.mxu0 0
      %3062 = vmatprep.subr.bf16.mxu0 0
      %3063 = vmatpush1.bf16.msra.mxu0 0
      %3064 = vmatprep.subr.bf16.mxu0 0
      %3065 = vmatpush1.bf16.msra.mxu0 0
      %3066 = vmatprep.subr.bf16.mxu0 0
      %3067 = vmatpush1.bf16.msra.mxu0 0
      %3068 = vmatprep.subr.bf16.mxu0 0
      %3069 = vmatpush1.bf16.msra.mxu0 0
      %3070 = vmatprep.mubr.bf16.mxu0 0
      %3071 = vmatmul.mubr.bf16.gmra.mrb[0].mxu0 %v2651
      %v3072 = vpop.f32.mrb[0].mxu0
      %v3073 = vadd.f32 0.0, %v3072
      %v3074 = vpop.f32.mrb[0].mxu0
      %v3075 = vpop.f32.mrb[0].mxu0
      %v3076 = vadd.f32 0.0, %v3075
      %v3077 = vpop.f32.mrb[0].mxu0
      %3078 = vmatprep.mubr.bf16.mxu0 0
      %3079 = vmatmul.mubr.bf16.gmra.mrb[0].mxu0 %v2653
      %v3080 = vpop.f32.mrb[0].mxu0
      %v3081 = vadd.f32 0.0, %v3080
      %v3082 = vpop.f32.mrb[0].mxu0
      %v3083 = vpop.f32.mrb[0].mxu0
      %v3084 = vadd.f32 0.0, %v3083
      %v3085 = vpop.f32.mrb[0].mxu0
      %3086 = vmatprep.mubr.bf16.mxu0 0
      %3087 = vmatmul.mubr.bf16.gmra.mrb[0].mxu0 %v2655
      %v3088 = vpop.f32.mrb[0].mxu0
      %v3089 = vadd.f32 0.0, %v3088
      %v3090 = vpop.f32.mrb[0].mxu0
      %v3091 = vpop.f32.mrb[0].mxu0
      %v3092 = vadd.f32 0.0, %v3091
      %v3093 = vpop.f32.mrb[0].mxu0
      %3094 = vmatprep.mubr.bf16.mxu0 0
      %3095 = vmatmul.mubr.bf16.gmra.mrb[0].mxu0 %v2657
      %v3096 = vpop.f32.mrb[0].mxu0
      %v3097 = vadd.f32 0.0, %v3096
      %v3098 = vpop.f32.mrb[0].mxu0
      %v3099 = vpop.f32.mrb[0].mxu0
      %v3100 = vadd.f32 0.0, %v3099
      %v3101 = vpop.f32.mrb[0].mxu0
      %3102 = vmatprep.mubr.bf16.mxu0 0
      %3103 = vmatmul.mubr.bf16.gmra.mrb[0].mxu0 %v2659
      %v3104 = vpop.f32.mrb[0].mxu0
      %v3105 = vadd.f32 0.0, %v3104
      %v3106 = vpop.f32.mrb[0].mxu0
      %v3107 = vpop.f32.mrb[0].mxu0
      %v3108 = vadd.f32 0.0, %v3107
      %v3109 = vpop.f32.mrb[0].mxu0
      %3110 = vmatprep.mubr.bf16.mxu0 0
      %3111 = vmatmul.mubr.bf16.gmra.mrb[0].mxu0 %v2661
      %v3112 = vpop.f32.mrb[0].mxu0
      %v3113 = vadd.f32 0.0, %v3112
      %v3114 = vpop.f32.mrb[0].mxu0
      %v3115 = vpop.f32.mrb[0].mxu0
      %v3116 = vadd.f32 0.0, %v3115
      %v3117 = vpop.f32.mrb[0].mxu0
      %3118 = vmatprep.mubr.bf16.mxu0 0
      %3119 = vmatmul.mubr.bf16.gmra.mrb[0].mxu0 %v2663
      %v3120 = vpop.f32.mrb[0].mxu0
      %v3121 = vadd.f32 0.0, %v3120
      %v3122 = vpop.f32.mrb[0].mxu0
      %v3123 = vpop.f32.mrb[0].mxu0
      %v3124 = vadd.f32 0.0, %v3123
      %v3125 = vpop.f32.mrb[0].mxu0
      %3126 = vmatprep.mubr.bf16.mxu0 0
      %3127 = vmatmul.mubr.bf16.gmra.mrb[0].mxu0 %v2665
      %v3128 = vpop.f32.mrb[0].mxu0
      %v3129 = vadd.f32 0.0, %v3128
      %v3130 = vpop.f32.mrb[0].mxu0
      %v3131 = vpop.f32.mrb[0].mxu0
      %v3132 = vadd.f32 0.0, %v3131
      %v3133 = vpop.f32.mrb[0].mxu0
      %3134 = vmatprep.mubr.bf16.mxu0 0
      %3135 = vmatmul.mubr.bf16.gmra.mrb[0].mxu0 %v2667
      %v3136 = vpop.f32.mrb[0].mxu0
      %v3137 = vadd.f32 0.0, %v3136
      %v3138 = vpop.f32.mrb[0].mxu0
      %v3139 = vpop.f32.mrb[0].mxu0
      %v3140 = vadd.f32 0.0, %v3139
      %v3141 = vpop.f32.mrb[0].mxu0
      %3142 = vmatprep.mubr.bf16.mxu0 0
      %3143 = vmatmul.mubr.bf16.gmra.mrb[0].mxu0 %v2669
      %v3144 = vpop.f32.mrb[0].mxu0
      %v3145 = vadd.f32 0.0, %v3144
      %v3146 = vpop.f32.mrb[0].mxu0
      %v3147 = vpop.f32.mrb[0].mxu0
      %v3148 = vadd.f32 0.0, %v3147
      %v3149 = vpop.f32.mrb[0].mxu0
      %3150 = vmatprep.mubr.bf16.mxu0 0
      %3151 = vmatmul.mubr.bf16.gmra.mrb[0].mxu0 %v2671
      %v3152 = vpop.f32.mrb[0].mxu0
      %v3153 = vadd.f32 0.0, %v3152
      %v3154 = vpop.f32.mrb[0].mxu0
      %v3155 = vpop.f32.mrb[0].mxu0
      %v3156 = vadd.f32 0.0, %v3155
      %v3157 = vpop.f32.mrb[0].mxu0
      %3158 = vmatprep.mubr.bf16.mxu0 0
      %3159 = vmatmul.mubr.bf16.gmra.mrb[0].mxu0 %v2673
      %v3160 = vpop.f32.mrb[0].mxu0
      %v3161 = vadd.f32 0.0, %v3160
      %v3162 = vpop.f32.mrb[0].mxu0
      %v3163 = vpop.f32.mrb[0].mxu0
      %v3164 = vadd.f32 0.0, %v3163
      %v3165 = vpop.f32.mrb[0].mxu0
      %3166 = vmatprep.mubr.bf16.mxu0 0
      %3167 = vmatmul.mubr.bf16.gmra.mrb[0].mxu0 %v2675
      %v3168 = vpop.f32.mrb[0].mxu0
      %v3169 = vadd.f32 0.0, %v3168
      %v3170 = vpop.f32.mrb[0].mxu0
      %v3171 = vpop.f32.mrb[0].mxu0
      %v3172 = vadd.f32 0.0, %v3171
      %v3173 = vpop.f32.mrb[0].mxu0
      %3174 = vmatprep.mubr.bf16.mxu0 0
      %3175 = vmatmul.mubr.bf16.gmra.mrb[0].mxu0 %v2677
      %v3176 = vpop.f32.mrb[0].mxu0
      %v3177 = vadd.f32 0.0, %v3176
      %v3178 = vpop.f32.mrb[0].mxu0
      %v3179 = vpop.f32.mrb[0].mxu0
      %v3180 = vadd.f32 0.0, %v3179
      %v3181 = vpop.f32.mrb[0].mxu0
      %3182 = vmatprep.mubr.bf16.mxu0 0
      %3183 = vmatmul.mubr.bf16.gmra.mrb[0].mxu0 %v2679
      %v3184 = vpop.f32.mrb[0].mxu0
      %v3185 = vadd.f32 0.0, %v3184
      %v3186 = vpop.f32.mrb[0].mxu0
      %v3187 = vpop.f32.mrb[0].mxu0
      %v3188 = vadd.f32 0.0, %v3187
      %v3189 = vpop.f32.mrb[0].mxu0
      %3190 = vmatprep.mubr.bf16.mxu0 0
      %3191 = vmatmul.mubr.bf16.gmra.mrb[0].mxu0 %v2681
      %v3192 = vpop.f32.mrb[0].mxu0
      %v3193 = vadd.f32 0.0, %v3192
      %v3194 = vpop.f32.mrb[0].mxu0
      %v3195 = vpop.f32.mrb[0].mxu0
      %v3196 = vadd.f32 0.0, %v3195
      %v3197 = vpop.f32.mrb[0].mxu0
      %3198 = vmatprep.mubr.bf16.mxu0 0
      %3199 = vmatmul.mubr.bf16.gmra.mrb[0].mxu0 %v2985
      %v3200 = vpop.f32.mrb[0].mxu0
      %v3201 = vadd.f32 0.0, %v3200
      %v3202 = vpop.f32.mrb[0].mxu0
      %v3203 = vpop.f32.mrb[0].mxu0
      %v3204 = vadd.f32 0.0, %v3203
      %v3205 = vpop.f32.mrb[0].mxu0
      %3206 = vmatprep.mubr.bf16.mxu0 0
      %3207 = vmatmul.mubr.bf16.gmra.mrb[0].mxu0 %v2987
      %v3208 = vpop.f32.mrb[0].mxu0
      %v3209 = vadd.f32 0.0, %v3208
      %v3210 = vpop.f32.mrb[0].mxu0
      %v3211 = vpop.f32.mrb[0].mxu0
      %v3212 = vadd.f32 0.0, %v3211
      %v3213 = vpop.f32.mrb[0].mxu0
      %3214 = vdwg.mxu0
      %v3215 = vadd.f32 %v2927, %v3073
      %v3216 = vadd.f32 %v2928, %v3076
      %v3217 = vadd.f32 %v2929, %v3081
      %v3218 = vadd.f32 %v2930, %v3084
      %v3219 = vadd.f32 %v2931, %v3089
      %v3220 = vadd.f32 %v2932, %v3092
      %v3221 = vadd.f32 %v2933, %v3097
      %v3222 = vadd.f32 %v2934, %v3100
      %v3223 = vadd.f32 %v2935, %v3105
      %v3224 = vadd.f32 %v2936, %v3108
      %v3225 = vadd.f32 %v2937, %v3113
      %v3226 = vadd.f32 %v2938, %v3116
      %v3227 = vadd.f32 %v2939, %v3121
      %v3228 = vadd.f32 %v2940, %v3124
      %v3229 = vadd.f32 %v2941, %v3129
      %v3230 = vadd.f32 %v2942, %v3132
      %v3231 = vadd.f32 %v2943, %v3137
      %v3232 = vadd.f32 %v2944, %v3140
      %v3233 = vadd.f32 %v2945, %v3145
      %v3234 = vadd.f32 %v2946, %v3148
      %v3235 = vadd.f32 %v2947, %v3153
      %v3236 = vadd.f32 %v2948, %v3156
      %v3237 = vadd.f32 %v2949, %v3161
      %v3238 = vadd.f32 %v2950, %v3164
      %v3239 = vadd.f32 %v2951, %v3169
      %v3240 = vadd.f32 %v2952, %v3172
      %v3241 = vadd.f32 %v2953, %v3177
      %v3242 = vadd.f32 %v2954, %v3180
      %v3243 = vadd.f32 %v2955, %v3185
      %v3244 = vadd.f32 %v2956, %v3188
      %v3245 = vadd.f32 %v2957, %v3193
      %v3246 = vadd.f32 %v2958, %v3196
      %v3247 = vadd.f32 %v2959, %v3201
      %v3248 = vadd.f32 %v2960, %v3204
      %v3249 = vadd.f32 %v2961, %v3209
      %v3250 = vadd.f32 %v2962, %v3212
      %s3251 = scalar_lea.vmem %s4, 448
      %v3252 = vld [vmem:[%s3251] sm:$0xf]
      %v3253 = vld [vmem:[%s3251 + $0x4] sm:$0xf]
      %v3254 = vld [vmem:[%s3251 + $0x8] sm:$0xf]
      %v3255 = vld [vmem:[%s3251 + $0xc] sm:$0xf]
      %v3256 = vld [vmem:[%s3251 + $0x10] sm:$0xf]
      %v3257 = vld [vmem:[%s3251 + $0x14] sm:$0xf]
      %v3258 = vld [vmem:[%s3251 + $0x18] sm:$0xf]
      %v3259 = vld [vmem:[%s3251 + $0x1c] sm:$0xf]
      %v3260 = vld [vmem:[%s3251 + $0x20] sm:$0xf]
      %v3261 = vld [vmem:[%s3251 + $0x24] sm:$0xf]
      %v3262 = vld [vmem:[%s3251 + $0x28] sm:$0xf]
      %v3263 = vld [vmem:[%s3251 + $0x2c] sm:$0xf]
      %v3264 = vld [vmem:[%s3251 + $0x30] sm:$0xf]
      %v3265 = vld [vmem:[%s3251 + $0x34] sm:$0xf]
      %v3266 = vld [vmem:[%s3251 + $0x38] sm:$0xf]
      %v3267 = vld [vmem:[%s3251 + $0x3c] sm:$0xf]
      %vm3268 = vsmask.f32 5376
      %v3269 = vrot.slane %v1010, 2
      %v3270 = vrot.slane %v1006, 3
      %v3271 = vor.u32 %v3269, %v3270
      %v3272 = vrot.slane %v1018, 2
      %v3273 = vrot.slane %v1014, 3
      %v3274 = vor.u32 %v3272, %v3273
      %v3275 = vsel %vm3268, %v3271, %v3274
      %v3276 = vrot.slane %v1026, 2
      %v3277 = vrot.slane %v1022, 3
      %v3278 = vor.u32 %v3276, %v3277
      %v3279 = vsel %vm3268, %v3274, %v3278
      %v3280 = vrot.slane %v1034, 2
      %v3281 = vrot.slane %v1030, 3
      %v3282 = vor.u32 %v3280, %v3281
      %v3283 = vsel %vm3268, %v3278, %v3282
      %v3284 = vrot.slane %v1042, 2
      %v3285 = vrot.slane %v1038, 3
      %v3286 = vor.u32 %v3284, %v3285
      %v3287 = vsel %vm3268, %v3282, %v3286
      %v3288 = vrot.slane %v1050, 2
      %v3289 = vrot.slane %v1046, 3
      %v3290 = vor.u32 %v3288, %v3289
      %v3291 = vsel %vm3268, %v3286, %v3290
      %v3292 = vrot.slane %v1058, 2
      %v3293 = vrot.slane %v1054, 3
      %v3294 = vor.u32 %v3292, %v3293
      %v3295 = vsel %vm3268, %v3290, %v3294
      %v3296 = vrot.slane %v1066, 2
      %v3297 = vrot.slane %v1062, 3
      %v3298 = vor.u32 %v3296, %v3297
      %v3299 = vsel %vm3268, %v3294, %v3298
      %v3300 = vrot.slane %v1074, 2
      %v3301 = vrot.slane %v1070, 3
      %v3302 = vor.u32 %v3300, %v3301
      %v3303 = vsel %vm3268, %v3298, %v3302
      %v3304 = vrot.slane %v1082, 2
      %v3305 = vrot.slane %v1078, 3
      %v3306 = vor.u32 %v3304, %v3305
      %v3307 = vsel %vm3268, %v3302, %v3306
      %v3308 = vrot.slane %v1090, 2
      %v3309 = vrot.slane %v1086, 3
      %v3310 = vor.u32 %v3308, %v3309
      %v3311 = vsel %vm3268, %v3306, %v3310
      %v3312 = vrot.slane %v1098, 2
      %v3313 = vrot.slane %v1094, 3
      %v3314 = vor.u32 %v3312, %v3313
      %v3315 = vsel %vm3268, %v3310, %v3314
      %v3316 = vrot.slane %v1106, 2
      %v3317 = vrot.slane %v1102, 3
      %v3318 = vor.u32 %v3316, %v3317
      %v3319 = vsel %vm3268, %v3314, %v3318
      %v3320 = vrot.slane %v1114, 2
      %v3321 = vrot.slane %v1110, 3
      %v3322 = vor.u32 %v3320, %v3321
      %v3323 = vsel %vm3268, %v3318, %v3322
      %v3324 = vrot.slane %v1122, 2
      %v3325 = vrot.slane %v1118, 3
      %v3326 = vor.u32 %v3324, %v3325
      %v3327 = vsel %vm3268, %v3322, %v3326
      %v3328 = vrot.slane %v1130, 2
      %v3329 = vrot.slane %v1126, 3
      %v3330 = vor.u32 %v3328, %v3329
      %v3331 = vsel %vm3268, %v3326, %v3330
      %v3332 = vrot.slane %v2333, 2
      %v3333 = vrot.slane %v2336, 3
      %v3334 = vor.u32 %v3332, %v3333
      %v3335 = vsel %vm3268, %v3330, %v3334
      %v3337 = vshrl.u32 %v2963, 16
      %v3339 = vrot.slane %v3337, 2
      %v3340 = vshll.u32 %v2963, 16
      %v3342 = vrot.slane %v3340, 3
      %v3343 = vor.u32 %v3339, %v3342
      %v3344 = vsel %vm3268, %v3334, %v3343
      %v3346 = vshrl.u32 %v2964, 16
      %v3348 = vrot.slane %v3346, 2
      %v3349 = vshll.u32 %v2964, 16
      %v3351 = vrot.slane %v3349, 3
      %v3352 = vor.u32 %v3348, %v3351
      %v3353 = vsel %vm3268, %v3343, %v3352
      %v3388 = vunpack.c.l.b16 %v3252
      %v3389 = vunpack.c.l.b16 %v3253
      %v3390 = vunpack.c.l.b16 %v3254
      %v3391 = vunpack.c.l.b16 %v3255
      %v3392 = vunpack.c.l.b16 %v3256
      %v3393 = vunpack.c.l.b16 %v3257
      %v3394 = vunpack.c.l.b16 %v3258
      %v3395 = vunpack.c.l.b16 %v3259
      %v3396 = vunpack.c.l.b16 %v3260
      %v3397 = vunpack.c.l.b16 %v3261
      %v3398 = vunpack.c.l.b16 %v3262
      %v3399 = vunpack.c.l.b16 %v3263
      %v3400 = vunpack.c.l.b16 %v3264
      %v3401 = vunpack.c.l.b16 %v3265
      %v3402 = vunpack.c.l.b16 %v3266
      %v3403 = vunpack.c.l.b16 %v3267
      %v3404 = vpack.c.b16 %v3389, %v3388
      %v3405 = vpack.c.b16 %v3391, %v3390
      %v3406 = vpack.c.b16 %v3393, %v3392
      %v3407 = vpack.c.b16 %v3395, %v3394
      %v3408 = vpack.c.b16 %v3397, %v3396
      %v3409 = vpack.c.b16 %v3399, %v3398
      %v3410 = vpack.c.b16 %v3401, %v3400
      %v3411 = vpack.c.b16 %v3403, %v3402
      %3420 = vmatprep.subr.bf16.mxu0 0
      %3421 = vmatpush1.bf16.msra.mxu0 %v3404
      %3422 = vmatprep.subr.bf16.mxu0 0
      %3423 = vmatpush1.bf16.msra.mxu0 %v3405
      %3424 = vmatprep.subr.bf16.mxu0 0
      %3425 = vmatpush1.bf16.msra.mxu0 %v3406
      %3426 = vmatprep.subr.bf16.mxu0 0
      %3427 = vmatpush1.bf16.msra.mxu0 %v3407
      %3428 = vmatprep.subr.bf16.mxu0 0
      %3429 = vmatpush1.bf16.msra.mxu0 %v3408
      %3430 = vmatprep.subr.bf16.mxu0 0
      %3431 = vmatpush1.bf16.msra.mxu0 %v3409
      %3432 = vmatprep.subr.bf16.mxu0 0
      %3433 = vmatpush1.bf16.msra.mxu0 %v3410
      %3434 = vmatprep.subr.bf16.mxu0 0
      %3435 = vmatpush1.bf16.msra.mxu0 %v3411
      %3436 = vmatprep.subr.bf16.mxu0 0
      %3437 = vmatpush1.bf16.msra.mxu0 0
      %3438 = vmatprep.subr.bf16.mxu0 0
      %3439 = vmatpush1.bf16.msra.mxu0 0
      %3440 = vmatprep.subr.bf16.mxu0 0
      %3441 = vmatpush1.bf16.msra.mxu0 0
      %3442 = vmatprep.subr.bf16.mxu0 0
      %3443 = vmatpush1.bf16.msra.mxu0 0
      %3444 = vmatprep.subr.bf16.mxu0 0
      %3445 = vmatpush1.bf16.msra.mxu0 0
      %3446 = vmatprep.subr.bf16.mxu0 0
      %3447 = vmatpush1.bf16.msra.mxu0 0
      %3448 = vmatprep.subr.bf16.mxu0 0
      %3449 = vmatpush1.bf16.msra.mxu0 0
      %3450 = vmatprep.subr.bf16.mxu0 0
      %3451 = vmatpush1.bf16.msra.mxu0 0
      %3452 = vmatprep.mubr.bf16.mxu0 0
      %3453 = vmatmul.mubr.bf16.gmra.mrb[0].mxu0 %v3275
      %v3454 = vpop.f32.mrb[0].mxu0
      %v3455 = vadd.f32 0.0, %v3454
      %v3456 = vpop.f32.mrb[0].mxu0
      %v3457 = vpop.f32.mrb[0].mxu0
      %v3458 = vadd.f32 0.0, %v3457
      %v3459 = vpop.f32.mrb[0].mxu0
      %3460 = vmatprep.mubr.bf16.mxu0 0
      %3461 = vmatmul.mubr.bf16.gmra.mrb[0].mxu0 %v3279
      %v3462 = vpop.f32.mrb[0].mxu0
      %v3463 = vadd.f32 0.0, %v3462
      %v3464 = vpop.f32.mrb[0].mxu0
      %v3465 = vpop.f32.mrb[0].mxu0
      %v3466 = vadd.f32 0.0, %v3465
      %v3467 = vpop.f32.mrb[0].mxu0
      %3468 = vmatprep.mubr.bf16.mxu0 0
      %3469 = vmatmul.mubr.bf16.gmra.mrb[0].mxu0 %v3283
      %v3470 = vpop.f32.mrb[0].mxu0
      %v3471 = vadd.f32 0.0, %v3470
      %v3472 = vpop.f32.mrb[0].mxu0
      %v3473 = vpop.f32.mrb[0].mxu0
      %v3474 = vadd.f32 0.0, %v3473
      %v3475 = vpop.f32.mrb[0].mxu0
      %3476 = vmatprep.mubr.bf16.mxu0 0
      %3477 = vmatmul.mubr.bf16.gmra.mrb[0].mxu0 %v3287
      %v3478 = vpop.f32.mrb[0].mxu0
      %v3479 = vadd.f32 0.0, %v3478
      %v3480 = vpop.f32.mrb[0].mxu0
      %v3481 = vpop.f32.mrb[0].mxu0
      %v3482 = vadd.f32 0.0, %v3481
      %v3483 = vpop.f32.mrb[0].mxu0
      %3484 = vmatprep.mubr.bf16.mxu0 0
      %3485 = vmatmul.mubr.bf16.gmra.mrb[0].mxu0 %v3291
      %v3486 = vpop.f32.mrb[0].mxu0
      %v3487 = vadd.f32 0.0, %v3486
      %v3488 = vpop.f32.mrb[0].mxu0
      %v3489 = vpop.f32.mrb[0].mxu0
      %v3490 = vadd.f32 0.0, %v3489
      %v3491 = vpop.f32.mrb[0].mxu0
      %3492 = vmatprep.mubr.bf16.mxu0 0
      %3493 = vmatmul.mubr.bf16.gmra.mrb[0].mxu0 %v3295
      %v3494 = vpop.f32.mrb[0].mxu0
      %v3495 = vadd.f32 0.0, %v3494
      %v3496 = vpop.f32.mrb[0].mxu0
      %v3497 = vpop.f32.mrb[0].mxu0
      %v3498 = vadd.f32 0.0, %v3497
      %v3499 = vpop.f32.mrb[0].mxu0
      %3500 = vmatprep.mubr.bf16.mxu0 0
      %3501 = vmatmul.mubr.bf16.gmra.mrb[0].mxu0 %v3299
      %v3502 = vpop.f32.mrb[0].mxu0
      %v3503 = vadd.f32 0.0, %v3502
      %v3504 = vpop.f32.mrb[0].mxu0
      %v3505 = vpop.f32.mrb[0].mxu0
      %v3506 = vadd.f32 0.0, %v3505
      %v3507 = vpop.f32.mrb[0].mxu0
      %3508 = vmatprep.mubr.bf16.mxu0 0
      %3509 = vmatmul.mubr.bf16.gmra.mrb[0].mxu0 %v3303
      %v3510 = vpop.f32.mrb[0].mxu0
      %v3511 = vadd.f32 0.0, %v3510
      %v3512 = vpop.f32.mrb[0].mxu0
      %v3513 = vpop.f32.mrb[0].mxu0
      %v3514 = vadd.f32 0.0, %v3513
      %v3515 = vpop.f32.mrb[0].mxu0
      %3516 = vmatprep.mubr.bf16.mxu0 0
      %3517 = vmatmul.mubr.bf16.gmra.mrb[0].mxu0 %v3307
      %v3518 = vpop.f32.mrb[0].mxu0
      %v3519 = vadd.f32 0.0, %v3518
      %v3520 = vpop.f32.mrb[0].mxu0
      %v3521 = vpop.f32.mrb[0].mxu0
      %v3522 = vadd.f32 0.0, %v3521
      %v3523 = vpop.f32.mrb[0].mxu0
      %3524 = vmatprep.mubr.bf16.mxu0 0
      %3525 = vmatmul.mubr.bf16.gmra.mrb[0].mxu0 %v3311
      %v3526 = vpop.f32.mrb[0].mxu0
      %v3527 = vadd.f32 0.0, %v3526
      %v3528 = vpop.f32.mrb[0].mxu0
      %v3529 = vpop.f32.mrb[0].mxu0
      %v3530 = vadd.f32 0.0, %v3529
      %v3531 = vpop.f32.mrb[0].mxu0
      %3532 = vmatprep.mubr.bf16.mxu0 0
      %3533 = vmatmul.mubr.bf16.gmra.mrb[0].mxu0 %v3315
      %v3534 = vpop.f32.mrb[0].mxu0
      %v3535 = vadd.f32 0.0, %v3534
      %v3536 = vpop.f32.mrb[0].mxu0
      %v3537 = vpop.f32.mrb[0].mxu0
      %v3538 = vadd.f32 0.0, %v3537
      %v3539 = vpop.f32.mrb[0].mxu0
      %3540 = vmatprep.mubr.bf16.mxu0 0
      %3541 = vmatmul.mubr.bf16.gmra.mrb[0].mxu0 %v3319
      %v3542 = vpop.f32.mrb[0].mxu0
      %v3543 = vadd.f32 0.0, %v3542
      %v3544 = vpop.f32.mrb[0].mxu0
      %v3545 = vpop.f32.mrb[0].mxu0
      %v3546 = vadd.f32 0.0, %v3545
      %v3547 = vpop.f32.mrb[0].mxu0
      %3548 = vmatprep.mubr.bf16.mxu0 0
      %3549 = vmatmul.mubr.bf16.gmra.mrb[0].mxu0 %v3323
      %v3550 = vpop.f32.mrb[0].mxu0
      %v3551 = vadd.f32 0.0, %v3550
      %v3552 = vpop.f32.mrb[0].mxu0
      %v3553 = vpop.f32.mrb[0].mxu0
      %v3554 = vadd.f32 0.0, %v3553
      %v3555 = vpop.f32.mrb[0].mxu0
      %3556 = vmatprep.mubr.bf16.mxu0 0
      %3557 = vmatmul.mubr.bf16.gmra.mrb[0].mxu0 %v3327
      %v3558 = vpop.f32.mrb[0].mxu0
      %v3559 = vadd.f32 0.0, %v3558
      %v3560 = vpop.f32.mrb[0].mxu0
      %v3561 = vpop.f32.mrb[0].mxu0
      %v3562 = vadd.f32 0.0, %v3561
      %v3563 = vpop.f32.mrb[0].mxu0
      %3564 = vmatprep.mubr.bf16.mxu0 0
      %3565 = vmatmul.mubr.bf16.gmra.mrb[0].mxu0 %v3331
      %v3566 = vpop.f32.mrb[0].mxu0
      %v3567 = vadd.f32 0.0, %v3566
      %v3568 = vpop.f32.mrb[0].mxu0
      %v3569 = vpop.f32.mrb[0].mxu0
      %v3570 = vadd.f32 0.0, %v3569
      %v3571 = vpop.f32.mrb[0].mxu0
      %3572 = vmatprep.mubr.bf16.mxu0 0
      %3573 = vmatmul.mubr.bf16.gmra.mrb[0].mxu0 %v3335
      %v3574 = vpop.f32.mrb[0].mxu0
      %v3575 = vadd.f32 0.0, %v3574
      %v3576 = vpop.f32.mrb[0].mxu0
      %v3577 = vpop.f32.mrb[0].mxu0
      %v3578 = vadd.f32 0.0, %v3577
      %v3579 = vpop.f32.mrb[0].mxu0
      %3580 = vmatprep.mubr.bf16.mxu0 0
      %3581 = vmatmul.mubr.bf16.gmra.mrb[0].mxu0 %v3344
      %v3582 = vpop.f32.mrb[0].mxu0
      %v3583 = vadd.f32 0.0, %v3582
      %v3584 = vpop.f32.mrb[0].mxu0
      %v3585 = vpop.f32.mrb[0].mxu0
      %v3586 = vadd.f32 0.0, %v3585
      %v3587 = vpop.f32.mrb[0].mxu0
      %3588 = vmatprep.mubr.bf16.mxu0 0
      %3589 = vmatmul.mubr.bf16.gmra.mrb[0].mxu0 %v3353
      %v3590 = vpop.f32.mrb[0].mxu0
      %v3591 = vadd.f32 0.0, %v3590
      %v3592 = vpop.f32.mrb[0].mxu0
      %v3593 = vpop.f32.mrb[0].mxu0
      %v3594 = vadd.f32 0.0, %v3593
      %v3595 = vpop.f32.mrb[0].mxu0
      %3596 = vdwg.mxu0
      %v3597 = vadd.f32 %v3215, %v3455
      %v3598 = vadd.f32 %v3216, %v3458
      %v3599 = vadd.f32 %v3217, %v3463
      %v3600 = vadd.f32 %v3218, %v3466
      %v3601 = vadd.f32 %v3219, %v3471
      %v3602 = vadd.f32 %v3220, %v3474
      %v3603 = vadd.f32 %v3221, %v3479
      %v3604 = vadd.f32 %v3222, %v3482
      %v3605 = vadd.f32 %v3223, %v3487
      %v3606 = vadd.f32 %v3224, %v3490
      %v3607 = vadd.f32 %v3225, %v3495
      %v3608 = vadd.f32 %v3226, %v3498
      %v3609 = vadd.f32 %v3227, %v3503
      %v3610 = vadd.f32 %v3228, %v3506
      %v3611 = vadd.f32 %v3229, %v3511
      %v3612 = vadd.f32 %v3230, %v3514
      %v3613 = vadd.f32 %v3231, %v3519
      %v3614 = vadd.f32 %v3232, %v3522
      %v3615 = vadd.f32 %v3233, %v3527
      %v3616 = vadd.f32 %v3234, %v3530
      %v3617 = vadd.f32 %v3235, %v3535
      %v3618 = vadd.f32 %v3236, %v3538
      %v3619 = vadd.f32 %v3237, %v3543
      %v3620 = vadd.f32 %v3238, %v3546
      %v3621 = vadd.f32 %v3239, %v3551
      %v3622 = vadd.f32 %v3240, %v3554
      %v3623 = vadd.f32 %v3241, %v3559
      %v3624 = vadd.f32 %v3242, %v3562
      %v3625 = vadd.f32 %v3243, %v3567
      %v3626 = vadd.f32 %v3244, %v3570
      %v3627 = vadd.f32 %v3245, %v3575
      %v3628 = vadd.f32 %v3246, %v3578
      %v3629 = vadd.f32 %v3247, %v3583
      %v3630 = vadd.f32 %v3248, %v3586
      %v3631 = vadd.f32 %v3249, %v3591
      %v3632 = vadd.f32 %v3250, %v3594
      %s3633 = scalar_lea.vmem %s4, 512
      %v3634 = vld [vmem:[%s3633] sm:$0xf]
      %v3635 = vld [vmem:[%s3633 + $0x4] sm:$0xf]
      %v3636 = vld [vmem:[%s3633 + $0x8] sm:$0xf]
      %v3637 = vld [vmem:[%s3633 + $0xc] sm:$0xf]
      %v3638 = vld [vmem:[%s3633 + $0x10] sm:$0xf]
      %v3639 = vld [vmem:[%s3633 + $0x14] sm:$0xf]
      %v3640 = vld [vmem:[%s3633 + $0x18] sm:$0xf]
      %v3641 = vld [vmem:[%s3633 + $0x1c] sm:$0xf]
      %v3642 = vld [vmem:[%s3633 + $0x20] sm:$0xf]
      %v3643 = vld [vmem:[%s3633 + $0x24] sm:$0xf]
      %v3644 = vld [vmem:[%s3633 + $0x28] sm:$0xf]
      %v3645 = vld [vmem:[%s3633 + $0x2c] sm:$0xf]
      %v3646 = vld [vmem:[%s3633 + $0x30] sm:$0xf]
      %v3647 = vld [vmem:[%s3633 + $0x34] sm:$0xf]
      %v3648 = vld [vmem:[%s3633 + $0x38] sm:$0xf]
      %v3649 = vld [vmem:[%s3633 + $0x3c] sm:$0xf]
      %vm3650 = vcmask 1044480
      %v3651 = vrot.slane %v939, 3
      %v3652 = vrot.slane %v940, 3
      %v3653 = vsel %vm3650, %v3651, %v3652
      %v3654 = vrot.slane %v941, 3
      %v3655 = vsel %vm3650, %v3652, %v3654
      %v3656 = vrot.slane %v942, 3
      %v3657 = vsel %vm3650, %v3654, %v3656
      %v3658 = vrot.slane %v943, 3
      %v3659 = vsel %vm3650, %v3656, %v3658
      %v3660 = vrot.slane %v944, 3
      %v3661 = vsel %vm3650, %v3658, %v3660
      %v3662 = vrot.slane %v945, 3
      %v3663 = vsel %vm3650, %v3660, %v3662
      %v3664 = vrot.slane %v946, 3
      %v3665 = vsel %vm3650, %v3662, %v3664
      %v3666 = vrot.slane %v947, 3
      %v3667 = vsel %vm3650, %v3664, %v3666
      %v3668 = vrot.slane %v948, 3
      %v3669 = vsel %vm3650, %v3666, %v3668
      %v3670 = vrot.slane %v949, 3
      %v3671 = vsel %vm3650, %v3668, %v3670
      %v3672 = vrot.slane %v950, 3
      %v3673 = vsel %vm3650, %v3670, %v3672
      %v3674 = vrot.slane %v951, 3
      %v3675 = vsel %vm3650, %v3672, %v3674
      %v3676 = vrot.slane %v952, 3
      %v3677 = vsel %vm3650, %v3674, %v3676
      %v3678 = vrot.slane %v953, 3
      %v3679 = vsel %vm3650, %v3676, %v3678
      %v3680 = vrot.slane %v954, 3
      %v3681 = vsel %vm3650, %v3678, %v3680
      %v3682 = vrot.slane %v1959, 3
      %v3683 = vsel %vm3650, %v3680, %v3682
      %v3684 = vrot.slane %v2963, 3
      %v3685 = vsel %vm3650, %v3682, %v3684
      %v3686 = vrot.slane %v2964, 3
      %v3687 = vsel %vm3650, %v3684, %v3686
      %v3722 = vunpack.c.l.b16 %v3634
      %v3723 = vunpack.c.l.b16 %v3635
      %v3724 = vunpack.c.l.b16 %v3636
      %v3725 = vunpack.c.l.b16 %v3637
      %v3726 = vunpack.c.l.b16 %v3638
      %v3727 = vunpack.c.l.b16 %v3639
      %v3728 = vunpack.c.l.b16 %v3640
      %v3729 = vunpack.c.l.b16 %v3641
      %v3730 = vunpack.c.l.b16 %v3642
      %v3731 = vunpack.c.l.b16 %v3643
      %v3732 = vunpack.c.l.b16 %v3644
      %v3733 = vunpack.c.l.b16 %v3645
      %v3734 = vunpack.c.l.b16 %v3646
      %v3735 = vunpack.c.l.b16 %v3647
      %v3736 = vunpack.c.l.b16 %v3648
      %v3737 = vunpack.c.l.b16 %v3649
      %v3738 = vpack.c.b16 %v3723, %v3722
      %v3739 = vpack.c.b16 %v3725, %v3724
      %v3740 = vpack.c.b16 %v3727, %v3726
      %v3741 = vpack.c.b16 %v3729, %v3728
      %v3742 = vpack.c.b16 %v3731, %v3730
      %v3743 = vpack.c.b16 %v3733, %v3732
      %v3744 = vpack.c.b16 %v3735, %v3734
      %v3745 = vpack.c.b16 %v3737, %v3736
      %3754 = vmatprep.subr.bf16.mxu0 0
      %3755 = vmatpush1.bf16.msra.mxu0 %v3738
      %3756 = vmatprep.subr.bf16.mxu0 0
      %3757 = vmatpush1.bf16.msra.mxu0 %v3739
      %3758 = vmatprep.subr.bf16.mxu0 0
      %3759 = vmatpush1.bf16.msra.mxu0 %v3740
      %3760 = vmatprep.subr.bf16.mxu0 0
      %3761 = vmatpush1.bf16.msra.mxu0 %v3741
      %3762 = vmatprep.subr.bf16.mxu0 0
      %3763 = vmatpush1.bf16.msra.mxu0 %v3742
      %3764 = vmatprep.subr.bf16.mxu0 0
      %3765 = vmatpush1.bf16.msra.mxu0 %v3743
      %3766 = vmatprep.subr.bf16.mxu0 0
      %3767 = vmatpush1.bf16.msra.mxu0 %v3744
      %3768 = vmatprep.subr.bf16.mxu0 0
      %3769 = vmatpush1.bf16.msra.mxu0 %v3745
      %3770 = vmatprep.subr.bf16.mxu0 0
      %3771 = vmatpush1.bf16.msra.mxu0 0
      %3772 = vmatprep.subr.bf16.mxu0 0
      %3773 = vmatpush1.bf16.msra.mxu0 0
      %3774 = vmatprep.subr.bf16.mxu0 0
      %3775 = vmatpush1.bf16.msra.mxu0 0
      %3776 = vmatprep.subr.bf16.mxu0 0
      %3777 = vmatpush1.bf16.msra.mxu0 0
      %3778 = vmatprep.subr.bf16.mxu0 0
      %3779 = vmatpush1.bf16.msra.mxu0 0
      %3780 = vmatprep.subr.bf16.mxu0 0
      %3781 = vmatpush1.bf16.msra.mxu0 0
      %3782 = vmatprep.subr.bf16.mxu0 0
      %3783 = vmatpush1.bf16.msra.mxu0 0
      %3784 = vmatprep.subr.bf16.mxu0 0
      %3785 = vmatpush1.bf16.msra.mxu0 0
      %3786 = vmatprep.mubr.bf16.mxu0 0
      %3787 = vmatmul.mubr.bf16.gmra.mrb[0].mxu0 %v3653
      %v3788 = vpop.f32.mrb[0].mxu0
      %v3789 = vadd.f32 0.0, %v3788
      %v3790 = vpop.f32.mrb[0].mxu0
      %v3791 = vpop.f32.mrb[0].mxu0
      %v3792 = vadd.f32 0.0, %v3791
      %v3793 = vpop.f32.mrb[0].mxu0
      %3794 = vmatprep.mubr.bf16.mxu0 0
      %3795 = vmatmul.mubr.bf16.gmra.mrb[0].mxu0 %v3655
      %v3796 = vpop.f32.mrb[0].mxu0
      %v3797 = vadd.f32 0.0, %v3796
      %v3798 = vpop.f32.mrb[0].mxu0
      %v3799 = vpop.f32.mrb[0].mxu0
      %v3800 = vadd.f32 0.0, %v3799
      %v3801 = vpop.f32.mrb[0].mxu0
      %3802 = vmatprep.mubr.bf16.mxu0 0
      %3803 = vmatmul.mubr.bf16.gmra.mrb[0].mxu0 %v3657
      %v3804 = vpop.f32.mrb[0].mxu0
      %v3805 = vadd.f32 0.0, %v3804
      %v3806 = vpop.f32.mrb[0].mxu0
      %v3807 = vpop.f32.mrb[0].mxu0
      %v3808 = vadd.f32 0.0, %v3807
      %v3809 = vpop.f32.mrb[0].mxu0
      %3810 = vmatprep.mubr.bf16.mxu0 0
      %3811 = vmatmul.mubr.bf16.gmra.mrb[0].mxu0 %v3659
      %v3812 = vpop.f32.mrb[0].mxu0
      %v3813 = vadd.f32 0.0, %v3812
      %v3814 = vpop.f32.mrb[0].mxu0
      %v3815 = vpop.f32.mrb[0].mxu0
      %v3816 = vadd.f32 0.0, %v3815
      %v3817 = vpop.f32.mrb[0].mxu0
      %3818 = vmatprep.mubr.bf16.mxu0 0
      %3819 = vmatmul.mubr.bf16.gmra.mrb[0].mxu0 %v3661
      %v3820 = vpop.f32.mrb[0].mxu0
      %v3821 = vadd.f32 0.0, %v3820
      %v3822 = vpop.f32.mrb[0].mxu0
      %v3823 = vpop.f32.mrb[0].mxu0
      %v3824 = vadd.f32 0.0, %v3823
      %v3825 = vpop.f32.mrb[0].mxu0
      %3826 = vmatprep.mubr.bf16.mxu0 0
      %3827 = vmatmul.mubr.bf16.gmra.mrb[0].mxu0 %v3663
      %v3828 = vpop.f32.mrb[0].mxu0
      %v3829 = vadd.f32 0.0, %v3828
      %v3830 = vpop.f32.mrb[0].mxu0
      %v3831 = vpop.f32.mrb[0].mxu0
      %v3832 = vadd.f32 0.0, %v3831
      %v3833 = vpop.f32.mrb[0].mxu0
      %3834 = vmatprep.mubr.bf16.mxu0 0
      %3835 = vmatmul.mubr.bf16.gmra.mrb[0].mxu0 %v3665
      %v3836 = vpop.f32.mrb[0].mxu0
      %v3837 = vadd.f32 0.0, %v3836
      %v3838 = vpop.f32.mrb[0].mxu0
      %v3839 = vpop.f32.mrb[0].mxu0
      %v3840 = vadd.f32 0.0, %v3839
      %v3841 = vpop.f32.mrb[0].mxu0
      %3842 = vmatprep.mubr.bf16.mxu0 0
      %3843 = vmatmul.mubr.bf16.gmra.mrb[0].mxu0 %v3667
      %v3844 = vpop.f32.mrb[0].mxu0
      %v3845 = vadd.f32 0.0, %v3844
      %v3846 = vpop.f32.mrb[0].mxu0
      %v3847 = vpop.f32.mrb[0].mxu0
      %v3848 = vadd.f32 0.0, %v3847
      %v3849 = vpop.f32.mrb[0].mxu0
      %3850 = vmatprep.mubr.bf16.mxu0 0
      %3851 = vmatmul.mubr.bf16.gmra.mrb[0].mxu0 %v3669
      %v3852 = vpop.f32.mrb[0].mxu0
      %v3853 = vadd.f32 0.0, %v3852
      %v3854 = vpop.f32.mrb[0].mxu0
      %v3855 = vpop.f32.mrb[0].mxu0
      %v3856 = vadd.f32 0.0, %v3855
      %v3857 = vpop.f32.mrb[0].mxu0
      %3858 = vmatprep.mubr.bf16.mxu0 0
      %3859 = vmatmul.mubr.bf16.gmra.mrb[0].mxu0 %v3671
      %v3860 = vpop.f32.mrb[0].mxu0
      %v3861 = vadd.f32 0.0, %v3860
      %v3862 = vpop.f32.mrb[0].mxu0
      %v3863 = vpop.f32.mrb[0].mxu0
      %v3864 = vadd.f32 0.0, %v3863
      %v3865 = vpop.f32.mrb[0].mxu0
      %3866 = vmatprep.mubr.bf16.mxu0 0
      %3867 = vmatmul.mubr.bf16.gmra.mrb[0].mxu0 %v3673
      %v3868 = vpop.f32.mrb[0].mxu0
      %v3869 = vadd.f32 0.0, %v3868
      %v3870 = vpop.f32.mrb[0].mxu0
      %v3871 = vpop.f32.mrb[0].mxu0
      %v3872 = vadd.f32 0.0, %v3871
      %v3873 = vpop.f32.mrb[0].mxu0
      %3874 = vmatprep.mubr.bf16.mxu0 0
      %3875 = vmatmul.mubr.bf16.gmra.mrb[0].mxu0 %v3675
      %v3876 = vpop.f32.mrb[0].mxu0
      %v3877 = vadd.f32 0.0, %v3876
      %v3878 = vpop.f32.mrb[0].mxu0
      %v3879 = vpop.f32.mrb[0].mxu0
      %v3880 = vadd.f32 0.0, %v3879
      %v3881 = vpop.f32.mrb[0].mxu0
      %3882 = vmatprep.mubr.bf16.mxu0 0
      %3883 = vmatmul.mubr.bf16.gmra.mrb[0].mxu0 %v3677
      %v3884 = vpop.f32.mrb[0].mxu0
      %v3885 = vadd.f32 0.0, %v3884
      %v3886 = vpop.f32.mrb[0].mxu0
      %v3887 = vpop.f32.mrb[0].mxu0
      %v3888 = vadd.f32 0.0, %v3887
      %v3889 = vpop.f32.mrb[0].mxu0
      %3890 = vmatprep.mubr.bf16.mxu0 0
      %3891 = vmatmul.mubr.bf16.gmra.mrb[0].mxu0 %v3679
      %v3892 = vpop.f32.mrb[0].mxu0
      %v3893 = vadd.f32 0.0, %v3892
      %v3894 = vpop.f32.mrb[0].mxu0
      %v3895 = vpop.f32.mrb[0].mxu0
      %v3896 = vadd.f32 0.0, %v3895
      %v3897 = vpop.f32.mrb[0].mxu0
      %3898 = vmatprep.mubr.bf16.mxu0 0
      %3899 = vmatmul.mubr.bf16.gmra.mrb[0].mxu0 %v3681
      %v3900 = vpop.f32.mrb[0].mxu0
      %v3901 = vadd.f32 0.0, %v3900
      %v3902 = vpop.f32.mrb[0].mxu0
      %v3903 = vpop.f32.mrb[0].mxu0
      %v3904 = vadd.f32 0.0, %v3903
      %v3905 = vpop.f32.mrb[0].mxu0
      %3906 = vmatprep.mubr.bf16.mxu0 0
      %3907 = vmatmul.mubr.bf16.gmra.mrb[0].mxu0 %v3683
      %v3908 = vpop.f32.mrb[0].mxu0
      %v3909 = vadd.f32 0.0, %v3908
      %v3910 = vpop.f32.mrb[0].mxu0
      %v3911 = vpop.f32.mrb[0].mxu0
      %v3912 = vadd.f32 0.0, %v3911
      %v3913 = vpop.f32.mrb[0].mxu0
      %3914 = vmatprep.mubr.bf16.mxu0 0
      %3915 = vmatmul.mubr.bf16.gmra.mrb[0].mxu0 %v3685
      %v3916 = vpop.f32.mrb[0].mxu0
      %v3917 = vadd.f32 0.0, %v3916
      %v3918 = vpop.f32.mrb[0].mxu0
      %v3919 = vpop.f32.mrb[0].mxu0
      %v3920 = vadd.f32 0.0, %v3919
      %v3921 = vpop.f32.mrb[0].mxu0
      %3922 = vmatprep.mubr.bf16.mxu0 0
      %3923 = vmatmul.mubr.bf16.gmra.mrb[0].mxu0 %v3687
      %v3924 = vpop.f32.mrb[0].mxu0
      %v3925 = vadd.f32 0.0, %v3924
      %v3926 = vpop.f32.mrb[0].mxu0
      %v3927 = vpop.f32.mrb[0].mxu0
      %v3928 = vadd.f32 0.0, %v3927
      %v3929 = vpop.f32.mrb[0].mxu0
      %3930 = vdwg.mxu0
      %v3931 = vadd.f32 %v3597, %v3789
      %v3932 = vadd.f32 %v3598, %v3792
      %v3933 = vadd.f32 %v3599, %v3797
      %v3934 = vadd.f32 %v3600, %v3800
      %v3935 = vadd.f32 %v3601, %v3805
      %v3936 = vadd.f32 %v3602, %v3808
      %v3937 = vadd.f32 %v3603, %v3813
      %v3938 = vadd.f32 %v3604, %v3816
      %v3939 = vadd.f32 %v3605, %v3821
      %v3940 = vadd.f32 %v3606, %v3824
      %v3941 = vadd.f32 %v3607, %v3829
      %v3942 = vadd.f32 %v3608, %v3832
      %v3943 = vadd.f32 %v3609, %v3837
      %v3944 = vadd.f32 %v3610, %v3840
      %v3945 = vadd.f32 %v3611, %v3845
      %v3946 = vadd.f32 %v3612, %v3848
      %v3947 = vadd.f32 %v3613, %v3853
      %v3948 = vadd.f32 %v3614, %v3856
      %v3949 = vadd.f32 %v3615, %v3861
      %v3950 = vadd.f32 %v3616, %v3864
      %v3951 = vadd.f32 %v3617, %v3869
      %v3952 = vadd.f32 %v3618, %v3872
      %v3953 = vadd.f32 %v3619, %v3877
      %v3954 = vadd.f32 %v3620, %v3880
      %v3955 = vadd.f32 %v3621, %v3885
      %v3956 = vadd.f32 %v3622, %v3888
      %v3957 = vadd.f32 %v3623, %v3893
      %v3958 = vadd.f32 %v3624, %v3896
      %v3959 = vadd.f32 %v3625, %v3901
      %v3960 = vadd.f32 %v3626, %v3904
      %v3961 = vadd.f32 %v3627, %v3909
      %v3962 = vadd.f32 %v3628, %v3912
      %v3963 = vadd.f32 %v3629, %v3917
      %v3964 = vadd.f32 %v3630, %v3920
      %v3965 = vadd.f32 %v3631, %v3925
      %v3966 = vadd.f32 %v3632, %v3928
      %3967 = vst [vmem:[%s224] sm:$0xff] %v3931
      %3968 = vst [vmem:[%s224 + $0x8] sm:$0xff] %v3932
      %3969 = vst [vmem:[%s224 + $0x10] sm:$0xff] %v3933
      %3970 = vst [vmem:[%s224 + $0x18] sm:$0xff] %v3934
      %3971 = vst [vmem:[%s224 + $0x20] sm:$0xff] %v3935
      %3972 = vst [vmem:[%s224 + $0x28] sm:$0xff] %v3936
      %3973 = vst [vmem:[%s224 + $0x30] sm:$0xff] %v3937
      %3974 = vst [vmem:[%s224 + $0x38] sm:$0xff] %v3938
      %3975 = vst [vmem:[%s224 + $0x40] sm:$0xff] %v3939
      %3976 = vst [vmem:[%s224 + $0x48] sm:$0xff] %v3940
      %3977 = vst [vmem:[%s224 + $0x50] sm:$0xff] %v3941
      %3978 = vst [vmem:[%s224 + $0x58] sm:$0xff] %v3942
      %3979 = vst [vmem:[%s224 + $0x60] sm:$0xff] %v3943
      %3980 = vst [vmem:[%s224 + $0x68] sm:$0xff] %v3944
      %3981 = vst [vmem:[%s224 + $0x70] sm:$0xff] %v3945
      %3982 = vst [vmem:[%s224 + $0x78] sm:$0xff] %v3946
      %3983 = vst [vmem:[%s224 + $0x80] sm:$0xff] %v3947
      %3984 = vst [vmem:[%s224 + $0x88] sm:$0xff] %v3948
      %3985 = vst [vmem:[%s224 + $0x90] sm:$0xff] %v3949
      %3986 = vst [vmem:[%s224 + $0x98] sm:$0xff] %v3950
      %3987 = vst [vmem:[%s224 + $0xa0] sm:$0xff] %v3951
      %3988 = vst [vmem:[%s224 + $0xa8] sm:$0xff] %v3952
      %3989 = vst [vmem:[%s224 + $0xb0] sm:$0xff] %v3953
      %3990 = vst [vmem:[%s224 + $0xb8] sm:$0xff] %v3954
      %3991 = vst [vmem:[%s224 + $0xc0] sm:$0xff] %v3955
      %3992 = vst [vmem:[%s224 + $0xc8] sm:$0xff] %v3956
      %3993 = vst [vmem:[%s224 + $0xd0] sm:$0xff] %v3957
      %3994 = vst [vmem:[%s224 + $0xd8] sm:$0xff] %v3958
      %3995 = vst [vmem:[%s224 + $0xe0] sm:$0xff] %v3959
      %3996 = vst [vmem:[%s224 + $0xe8] sm:$0xff] %v3960
      %3997 = vst [vmem:[%s224 + $0xf0] sm:$0xff] %v3961
      %3998 = vst [vmem:[%s224 + $0xf8] sm:$0xff] %v3962
      %3999 = vst [vmem:[%s224 + $0x100] sm:$0xff] %v3963
      %4000 = vst [vmem:[%s224 + $0x108] sm:$0xff] %v3964
      %4001 = vst [vmem:[%s224 + $0x110] sm:$0xff] %v3965
      %4002 = vst [vmem:[%s224 + $0x118] sm:$0xff] %v3966
      %p4003 = scmp.lt.s32.totalorder %s16, 1
      %s4004 = scalar_select %p4003, %s16, 1
      %s4005 = smul.addr %s4004, 36
      %s4006 = smul.addr %s4005, 8
      %s4007 = scalar_lea.vmem %s5, %s4006
      // Predicated region
      $region41: #{bottleneck_block.5} parent=39 // pred_check
        %p4008 = pneg %p144
      $region42: #{bottleneck_block.5} parent=39 // pred_check_branch
        %4010 = sbr.rel (%p4008) target = $region44
      $region43: #{bottleneck_block.5} parent=39 // pred_region
        _
      $region44: #{bottleneck_block.5} parent=39 // pred_fallthru
        _
    $region40: #{bottleneck_block.5} parent=5 // pred_fallthru
      _
    %p4011 = scmp.le.s32.totalorder 2, %s11
    // Predicated region
    $region45: #{bottleneck_block.5} parent=5 // pred_check
      %p4012 = pneg %p4011
    $region46: #{bottleneck_block.5} parent=5 // pred_check_branch
      %4014 = sbr.rel (%p4012) target = $region48
    $region47: #{bottleneck_block.5} parent=5 // pred_region
      %s4015 = ssub.s32 %s11, 2
      // Predicated region
      $region49: #{bottleneck_block.5} parent=47 // pred_check
        %p4016 = pneg %p150
      $region50: #{bottleneck_block.5} parent=47 // pred_check_branch
        %4018 = sbr.rel (%p4016) target = $region52
      $region51: #{bottleneck_block.5} parent=47 // pred_region
        %p4019 = scmp.lt.s32.totalorder %s17, 1
        %s4020 = scalar_select %p4019, %s17, 1
        %s4021 = smul.addr %s4020, 36
        %s4022 = smul.addr %s4021, 8
        %s4023 = scalar_lea.vmem %s5, %s4022
      $region52: #{bottleneck_block.5} parent=47 // pred_fallthru
        _
    $region48: #{bottleneck_block.5} parent=5 // pred_fallthru
      _
  $region6: #{bottleneck_block.5} parent=0 // loop_footer
    %s15 = sadd.s32 1, %s11
  $region7: #{bottleneck_block.5} parent=0 // loop_footer_branch
    %10 = sbr.rel target = $region3
  $region8: #{bottleneck_block.5} parent=0 // loop_exit
    _

</llo_original>
